<compile_context>
chip_gen: v6e
topology: v6e:2x2x1
jax: 0.10.0
libtpu: 0.0.40
codegen_flags: <defaults>
</compile_context>

<pallas_src>
import jax
import jax.numpy as jnp
from jax.experimental import pallas as pl
from jax.experimental.pallas import tpu as pltpu

_EPS = 1e-5
# HIGHEST kept for the two MLP matmuls: the kernel is EUP/VPU-bound (exp/erf),
# the MXU has slack, and HIGHEST guarantees 1e-4 parity with the f32 reference.
_HIGH = jax.lax.Precision.HIGHEST

# Inner lane-chunk width: the key-row loop keeps ~6 (H, _TC) slabs live;
# 128 lanes keeps that well under 64 vregs so nothing spills back to VMEM.
_TC = 128


def _layernorm_cols(x, gamma, beta):
    # x: (H, C); gamma/beta: (H, 1). Normalize over the feature axis (axis 0).
    # Biased variance, eps inside rsqrt (PyTorch LayerNorm semantics).
    mean = jnp.mean(x, axis=0, keepdims=True)
    var = jnp.mean(jnp.square(x - mean), axis=0, keepdims=True)
    return (x - mean) * jax.lax.rsqrt(var + _EPS) * gamma + beta


def _gelu_exact(x):
    # nn.GELU() default: exact erf form.
    return 0.5 * x * (1.0 + jax.lax.erf(x * (1.0 / jnp.sqrt(2.0).astype(x.dtype))))


def sda_kernel(q_ref, k_ref, v_ref,
               g1_ref, bt1_ref, g2_ref, bt2_ref,
               p_ref,                       # SMEM (8,): wq wk wv bq bk bv wo bo
               w1t_ref, bm1_ref, w2t_ref, bm2_ref,
               out_ref,
               vn_ref):                     # VMEM scratch (H, TB): norm1(value)
    H, TB = q_ref.shape

    wq = p_ref[0]
    wk = p_ref[1]
    wv = p_ref[2]
    bq = p_ref[3]
    bk = p_ref[4]
    bv = p_ref[5]
    wo = p_ref[6]
    bo = p_ref[7]

    g1 = g1_ref[...]
    bt1 = bt1_ref[...]
    g2 = g2_ref[...]
    bt2 = bt2_ref[...]
    w1t = w1t_ref[...]
    bm1 = bm1_ref[...]
    w2t = w2t_ref[...]
    bm2 = bm2_ref[...]

    for c in range(TB // _TC):
        sl = pl.ds(c * _TC, _TC)

        # norm1(value); stash in VMEM scratch so the j-loop re-reads single key
        # rows from VMEM instead of slicing a register-resident value.
        vn = _layernorm_cols(v_ref[:, sl], g1, bt1)           # (H, TC)
        vn_ref[:, sl] = vn

        # MultiheadAttention(embed_dim=1): in-projections are scalar affines.
        qp = wq * q_ref[:, sl] + bq                           # (H, TC)

        # Rank-1 score-max shortcut: scores[j,i,b] = kp[j,b]*qp[i,b], so
        # max_j scores = max(qp*kp_max, qp*kp_min) per (query, batch) column.
        k = k_ref[:, sl]                                      # (H, TC) transient
        kmx = jnp.max(k, axis=0, keepdims=True)               # (1, TC)
        kmn = jnp.min(k, axis=0, keepdims=True)               # (1, TC)
        kp_hi = jnp.maximum(wk * kmx, wk * kmn) + bk
        kp_lo = jnp.minimum(wk * kmx, wk * kmn) + bk
        m = jnp.maximum(qp * kp_hi, qp * kp_lo)               # (H, TC)

        # Fused softmax + value contraction over the key index j.
        # Only (H, TC) accumulators stay live; the (H, H, TC) scores / exp /
        # attention-weight tensors are never built.
        s = jnp.zeros_like(qp)                                # softmax denom
        acc = jnp.zeros_like(qp)                              # un-normalized attn
        for j in range(H):
            kpj = wk * k_ref[pl.ds(j, 1), sl] + bk            # (1, TC)
            ej = jnp.exp(qp * kpj - m)                        # (H, TC)
            vnj = vn_ref[pl.ds(j, 1), sl]                     # (1, TC)
            s = s + ej
            acc = acc + ej * vnj

        # Deferred normalization + folded value-projection bias:
        #   sum_j softmax_j * (wv*vn_j + bv) = wv * acc / s + bv
        attn = wv * acc * pl.reciprocal(s, approx=False) + bv
        attn = wo * attn + bo                                 # out_proj (scalar affine)

        # residual with norm1(value), then norm2
        y = _layernorm_cols(attn + vn, g2, bt2)               # (H, TC)

        # MLP on the (otherwise idle) MXU: (4H,H)x(H,TC) and (H,4H)x(4H,TC).
        h = jnp.dot(w1t, y, precision=_HIGH,
                    preferred_element_type=jnp.float32) + bm1     # (4H, TC)
        h = _gelu_exact(h)
        mlp = jnp.dot(w2t, h, precision=_HIGH,
                      preferred_element_type=jnp.float32) + bm2   # (H, TC)

        out_ref[:, sl] = y + mlp


def _round_up(x, m):
    return ((x + m - 1) // m) * m


def _cdiv(a, b):
    return (a + b - 1) // b


def _choose_tb(B, tb_max=512):
    """Pick the batch-tile width (multiple of 128 lanes).

    Preference order: least padding waste, then the biggest tile (to amortize
    the ~0.35us per-grid-step overhead).  When the padded batch is >= 256 we
    force at least 2 grid steps so the "parallel" batch axis can be split
    across v7x's two TensorCores.
    """
    tb_max = max(128, (tb_max // 128) * 128)
    b128 = _round_up(max(B, 1), 128)
    n_min = 2 if b128 >= 256 else 1
    best = None
    for tb in range(tb_max, 0, -128):
        n = _cdiv(b128, tb)
        if n < n_min:
            continue
        key = (n * tb - b128, -tb)        # (padding waste, prefer bigger tile)
        if best is None or key < best[0]:
            best = (key, tb)
    return best[1] if best is not None else 128


def scale_dot_attention(query, key, value, params, *, tb_max=512):
    (g1, bt1, g2, bt2, attn_p, w1, bm1, w2, bm2) = params
    B, H = query.shape
    H4 = 4 * H

    tb = _choose_tb(B, tb_max)
    B_pad = _round_up(B, tb)
    pad = B_pad - B

    def prep(x):                        # (B, H) -> (H, B_pad): batch on lanes
        if pad:
            x = jnp.pad(x, ((0, pad), (0, 0)))
        return x.T

    qT = prep(query)
    kT = prep(key)
    vT = prep(value)

    g1c = g1.reshape(H, 1)
    bt1c = bt1.reshape(H, 1)
    g2c = g2.reshape(H, 1)
    bt2c = bt2.reshape(H, 1)
    w1t = w1.T                          # (4H, H)
    bm1c = bm1.reshape(H4, 1)
    w2t = w2.T                          # (H, 4H)
    bm2c = bm2.reshape(H, 1)

    kvT = pl.pallas_call(
        sda_kernel,
        grid=(B_pad // tb,),
        in_specs=[
            pl.BlockSpec((H, tb), lambda i: (0, i)),            # query^T
            pl.BlockSpec((H, tb), lambda i: (0, i)),            # key^T
            pl.BlockSpec((H, tb), lambda i: (0, i)),            # value^T
            pl.BlockSpec((H, 1), lambda i: (0, 0)),             # norm1 gamma
            pl.BlockSpec((H, 1), lambda i: (0, 0)),             # norm1 beta
            pl.BlockSpec((H, 1), lambda i: (0, 0)),             # norm2 gamma
            pl.BlockSpec((H, 1), lambda i: (0, 0)),             # norm2 beta
            pl.BlockSpec(memory_space=pltpu.MemorySpace.SMEM),  # attn scalars (8,)
            pl.BlockSpec((H4, H), lambda i: (0, 0)),            # mlp W1^T
            pl.BlockSpec((H4, 1), lambda i: (0, 0)),            # mlp b1
            pl.BlockSpec((H, H4), lambda i: (0, 0)),            # mlp W2^T
            pl.BlockSpec((H, 1), lambda i: (0, 0)),             # mlp b2
        ],
        out_specs=pl.BlockSpec((H, tb), lambda i: (0, i)),
        out_shape=jax.ShapeDtypeStruct((H, B_pad), jnp.float32),
        scratch_shapes=[pltpu.VMEM((H, tb), jnp.float32)],      # norm1(value)
        compiler_params=pltpu.CompilerParams(
            dimension_semantics=("parallel",)),
    )(qT, kT, vT, g1c, bt1c, g2c, bt2c, attn_p, w1t, bm1c, w2t, bm2c)

    kv = kvT.T[:B]                      # back to (B, H)
    return query, kv, kv


def reference(query, key, value, params):
    (g1, bt1, g2, bt2, attn_p, w1, bm1, w2, bm2) = params
    wq, wk, wv, bq, bk, bv, wo, bo = [attn_p[i] for i in range(8)]

    def ln(x, g, b):
        mean = jnp.mean(x, axis=-1, keepdims=True)
        var = jnp.mean(jnp.square(x - mean), axis=-1, keepdims=True)
        return (x - mean) / jnp.sqrt(var + _EPS) * g.reshape(-1) + b.reshape(-1)

    vn = ln(value, g1, bt1)
    qp = wq * query + bq
    kp = wk * key + bk
    vp = wv * vn + bv
    scores = qp[:, :, None] * kp[:, None, :]            # (B, H, H)
    a = jax.nn.softmax(scores, axis=-1)
    attn = jnp.einsum('bij,bj->bi', a, vp, precision=_HIGH)
    attn = wo * attn + bo
    y = ln(attn + vn, g2, bt2)
    h = jax.nn.gelu(jnp.dot(y, w1, precision=_HIGH) + bm1.reshape(-1),
                    approximate=False)
    mlp = jnp.dot(h, w2, precision=_HIGH) + bm2.reshape(-1)
    kv = y + mlp
    return query, kv, kv


def make_params(key, hidden_dim):
    H = hidden_dim
    ks = jax.random.split(key, 6)
    g1 = jnp.ones((1, H), jnp.float32)
    bt1 = jnp.zeros((1, H), jnp.float32)
    g2 = jnp.ones((1, H), jnp.float32)
    bt2 = jnp.zeros((1, H), jnp.float32)
    # [wq, wk, wv, bq, bk, bv, wo, bo]
    attn_p = 0.5 * jax.random.normal(ks[0], (8,), jnp.float32)
    w1 = 0.1 * jax.random.normal(ks[1], (H, 4 * H), jnp.float32)
    bm1 = 0.1 * jax.random.normal(ks[2], (1, 4 * H), jnp.float32)
    w2 = 0.1 * jax.random.normal(ks[3], (4 * H, H), jnp.float32)
    bm2 = 0.1 * jax.random.normal(ks[4], (1, H), jnp.float32)
    return (g1, bt1, g2, bt2, attn_p, w1, bm1, w2, bm2)


if __name__ == "__main__":
    B, H = 2, 32
    root = jax.random.PRNGKey(0)
    kq, kk, kv_, kp = jax.random.split(root, 4)
    query = jax.random.normal(kq, (B, H), jnp.float32)
    key_in = jax.random.normal(kk, (B, H), jnp.float32)
    value = jax.random.normal(kv_, (B, H), jnp.float32)
    params = make_params(kp, H)

    out_q, out_kv, out_kv2 = scale_dot_attention(query, key_in, value, params)
    jax.block_until_ready(out_kv)

    ref_q, ref_kv, _ = reference(query, key_in, value, params)
    assert jnp.allclose(out_q, ref_q)
    assert jnp.allclose(out_kv, ref_kv, atol=1e-4, rtol=1e-4), (
        float(jnp.max(jnp.abs(out_kv - ref_kv))))
    assert jnp.allclose(out_kv2, out_kv)

    print("KERNEL_OK")
</pallas_src>

<mosaic_0001>
module attributes {stable_mosaic.version = 11 : i64} {
  func.func @sda_kernel(%arg0: i32, %arg1: memref<32x128xf32, #tpu.memory_space<vmem>>, %arg2: memref<32x128xf32, #tpu.memory_space<vmem>>, %arg3: memref<32x128xf32, #tpu.memory_space<vmem>>, %arg4: memref<32x1xf32, #tpu.memory_space<vmem>>, %arg5: memref<32x1xf32, #tpu.memory_space<vmem>>, %arg6: memref<32x1xf32, #tpu.memory_space<vmem>>, %arg7: memref<32x1xf32, #tpu.memory_space<vmem>>, %arg8: memref<8xf32, #tpu.memory_space<smem>>, %arg9: memref<128x32xf32, #tpu.memory_space<vmem>>, %arg10: memref<128x1xf32, #tpu.memory_space<vmem>>, %arg11: memref<32x128xf32, #tpu.memory_space<vmem>>, %arg12: memref<32x1xf32, #tpu.memory_space<vmem>>, %arg13: memref<32x128xf32, #tpu.memory_space<vmem>>, %arg14: memref<32x128xf32, #tpu.memory_space<vmem>>) attributes {dimension_semantics = [#tpu.dimension_semantics<parallel>], iteration_bounds = array<i64: 1>, scalar_prefetch = 0 : i64, scratch_operands = 1 : i64, tpu.core_type = #tpu.core_type<tc>, window_params = [{transform_indices = @transform_0, window_bounds = array<i64: 32, 128>}, {transform_indices = @transform_1, window_bounds = array<i64: 32, 128>}, {transform_indices = @transform_2, window_bounds = array<i64: 32, 128>}, {pipeline_mode = #tpu.pipeline_mode<synchronous>, transform_indices = @transform_3, window_bounds = array<i64: 32, 1>}, {pipeline_mode = #tpu.pipeline_mode<synchronous>, transform_indices = @transform_4, window_bounds = array<i64: 32, 1>}, {pipeline_mode = #tpu.pipeline_mode<synchronous>, transform_indices = @transform_5, window_bounds = array<i64: 32, 1>}, {pipeline_mode = #tpu.pipeline_mode<synchronous>, transform_indices = @transform_6, window_bounds = array<i64: 32, 1>}, {transform_indices = @transform_7, window_bounds = array<i64: 8>}, {pipeline_mode = #tpu.pipeline_mode<synchronous>, transform_indices = @transform_8, window_bounds = array<i64: 128, 32>}, {pipeline_mode = #tpu.pipeline_mode<synchronous>, transform_indices = @transform_9, window_bounds = array<i64: 128, 1>}, {pipeline_mode = #tpu.pipeline_mode<synchronous>, transform_indices = @transform_10, window_bounds = array<i64: 32, 128>}, {pipeline_mode = #tpu.pipeline_mode<synchronous>, transform_indices = @transform_11, window_bounds = array<i64: 32, 1>}, {transform_indices = @transform_12, window_bounds = array<i64: 32, 128>}]} {
    %c0 = arith.constant 0 : index
    %0 = memref.load %arg8[%c0] : memref<8xf32, #tpu.memory_space<smem>>
    %c1 = arith.constant 1 : index
    %1 = memref.load %arg8[%c1] : memref<8xf32, #tpu.memory_space<smem>>
    %c2 = arith.constant 2 : index
    %2 = memref.load %arg8[%c2] : memref<8xf32, #tpu.memory_space<smem>>
    %c3 = arith.constant 3 : index
    %3 = memref.load %arg8[%c3] : memref<8xf32, #tpu.memory_space<smem>>
    %c4 = arith.constant 4 : index
    %4 = memref.load %arg8[%c4] : memref<8xf32, #tpu.memory_space<smem>>
    %c5 = arith.constant 5 : index
    %5 = memref.load %arg8[%c5] : memref<8xf32, #tpu.memory_space<smem>>
    %c6 = arith.constant 6 : index
    %6 = memref.load %arg8[%c6] : memref<8xf32, #tpu.memory_space<smem>>
    %c7 = arith.constant 7 : index
    %7 = memref.load %arg8[%c7] : memref<8xf32, #tpu.memory_space<smem>>
    %c0_0 = arith.constant 0 : index
    %c0_1 = arith.constant 0 : index
    %8 = vector.load %arg4[%c0_0, %c0_1] : memref<32x1xf32, #tpu.memory_space<vmem>>, vector<32x1xf32>
    %c0_2 = arith.constant 0 : index
    %c0_3 = arith.constant 0 : index
    %9 = vector.load %arg5[%c0_2, %c0_3] : memref<32x1xf32, #tpu.memory_space<vmem>>, vector<32x1xf32>
    %c0_4 = arith.constant 0 : index
    %c0_5 = arith.constant 0 : index
    %10 = vector.load %arg6[%c0_4, %c0_5] : memref<32x1xf32, #tpu.memory_space<vmem>>, vector<32x1xf32>
    %c0_6 = arith.constant 0 : index
    %c0_7 = arith.constant 0 : index
    %11 = vector.load %arg7[%c0_6, %c0_7] : memref<32x1xf32, #tpu.memory_space<vmem>>, vector<32x1xf32>
    %c0_8 = arith.constant 0 : index
    %c0_9 = arith.constant 0 : index
    %12 = vector.load %arg9[%c0_8, %c0_9] : memref<128x32xf32, #tpu.memory_space<vmem>>, vector<128x32xf32>
    %c0_10 = arith.constant 0 : index
    %c0_11 = arith.constant 0 : index
    %13 = vector.load %arg10[%c0_10, %c0_11] : memref<128x1xf32, #tpu.memory_space<vmem>>, vector<128x1xf32>
    %c0_12 = arith.constant 0 : index
    %c0_13 = arith.constant 0 : index
    %14 = vector.load %arg11[%c0_12, %c0_13] : memref<32x128xf32, #tpu.memory_space<vmem>>, vector<32x128xf32>
    %c0_14 = arith.constant 0 : index
    %c0_15 = arith.constant 0 : index
    %15 = vector.load %arg12[%c0_14, %c0_15] : memref<32x1xf32, #tpu.memory_space<vmem>>, vector<32x1xf32>
    %c0_16 = arith.constant 0 : index
    %c0_17 = arith.constant 0 : index
    %16 = vector.load %arg3[%c0_16, %c0_17] : memref<32x128xf32, #tpu.memory_space<vmem>>, vector<32x128xf32>
    %cst = arith.constant dense<0.000000e+00> : vector<128xf32>
    %17 = vector.multi_reduction <add>, %16, %cst [0] : vector<32x128xf32> to vector<128xf32>
    %18 = vector.shape_cast %17 : vector<128xf32> to vector<1x128xf32>
    %cst_18 = arith.constant 3.200000e+01 : f32
    %19 = vector.broadcast %cst_18 : f32 to vector<1x128xf32>
    %20 = arith.divf %18, %19 : vector<1x128xf32>
    %21 = vector.broadcast %20 : vector<1x128xf32> to vector<32x128xf32>
    %22 = arith.subf %16, %21 : vector<32x128xf32>
    %23 = arith.mulf %22, %22 : vector<32x128xf32>
    %cst_19 = arith.constant dense<0.000000e+00> : vector<128xf32>
    %24 = vector.multi_reduction <add>, %23, %cst_19 [0] : vector<32x128xf32> to vector<128xf32>
    %25 = vector.shape_cast %24 : vector<128xf32> to vector<1x128xf32>
    %cst_20 = arith.constant 3.200000e+01 : f32
    %26 = vector.broadcast %cst_20 : f32 to vector<1x128xf32>
    %27 = arith.divf %25, %26 : vector<1x128xf32>
    %28 = vector.broadcast %20 : vector<1x128xf32> to vector<32x128xf32>
    %29 = arith.subf %16, %28 : vector<32x128xf32>
    %cst_21 = arith.constant 9.99999974E-6 : f32
    %30 = vector.broadcast %cst_21 : f32 to vector<1x128xf32>
    %31 = arith.addf %27, %30 : vector<1x128xf32>
    %32 = math.rsqrt %31 : vector<1x128xf32>
    %33 = vector.broadcast %32 : vector<1x128xf32> to vector<32x128xf32>
    %34 = arith.mulf %29, %33 : vector<32x128xf32>
    %35 = vector.broadcast %8 : vector<32x1xf32> to vector<32x128xf32>
    %36 = arith.mulf %34, %35 : vector<32x128xf32>
    %37 = vector.broadcast %9 : vector<32x1xf32> to vector<32x128xf32>
    %38 = arith.addf %36, %37 : vector<32x128xf32>
    %c0_22 = arith.constant 0 : index
    %c0_23 = arith.constant 0 : index
    %39 = vector.load %arg14[%c0_22, %c0_23] : memref<32x128xf32, #tpu.memory_space<vmem>>, vector<32x128xf32>
    tpu.vector_store %arg14[%c0_22, %c0_23], %38 {strides = array<i32>} : memref<32x128xf32, #tpu.memory_space<vmem>>, vector<32x128xf32>,
    %c0_24 = arith.constant 0 : index
    %c0_25 = arith.constant 0 : index
    %40 = vector.load %arg1[%c0_24, %c0_25] : memref<32x128xf32, #tpu.memory_space<vmem>>, vector<32x128xf32>
    %41 = vector.broadcast %0 : f32 to vector<32x128xf32>
    %42 = arith.mulf %41, %40 : vector<32x128xf32>
    %43 = vector.broadcast %3 : f32 to vector<32x128xf32>
    %44 = arith.addf %42, %43 : vector<32x128xf32>
    %c0_26 = arith.constant 0 : index
    %c0_27 = arith.constant 0 : index
    %45 = vector.load %arg2[%c0_26, %c0_27] : memref<32x128xf32, #tpu.memory_space<vmem>>, vector<32x128xf32>
    %cst_28 = arith.constant dense<0xFF800000> : vector<128xf32>
    %46 = vector.multi_reduction <maximumf>, %45, %cst_28 [0] : vector<32x128xf32> to vector<128xf32>
    %47 = vector.shape_cast %46 : vector<128xf32> to vector<1x128xf32>
    %cst_29 = arith.constant dense<0x7F800000> : vector<128xf32>
    %48 = vector.multi_reduction <minimumf>, %45, %cst_29 [0] : vector<32x128xf32> to vector<128xf32>
    %49 = vector.shape_cast %48 : vector<128xf32> to vector<1x128xf32>
    %50 = vector.broadcast %1 : f32 to vector<1x128xf32>
    %51 = arith.mulf %50, %47 : vector<1x128xf32>
    %52 = vector.broadcast %1 : f32 to vector<1x128xf32>
    %53 = arith.mulf %52, %49 : vector<1x128xf32>
    %54 = arith.maximumf %51, %53 : vector<1x128xf32>
    %55 = vector.broadcast %4 : f32 to vector<1x128xf32>
    %56 = arith.addf %54, %55 : vector<1x128xf32>
    %57 = vector.broadcast %1 : f32 to vector<1x128xf32>
    %58 = arith.mulf %57, %47 : vector<1x128xf32>
    %59 = vector.broadcast %1 : f32 to vector<1x128xf32>
    %60 = arith.mulf %59, %49 : vector<1x128xf32>
    %61 = arith.minimumf %58, %60 : vector<1x128xf32>
    %62 = vector.broadcast %4 : f32 to vector<1x128xf32>
    %63 = arith.addf %61, %62 : vector<1x128xf32>
    %64 = vector.broadcast %56 : vector<1x128xf32> to vector<32x128xf32>
    %65 = arith.mulf %44, %64 : vector<32x128xf32>
    %66 = vector.broadcast %63 : vector<1x128xf32> to vector<32x128xf32>
    %67 = arith.mulf %44, %66 : vector<32x128xf32>
    %68 = arith.maximumf %65, %67 : vector<32x128xf32>
    %cst_30 = arith.constant 0.000000e+00 : f32
    %69 = vector.broadcast %cst_30 : f32 to vector<32x128xf32>
    %cst_31 = arith.constant 0.000000e+00 : f32
    %70 = vector.broadcast %cst_31 : f32 to vector<32x128xf32>
    %c0_32 = arith.constant 0 : index
    %c0_33 = arith.constant 0 : index
    %71 = vector.load %arg2[%c0_32, %c0_33] : memref<32x128xf32, #tpu.memory_space<vmem>>, vector<1x128xf32>
    %72 = vector.broadcast %1 : f32 to vector<1x128xf32>
    %73 = arith.mulf %72, %71 : vector<1x128xf32>
    %74 = vector.broadcast %4 : f32 to vector<1x128xf32>
    %75 = arith.addf %73, %74 : vector<1x128xf32>
    %76 = vector.broadcast %75 : vector<1x128xf32> to vector<32x128xf32>
    %77 = arith.mulf %44, %76 : vector<32x128xf32>
    %78 = arith.subf %77, %68 : vector<32x128xf32>
    %79 = math.exp %78 : vector<32x128xf32>
    %c0_34 = arith.constant 0 : index
    %c0_35 = arith.constant 0 : index
    %80 = vector.load %arg14[%c0_34, %c0_35] : memref<32x128xf32, #tpu.memory_space<vmem>>, vector<1x128xf32>
    %81 = arith.addf %69, %79 : vector<32x128xf32>
    %82 = vector.broadcast %80 : vector<1x128xf32> to vector<32x128xf32>
    %83 = arith.mulf %79, %82 : vector<32x128xf32>
    %84 = arith.addf %70, %83 : vector<32x128xf32>
    %c1_36 = arith.constant 1 : index
    %c0_37 = arith.constant 0 : index
    %85 = vector.load %arg2[%c1_36, %c0_37] : memref<32x128xf32, #tpu.memory_space<vmem>>, vector<1x128xf32>
    %86 = vector.broadcast %1 : f32 to vector<1x128xf32>
    %87 = arith.mulf %86, %85 : vector<1x128xf32>
    %88 = vector.broadcast %4 : f32 to vector<1x128xf32>
    %89 = arith.addf %87, %88 : vector<1x128xf32>
    %90 = vector.broadcast %89 : vector<1x128xf32> to vector<32x128xf32>
    %91 = arith.mulf %44, %90 : vector<32x128xf32>
    %92 = arith.subf %91, %68 : vector<32x128xf32>
    %93 = math.exp %92 : vector<32x128xf32>
    %c1_38 = arith.constant 1 : index
    %c0_39 = arith.constant 0 : index
    %94 = vector.load %arg14[%c1_38, %c0_39] : memref<32x128xf32, #tpu.memory_space<vmem>>, vector<1x128xf32>
    %95 = arith.addf %81, %93 : vector<32x128xf32>
    %96 = vector.broadcast %94 : vector<1x128xf32> to vector<32x128xf32>
    %97 = arith.mulf %93, %96 : vector<32x128xf32>
    %98 = arith.addf %84, %97 : vector<32x128xf32>
    %c2_40 = arith.constant 2 : index
    %c0_41 = arith.constant 0 : index
    %99 = vector.load %arg2[%c2_40, %c0_41] : memref<32x128xf32, #tpu.memory_space<vmem>>, vector<1x128xf32>
    %100 = vector.broadcast %1 : f32 to vector<1x128xf32>
    %101 = arith.mulf %100, %99 : vector<1x128xf32>
    %102 = vector.broadcast %4 : f32 to vector<1x128xf32>
    %103 = arith.addf %101, %102 : vector<1x128xf32>
    %104 = vector.broadcast %103 : vector<1x128xf32> to vector<32x128xf32>
    %105 = arith.mulf %44, %104 : vector<32x128xf32>
    %106 = arith.subf %105, %68 : vector<32x128xf32>
    %107 = math.exp %106 : vector<32x128xf32>
    %c2_42 = arith.constant 2 : index
    %c0_43 = arith.constant 0 : index
    %108 = vector.load %arg14[%c2_42, %c0_43] : memref<32x128xf32, #tpu.memory_space<vmem>>, vector<1x128xf32>
    %109 = arith.addf %95, %107 : vector<32x128xf32>
    %110 = vector.broadcast %108 : vector<1x128xf32> to vector<32x128xf32>
    %111 = arith.mulf %107, %110 : vector<32x128xf32>
    %112 = arith.addf %98, %111 : vector<32x128xf32>
    %c3_44 = arith.constant 3 : index
    %c0_45 = arith.constant 0 : index
    %113 = vector.load %arg2[%c3_44, %c0_45] : memref<32x128xf32, #tpu.memory_space<vmem>>, vector<1x128xf32>
    %114 = vector.broadcast %1 : f32 to vector<1x128xf32>
    %115 = arith.mulf %114, %113 : vector<1x128xf32>
    %116 = vector.broadcast %4 : f32 to vector<1x128xf32>
    %117 = arith.addf %115, %116 : vector<1x128xf32>
    %118 = vector.broadcast %117 : vector<1x128xf32> to vector<32x128xf32>
    %119 = arith.mulf %44, %118 : vector<32x128xf32>
    %120 = arith.subf %119, %68 : vector<32x128xf32>
    %121 = math.exp %120 : vector<32x128xf32>
    %c3_46 = arith.constant 3 : index
    %c0_47 = arith.constant 0 : index
    %122 = vector.load %arg14[%c3_46, %c0_47] : memref<32x128xf32, #tpu.memory_space<vmem>>, vector<1x128xf32>
    %123 = arith.addf %109, %121 : vector<32x128xf32>
    %124 = vector.broadcast %122 : vector<1x128xf32> to vector<32x128xf32>
    %125 = arith.mulf %121, %124 : vector<32x128xf32>
    %126 = arith.addf %112, %125 : vector<32x128xf32>
    %c4_48 = arith.constant 4 : index
    %c0_49 = arith.constant 0 : index
    %127 = vector.load %arg2[%c4_48, %c0_49] : memref<32x128xf32, #tpu.memory_space<vmem>>, vector<1x128xf32>
    %128 = vector.broadcast %1 : f32 to vector<1x128xf32>
    %129 = arith.mulf %128, %127 : vector<1x128xf32>
    %130 = vector.broadcast %4 : f32 to vector<1x128xf32>
    %131 = arith.addf %129, %130 : vector<1x128xf32>
    %132 = vector.broadcast %131 : vector<1x128xf32> to vector<32x128xf32>
    %133 = arith.mulf %44, %132 : vector<32x128xf32>
    %134 = arith.subf %133, %68 : vector<32x128xf32>
    %135 = math.exp %134 : vector<32x128xf32>
    %c4_50 = arith.constant 4 : index
    %c0_51 = arith.constant 0 : index
    %136 = vector.load %arg14[%c4_50, %c0_51] : memref<32x128xf32, #tpu.memory_space<vmem>>, vector<1x128xf32>
    %137 = arith.addf %123, %135 : vector<32x128xf32>
    %138 = vector.broadcast %136 : vector<1x128xf32> to vector<32x128xf32>
    %139 = arith.mulf %135, %138 : vector<32x128xf32>
    %140 = arith.addf %126, %139 : vector<32x128xf32>
    %c5_52 = arith.constant 5 : index
    %c0_53 = arith.constant 0 : index
    %141 = vector.load %arg2[%c5_52, %c0_53] : memref<32x128xf32, #tpu.memory_space<vmem>>, vector<1x128xf32>
    %142 = vector.broadcast %1 : f32 to vector<1x128xf32>
    %143 = arith.mulf %142, %141 : vector<1x128xf32>
    %144 = vector.broadcast %4 : f32 to vector<1x128xf32>
    %145 = arith.addf %143, %144 : vector<1x128xf32>
    %146 = vector.broadcast %145 : vector<1x128xf32> to vector<32x128xf32>
    %147 = arith.mulf %44, %146 : vector<32x128xf32>
    %148 = arith.subf %147, %68 : vector<32x128xf32>
    %149 = math.exp %148 : vector<32x128xf32>
    %c5_54 = arith.constant 5 : index
    %c0_55 = arith.constant 0 : index
    %150 = vector.load %arg14[%c5_54, %c0_55] : memref<32x128xf32, #tpu.memory_space<vmem>>, vector<1x128xf32>
    %151 = arith.addf %137, %149 : vector<32x128xf32>
    %152 = vector.broadcast %150 : vector<1x128xf32> to vector<32x128xf32>
    %153 = arith.mulf %149, %152 : vector<32x128xf32>
    %154 = arith.addf %140, %153 : vector<32x128xf32>
    %c6_56 = arith.constant 6 : index
    %c0_57 = arith.constant 0 : index
    %155 = vector.load %arg2[%c6_56, %c0_57] : memref<32x128xf32, #tpu.memory_space<vmem>>, vector<1x128xf32>
    %156 = vector.broadcast %1 : f32 to vector<1x128xf32>
    %157 = arith.mulf %156, %155 : vector<1x128xf32>
    %158 = vector.broadcast %4 : f32 to vector<1x128xf32>
    %159 = arith.addf %157, %158 : vector<1x128xf32>
    %160 = vector.broadcast %159 : vector<1x128xf32> to vector<32x128xf32>
    %161 = arith.mulf %44, %160 : vector<32x128xf32>
    %162 = arith.subf %161, %68 : vector<32x128xf32>
    %163 = math.exp %162 : vector<32x128xf32>
    %c6_58 = arith.constant 6 : index
    %c0_59 = arith.constant 0 : index
    %164 = vector.load %arg14[%c6_58, %c0_59] : memref<32x128xf32, #tpu.memory_space<vmem>>, vector<1x128xf32>
    %165 = arith.addf %151, %163 : vector<32x128xf32>
    %166 = vector.broadcast %164 : vector<1x128xf32> to vector<32x128xf32>
    %167 = arith.mulf %163, %166 : vector<32x128xf32>
    %168 = arith.addf %154, %167 : vector<32x128xf32>
    %c7_60 = arith.constant 7 : index
    %c0_61 = arith.constant 0 : index
    %169 = vector.load %arg2[%c7_60, %c0_61] : memref<32x128xf32, #tpu.memory_space<vmem>>, vector<1x128xf32>
    %170 = vector.broadcast %1 : f32 to vector<1x128xf32>
    %171 = arith.mulf %170, %169 : vector<1x128xf32>
    %172 = vector.broadcast %4 : f32 to vector<1x128xf32>
    %173 = arith.addf %171, %172 : vector<1x128xf32>
    %174 = vector.broadcast %173 : vector<1x128xf32> to vector<32x128xf32>
    %175 = arith.mulf %44, %174 : vector<32x128xf32>
    %176 = arith.subf %175, %68 : vector<32x128xf32>
    %177 = math.exp %176 : vector<32x128xf32>
    %c7_62 = arith.constant 7 : index
    %c0_63 = arith.constant 0 : index
    %178 = vector.load %arg14[%c7_62, %c0_63] : memref<32x128xf32, #tpu.memory_space<vmem>>, vector<1x128xf32>
    %179 = arith.addf %165, %177 : vector<32x128xf32>
    %180 = vector.broadcast %178 : vector<1x128xf32> to vector<32x128xf32>
    %181 = arith.mulf %177, %180 : vector<32x128xf32>
    %182 = arith.addf %168, %181 : vector<32x128xf32>
    %c8 = arith.constant 8 : index
    %c0_64 = arith.constant 0 : index
    %183 = vector.load %arg2[%c8, %c0_64] : memref<32x128xf32, #tpu.memory_space<vmem>>, vector<1x128xf32>
    %184 = vector.broadcast %1 : f32 to vector<1x128xf32>
    %185 = arith.mulf %184, %183 : vector<1x128xf32>
    %186 = vector.broadcast %4 : f32 to vector<1x128xf32>
    %187 = arith.addf %185, %186 : vector<1x128xf32>
    %188 = vector.broadcast %187 : vector<1x128xf32> to vector<32x128xf32>
    %189 = arith.mulf %44, %188 : vector<32x128xf32>
    %190 = arith.subf %189, %68 : vector<32x128xf32>
    %191 = math.exp %190 : vector<32x128xf32>
    %c8_65 = arith.constant 8 : index
    %c0_66 = arith.constant 0 : index
    %192 = vector.load %arg14[%c8_65, %c0_66] : memref<32x128xf32, #tpu.memory_space<vmem>>, vector<1x128xf32>
    %193 = arith.addf %179, %191 : vector<32x128xf32>
    %194 = vector.broadcast %192 : vector<1x128xf32> to vector<32x128xf32>
    %195 = arith.mulf %191, %194 : vector<32x128xf32>
    %196 = arith.addf %182, %195 : vector<32x128xf32>
    %c9 = arith.constant 9 : index
    %c0_67 = arith.constant 0 : index
    %197 = vector.load %arg2[%c9, %c0_67] : memref<32x128xf32, #tpu.memory_space<vmem>>, vector<1x128xf32>
    %198 = vector.broadcast %1 : f32 to vector<1x128xf32>
    %199 = arith.mulf %198, %197 : vector<1x128xf32>
    %200 = vector.broadcast %4 : f32 to vector<1x128xf32>
    %201 = arith.addf %199, %200 : vector<1x128xf32>
    %202 = vector.broadcast %201 : vector<1x128xf32> to vector<32x128xf32>
    %203 = arith.mulf %44, %202 : vector<32x128xf32>
    %204 = arith.subf %203, %68 : vector<32x128xf32>
    %205 = math.exp %204 : vector<32x128xf32>
    %c9_68 = arith.constant 9 : index
    %c0_69 = arith.constant 0 : index
    %206 = vector.load %arg14[%c9_68, %c0_69] : memref<32x128xf32, #tpu.memory_space<vmem>>, vector<1x128xf32>
    %207 = arith.addf %193, %205 : vector<32x128xf32>
    %208 = vector.broadcast %206 : vector<1x128xf32> to vector<32x128xf32>
    %209 = arith.mulf %205, %208 : vector<32x128xf32>
    %210 = arith.addf %196, %209 : vector<32x128xf32>
    %c10 = arith.constant 10 : index
    %c0_70 = arith.constant 0 : index
    %211 = vector.load %arg2[%c10, %c0_70] : memref<32x128xf32, #tpu.memory_space<vmem>>, vector<1x128xf32>
    %212 = vector.broadcast %1 : f32 to vector<1x128xf32>
    %213 = arith.mulf %212, %211 : vector<1x128xf32>
    %214 = vector.broadcast %4 : f32 to vector<1x128xf32>
    %215 = arith.addf %213, %214 : vector<1x128xf32>
    %216 = vector.broadcast %215 : vector<1x128xf32> to vector<32x128xf32>
    %217 = arith.mulf %44, %216 : vector<32x128xf32>
    %218 = arith.subf %217, %68 : vector<32x128xf32>
    %219 = math.exp %218 : vector<32x128xf32>
    %c10_71 = arith.constant 10 : index
    %c0_72 = arith.constant 0 : index
    %220 = vector.load %arg14[%c10_71, %c0_72] : memref<32x128xf32, #tpu.memory_space<vmem>>, vector<1x128xf32>
    %221 = arith.addf %207, %219 : vector<32x128xf32>
    %222 = vector.broadcast %220 : vector<1x128xf32> to vector<32x128xf32>
    %223 = arith.mulf %219, %222 : vector<32x128xf32>
    %224 = arith.addf %210, %223 : vector<32x128xf32>
    %c11 = arith.constant 11 : index
    %c0_73 = arith.constant 0 : index
    %225 = vector.load %arg2[%c11, %c0_73] : memref<32x128xf32, #tpu.memory_space<vmem>>, vector<1x128xf32>
    %226 = vector.broadcast %1 : f32 to vector<1x128xf32>
    %227 = arith.mulf %226, %225 : vector<1x128xf32>
    %228 = vector.broadcast %4 : f32 to vector<1x128xf32>
    %229 = arith.addf %227, %228 : vector<1x128xf32>
    %230 = vector.broadcast %229 : vector<1x128xf32> to vector<32x128xf32>
    %231 = arith.mulf %44, %230 : vector<32x128xf32>
    %232 = arith.subf %231, %68 : vector<32x128xf32>
    %233 = math.exp %232 : vector<32x128xf32>
    %c11_74 = arith.constant 11 : index
    %c0_75 = arith.constant 0 : index
    %234 = vector.load %arg14[%c11_74, %c0_75] : memref<32x128xf32, #tpu.memory_space<vmem>>, vector<1x128xf32>
    %235 = arith.addf %221, %233 : vector<32x128xf32>
    %236 = vector.broadcast %234 : vector<1x128xf32> to vector<32x128xf32>
    %237 = arith.mulf %233, %236 : vector<32x128xf32>
    %238 = arith.addf %224, %237 : vector<32x128xf32>
    %c12 = arith.constant 12 : index
    %c0_76 = arith.constant 0 : index
    %239 = vector.load %arg2[%c12, %c0_76] : memref<32x128xf32, #tpu.memory_space<vmem>>, vector<1x128xf32>
    %240 = vector.broadcast %1 : f32 to vector<1x128xf32>
    %241 = arith.mulf %240, %239 : vector<1x128xf32>
    %242 = vector.broadcast %4 : f32 to vector<1x128xf32>
    %243 = arith.addf %241, %242 : vector<1x128xf32>
    %244 = vector.broadcast %243 : vector<1x128xf32> to vector<32x128xf32>
    %245 = arith.mulf %44, %244 : vector<32x128xf32>
    %246 = arith.subf %245, %68 : vector<32x128xf32>
    %247 = math.exp %246 : vector<32x128xf32>
    %c12_77 = arith.constant 12 : index
    %c0_78 = arith.constant 0 : index
    %248 = vector.load %arg14[%c12_77, %c0_78] : memref<32x128xf32, #tpu.memory_space<vmem>>, vector<1x128xf32>
    %249 = arith.addf %235, %247 : vector<32x128xf32>
    %250 = vector.broadcast %248 : vector<1x128xf32> to vector<32x128xf32>
    %251 = arith.mulf %247, %250 : vector<32x128xf32>
    %252 = arith.addf %238, %251 : vector<32x128xf32>
    %c13 = arith.constant 13 : index
    %c0_79 = arith.constant 0 : index
    %253 = vector.load %arg2[%c13, %c0_79] : memref<32x128xf32, #tpu.memory_space<vmem>>, vector<1x128xf32>
    %254 = vector.broadcast %1 : f32 to vector<1x128xf32>
    %255 = arith.mulf %254, %253 : vector<1x128xf32>
    %256 = vector.broadcast %4 : f32 to vector<1x128xf32>
    %257 = arith.addf %255, %256 : vector<1x128xf32>
    %258 = vector.broadcast %257 : vector<1x128xf32> to vector<32x128xf32>
    %259 = arith.mulf %44, %258 : vector<32x128xf32>
    %260 = arith.subf %259, %68 : vector<32x128xf32>
    %261 = math.exp %260 : vector<32x128xf32>
    %c13_80 = arith.constant 13 : index
    %c0_81 = arith.constant 0 : index
    %262 = vector.load %arg14[%c13_80, %c0_81] : memref<32x128xf32, #tpu.memory_space<vmem>>, vector<1x128xf32>
    %263 = arith.addf %249, %261 : vector<32x128xf32>
    %264 = vector.broadcast %262 : vector<1x128xf32> to vector<32x128xf32>
    %265 = arith.mulf %261, %264 : vector<32x128xf32>
    %266 = arith.addf %252, %265 : vector<32x128xf32>
    %c14 = arith.constant 14 : index
    %c0_82 = arith.constant 0 : index
    %267 = vector.load %arg2[%c14, %c0_82] : memref<32x128xf32, #tpu.memory_space<vmem>>, vector<1x128xf32>
    %268 = vector.broadcast %1 : f32 to vector<1x128xf32>
    %269 = arith.mulf %268, %267 : vector<1x128xf32>
    %270 = vector.broadcast %4 : f32 to vector<1x128xf32>
    %271 = arith.addf %269, %270 : vector<1x128xf32>
    %272 = vector.broadcast %271 : vector<1x128xf32> to vector<32x128xf32>
    %273 = arith.mulf %44, %272 : vector<32x128xf32>
    %274 = arith.subf %273, %68 : vector<32x128xf32>
    %275 = math.exp %274 : vector<32x128xf32>
    %c14_83 = arith.constant 14 : index
    %c0_84 = arith.constant 0 : index
    %276 = vector.load %arg14[%c14_83, %c0_84] : memref<32x128xf32, #tpu.memory_space<vmem>>, vector<1x128xf32>
    %277 = arith.addf %263, %275 : vector<32x128xf32>
    %278 = vector.broadcast %276 : vector<1x128xf32> to vector<32x128xf32>
    %279 = arith.mulf %275, %278 : vector<32x128xf32>
    %280 = arith.addf %266, %279 : vector<32x128xf32>
    %c15 = arith.constant 15 : index
    %c0_85 = arith.constant 0 : index
    %281 = vector.load %arg2[%c15, %c0_85] : memref<32x128xf32, #tpu.memory_space<vmem>>, vector<1x128xf32>
    %282 = vector.broadcast %1 : f32 to vector<1x128xf32>
    %283 = arith.mulf %282, %281 : vector<1x128xf32>
    %284 = vector.broadcast %4 : f32 to vector<1x128xf32>
    %285 = arith.addf %283, %284 : vector<1x128xf32>
    %286 = vector.broadcast %285 : vector<1x128xf32> to vector<32x128xf32>
    %287 = arith.mulf %44, %286 : vector<32x128xf32>
    %288 = arith.subf %287, %68 : vector<32x128xf32>
    %289 = math.exp %288 : vector<32x128xf32>
    %c15_86 = arith.constant 15 : index
    %c0_87 = arith.constant 0 : index
    %290 = vector.load %arg14[%c15_86, %c0_87] : memref<32x128xf32, #tpu.memory_space<vmem>>, vector<1x128xf32>
    %291 = arith.addf %277, %289 : vector<32x128xf32>
    %292 = vector.broadcast %290 : vector<1x128xf32> to vector<32x128xf32>
    %293 = arith.mulf %289, %292 : vector<32x128xf32>
    %294 = arith.addf %280, %293 : vector<32x128xf32>
    %c16 = arith.constant 16 : index
    %c0_88 = arith.constant 0 : index
    %295 = vector.load %arg2[%c16, %c0_88] : memref<32x128xf32, #tpu.memory_space<vmem>>, vector<1x128xf32>
    %296 = vector.broadcast %1 : f32 to vector<1x128xf32>
    %297 = arith.mulf %296, %295 : vector<1x128xf32>
    %298 = vector.broadcast %4 : f32 to vector<1x128xf32>
    %299 = arith.addf %297, %298 : vector<1x128xf32>
    %300 = vector.broadcast %299 : vector<1x128xf32> to vector<32x128xf32>
    %301 = arith.mulf %44, %300 : vector<32x128xf32>
    %302 = arith.subf %301, %68 : vector<32x128xf32>
    %303 = math.exp %302 : vector<32x128xf32>
    %c16_89 = arith.constant 16 : index
    %c0_90 = arith.constant 0 : index
    %304 = vector.load %arg14[%c16_89, %c0_90] : memref<32x128xf32, #tpu.memory_space<vmem>>, vector<1x128xf32>
    %305 = arith.addf %291, %303 : vector<32x128xf32>
    %306 = vector.broadcast %304 : vector<1x128xf32> to vector<32x128xf32>
    %307 = arith.mulf %303, %306 : vector<32x128xf32>
    %308 = arith.addf %294, %307 : vector<32x128xf32>
    %c17 = arith.constant 17 : index
    %c0_91 = arith.constant 0 : index
    %309 = vector.load %arg2[%c17, %c0_91] : memref<32x128xf32, #tpu.memory_space<vmem>>, vector<1x128xf32>
    %310 = vector.broadcast %1 : f32 to vector<1x128xf32>
    %311 = arith.mulf %310, %309 : vector<1x128xf32>
    %312 = vector.broadcast %4 : f32 to vector<1x128xf32>
    %313 = arith.addf %311, %312 : vector<1x128xf32>
    %314 = vector.broadcast %313 : vector<1x128xf32> to vector<32x128xf32>
    %315 = arith.mulf %44, %314 : vector<32x128xf32>
    %316 = arith.subf %315, %68 : vector<32x128xf32>
    %317 = math.exp %316 : vector<32x128xf32>
    %c17_92 = arith.constant 17 : index
    %c0_93 = arith.constant 0 : index
    %318 = vector.load %arg14[%c17_92, %c0_93] : memref<32x128xf32, #tpu.memory_space<vmem>>, vector<1x128xf32>
    %319 = arith.addf %305, %317 : vector<32x128xf32>
    %320 = vector.broadcast %318 : vector<1x128xf32> to vector<32x128xf32>
    %321 = arith.mulf %317, %320 : vector<32x128xf32>
    %322 = arith.addf %308, %321 : vector<32x128xf32>
    %c18 = arith.constant 18 : index
    %c0_94 = arith.constant 0 : index
    %323 = vector.load %arg2[%c18, %c0_94] : memref<32x128xf32, #tpu.memory_space<vmem>>, vector<1x128xf32>
    %324 = vector.broadcast %1 : f32 to vector<1x128xf32>
    %325 = arith.mulf %324, %323 : vector<1x128xf32>
    %326 = vector.broadcast %4 : f32 to vector<1x128xf32>
    %327 = arith.addf %325, %326 : vector<1x128xf32>
    %328 = vector.broadcast %327 : vector<1x128xf32> to vector<32x128xf32>
    %329 = arith.mulf %44, %328 : vector<32x128xf32>
    %330 = arith.subf %329, %68 : vector<32x128xf32>
    %331 = math.exp %330 : vector<32x128xf32>
    %c18_95 = arith.constant 18 : index
    %c0_96 = arith.constant 0 : index
    %332 = vector.load %arg14[%c18_95, %c0_96] : memref<32x128xf32, #tpu.memory_space<vmem>>, vector<1x128xf32>
    %333 = arith.addf %319, %331 : vector<32x128xf32>
    %334 = vector.broadcast %332 : vector<1x128xf32> to vector<32x128xf32>
    %335 = arith.mulf %331, %334 : vector<32x128xf32>
    %336 = arith.addf %322, %335 : vector<32x128xf32>
    %c19 = arith.constant 19 : index
    %c0_97 = arith.constant 0 : index
    %337 = vector.load %arg2[%c19, %c0_97] : memref<32x128xf32, #tpu.memory_space<vmem>>, vector<1x128xf32>
    %338 = vector.broadcast %1 : f32 to vector<1x128xf32>
    %339 = arith.mulf %338, %337 : vector<1x128xf32>
    %340 = vector.broadcast %4 : f32 to vector<1x128xf32>
    %341 = arith.addf %339, %340 : vector<1x128xf32>
    %342 = vector.broadcast %341 : vector<1x128xf32> to vector<32x128xf32>
    %343 = arith.mulf %44, %342 : vector<32x128xf32>
    %344 = arith.subf %343, %68 : vector<32x128xf32>
    %345 = math.exp %344 : vector<32x128xf32>
    %c19_98 = arith.constant 19 : index
    %c0_99 = arith.constant 0 : index
    %346 = vector.load %arg14[%c19_98, %c0_99] : memref<32x128xf32, #tpu.memory_space<vmem>>, vector<1x128xf32>
    %347 = arith.addf %333, %345 : vector<32x128xf32>
    %348 = vector.broadcast %346 : vector<1x128xf32> to vector<32x128xf32>
    %349 = arith.mulf %345, %348 : vector<32x128xf32>
    %350 = arith.addf %336, %349 : vector<32x128xf32>
    %c20 = arith.constant 20 : index
    %c0_100 = arith.constant 0 : index
    %351 = vector.load %arg2[%c20, %c0_100] : memref<32x128xf32, #tpu.memory_space<vmem>>, vector<1x128xf32>
    %352 = vector.broadcast %1 : f32 to vector<1x128xf32>
    %353 = arith.mulf %352, %351 : vector<1x128xf32>
    %354 = vector.broadcast %4 : f32 to vector<1x128xf32>
    %355 = arith.addf %353, %354 : vector<1x128xf32>
    %356 = vector.broadcast %355 : vector<1x128xf32> to vector<32x128xf32>
    %357 = arith.mulf %44, %356 : vector<32x128xf32>
    %358 = arith.subf %357, %68 : vector<32x128xf32>
    %359 = math.exp %358 : vector<32x128xf32>
    %c20_101 = arith.constant 20 : index
    %c0_102 = arith.constant 0 : index
    %360 = vector.load %arg14[%c20_101, %c0_102] : memref<32x128xf32, #tpu.memory_space<vmem>>, vector<1x128xf32>
    %361 = arith.addf %347, %359 : vector<32x128xf32>
    %362 = vector.broadcast %360 : vector<1x128xf32> to vector<32x128xf32>
    %363 = arith.mulf %359, %362 : vector<32x128xf32>
    %364 = arith.addf %350, %363 : vector<32x128xf32>
    %c21 = arith.constant 21 : index
    %c0_103 = arith.constant 0 : index
    %365 = vector.load %arg2[%c21, %c0_103] : memref<32x128xf32, #tpu.memory_space<vmem>>, vector<1x128xf32>
    %366 = vector.broadcast %1 : f32 to vector<1x128xf32>
    %367 = arith.mulf %366, %365 : vector<1x128xf32>
    %368 = vector.broadcast %4 : f32 to vector<1x128xf32>
    %369 = arith.addf %367, %368 : vector<1x128xf32>
    %370 = vector.broadcast %369 : vector<1x128xf32> to vector<32x128xf32>
    %371 = arith.mulf %44, %370 : vector<32x128xf32>
    %372 = arith.subf %371, %68 : vector<32x128xf32>
    %373 = math.exp %372 : vector<32x128xf32>
    %c21_104 = arith.constant 21 : index
    %c0_105 = arith.constant 0 : index
    %374 = vector.load %arg14[%c21_104, %c0_105] : memref<32x128xf32, #tpu.memory_space<vmem>>, vector<1x128xf32>
    %375 = arith.addf %361, %373 : vector<32x128xf32>
    %376 = vector.broadcast %374 : vector<1x128xf32> to vector<32x128xf32>
    %377 = arith.mulf %373, %376 : vector<32x128xf32>
    %378 = arith.addf %364, %377 : vector<32x128xf32>
    %c22 = arith.constant 22 : index
    %c0_106 = arith.constant 0 : index
    %379 = vector.load %arg2[%c22, %c0_106] : memref<32x128xf32, #tpu.memory_space<vmem>>, vector<1x128xf32>
    %380 = vector.broadcast %1 : f32 to vector<1x128xf32>
    %381 = arith.mulf %380, %379 : vector<1x128xf32>
    %382 = vector.broadcast %4 : f32 to vector<1x128xf32>
    %383 = arith.addf %381, %382 : vector<1x128xf32>
    %384 = vector.broadcast %383 : vector<1x128xf32> to vector<32x128xf32>
    %385 = arith.mulf %44, %384 : vector<32x128xf32>
    %386 = arith.subf %385, %68 : vector<32x128xf32>
    %387 = math.exp %386 : vector<32x128xf32>
    %c22_107 = arith.constant 22 : index
    %c0_108 = arith.constant 0 : index
    %388 = vector.load %arg14[%c22_107, %c0_108] : memref<32x128xf32, #tpu.memory_space<vmem>>, vector<1x128xf32>
    %389 = arith.addf %375, %387 : vector<32x128xf32>
    %390 = vector.broadcast %388 : vector<1x128xf32> to vector<32x128xf32>
    %391 = arith.mulf %387, %390 : vector<32x128xf32>
    %392 = arith.addf %378, %391 : vector<32x128xf32>
    %c23 = arith.constant 23 : index
    %c0_109 = arith.constant 0 : index
    %393 = vector.load %arg2[%c23, %c0_109] : memref<32x128xf32, #tpu.memory_space<vmem>>, vector<1x128xf32>
    %394 = vector.broadcast %1 : f32 to vector<1x128xf32>
    %395 = arith.mulf %394, %393 : vector<1x128xf32>
    %396 = vector.broadcast %4 : f32 to vector<1x128xf32>
    %397 = arith.addf %395, %396 : vector<1x128xf32>
    %398 = vector.broadcast %397 : vector<1x128xf32> to vector<32x128xf32>
    %399 = arith.mulf %44, %398 : vector<32x128xf32>
    %400 = arith.subf %399, %68 : vector<32x128xf32>
    %401 = math.exp %400 : vector<32x128xf32>
    %c23_110 = arith.constant 23 : index
    %c0_111 = arith.constant 0 : index
    %402 = vector.load %arg14[%c23_110, %c0_111] : memref<32x128xf32, #tpu.memory_space<vmem>>, vector<1x128xf32>
    %403 = arith.addf %389, %401 : vector<32x128xf32>
    %404 = vector.broadcast %402 : vector<1x128xf32> to vector<32x128xf32>
    %405 = arith.mulf %401, %404 : vector<32x128xf32>
    %406 = arith.addf %392, %405 : vector<32x128xf32>
    %c24 = arith.constant 24 : index
    %c0_112 = arith.constant 0 : index
    %407 = vector.load %arg2[%c24, %c0_112] : memref<32x128xf32, #tpu.memory_space<vmem>>, vector<1x128xf32>
    %408 = vector.broadcast %1 : f32 to vector<1x128xf32>
    %409 = arith.mulf %408, %407 : vector<1x128xf32>
    %410 = vector.broadcast %4 : f32 to vector<1x128xf32>
    %411 = arith.addf %409, %410 : vector<1x128xf32>
    %412 = vector.broadcast %411 : vector<1x128xf32> to vector<32x128xf32>
    %413 = arith.mulf %44, %412 : vector<32x128xf32>
    %414 = arith.subf %413, %68 : vector<32x128xf32>
    %415 = math.exp %414 : vector<32x128xf32>
    %c24_113 = arith.constant 24 : index
    %c0_114 = arith.constant 0 : index
    %416 = vector.load %arg14[%c24_113, %c0_114] : memref<32x128xf32, #tpu.memory_space<vmem>>, vector<1x128xf32>
    %417 = arith.addf %403, %415 : vector<32x128xf32>
    %418 = vector.broadcast %416 : vector<1x128xf32> to vector<32x128xf32>
    %419 = arith.mulf %415, %418 : vector<32x128xf32>
    %420 = arith.addf %406, %419 : vector<32x128xf32>
    %c25 = arith.constant 25 : index
    %c0_115 = arith.constant 0 : index
    %421 = vector.load %arg2[%c25, %c0_115] : memref<32x128xf32, #tpu.memory_space<vmem>>, vector<1x128xf32>
    %422 = vector.broadcast %1 : f32 to vector<1x128xf32>
    %423 = arith.mulf %422, %421 : vector<1x128xf32>
    %424 = vector.broadcast %4 : f32 to vector<1x128xf32>
    %425 = arith.addf %423, %424 : vector<1x128xf32>
    %426 = vector.broadcast %425 : vector<1x128xf32> to vector<32x128xf32>
    %427 = arith.mulf %44, %426 : vector<32x128xf32>
    %428 = arith.subf %427, %68 : vector<32x128xf32>
    %429 = math.exp %428 : vector<32x128xf32>
    %c25_116 = arith.constant 25 : index
    %c0_117 = arith.constant 0 : index
    %430 = vector.load %arg14[%c25_116, %c0_117] : memref<32x128xf32, #tpu.memory_space<vmem>>, vector<1x128xf32>
    %431 = arith.addf %417, %429 : vector<32x128xf32>
    %432 = vector.broadcast %430 : vector<1x128xf32> to vector<32x128xf32>
    %433 = arith.mulf %429, %432 : vector<32x128xf32>
    %434 = arith.addf %420, %433 : vector<32x128xf32>
    %c26 = arith.constant 26 : index
    %c0_118 = arith.constant 0 : index
    %435 = vector.load %arg2[%c26, %c0_118] : memref<32x128xf32, #tpu.memory_space<vmem>>, vector<1x128xf32>
    %436 = vector.broadcast %1 : f32 to vector<1x128xf32>
    %437 = arith.mulf %436, %435 : vector<1x128xf32>
    %438 = vector.broadcast %4 : f32 to vector<1x128xf32>
    %439 = arith.addf %437, %438 : vector<1x128xf32>
    %440 = vector.broadcast %439 : vector<1x128xf32> to vector<32x128xf32>
    %441 = arith.mulf %44, %440 : vector<32x128xf32>
    %442 = arith.subf %441, %68 : vector<32x128xf32>
    %443 = math.exp %442 : vector<32x128xf32>
    %c26_119 = arith.constant 26 : index
    %c0_120 = arith.constant 0 : index
    %444 = vector.load %arg14[%c26_119, %c0_120] : memref<32x128xf32, #tpu.memory_space<vmem>>, vector<1x128xf32>
    %445 = arith.addf %431, %443 : vector<32x128xf32>
    %446 = vector.broadcast %444 : vector<1x128xf32> to vector<32x128xf32>
    %447 = arith.mulf %443, %446 : vector<32x128xf32>
    %448 = arith.addf %434, %447 : vector<32x128xf32>
    %c27 = arith.constant 27 : index
    %c0_121 = arith.constant 0 : index
    %449 = vector.load %arg2[%c27, %c0_121] : memref<32x128xf32, #tpu.memory_space<vmem>>, vector<1x128xf32>
    %450 = vector.broadcast %1 : f32 to vector<1x128xf32>
    %451 = arith.mulf %450, %449 : vector<1x128xf32>
    %452 = vector.broadcast %4 : f32 to vector<1x128xf32>
    %453 = arith.addf %451, %452 : vector<1x128xf32>
    %454 = vector.broadcast %453 : vector<1x128xf32> to vector<32x128xf32>
    %455 = arith.mulf %44, %454 : vector<32x128xf32>
    %456 = arith.subf %455, %68 : vector<32x128xf32>
    %457 = math.exp %456 : vector<32x128xf32>
    %c27_122 = arith.constant 27 : index
    %c0_123 = arith.constant 0 : index
    %458 = vector.load %arg14[%c27_122, %c0_123] : memref<32x128xf32, #tpu.memory_space<vmem>>, vector<1x128xf32>
    %459 = arith.addf %445, %457 : vector<32x128xf32>
    %460 = vector.broadcast %458 : vector<1x128xf32> to vector<32x128xf32>
    %461 = arith.mulf %457, %460 : vector<32x128xf32>
    %462 = arith.addf %448, %461 : vector<32x128xf32>
    %c28 = arith.constant 28 : index
    %c0_124 = arith.constant 0 : index
    %463 = vector.load %arg2[%c28, %c0_124] : memref<32x128xf32, #tpu.memory_space<vmem>>, vector<1x128xf32>
    %464 = vector.broadcast %1 : f32 to vector<1x128xf32>
    %465 = arith.mulf %464, %463 : vector<1x128xf32>
    %466 = vector.broadcast %4 : f32 to vector<1x128xf32>
    %467 = arith.addf %465, %466 : vector<1x128xf32>
    %468 = vector.broadcast %467 : vector<1x128xf32> to vector<32x128xf32>
    %469 = arith.mulf %44, %468 : vector<32x128xf32>
    %470 = arith.subf %469, %68 : vector<32x128xf32>
    %471 = math.exp %470 : vector<32x128xf32>
    %c28_125 = arith.constant 28 : index
    %c0_126 = arith.constant 0 : index
    %472 = vector.load %arg14[%c28_125, %c0_126] : memref<32x128xf32, #tpu.memory_space<vmem>>, vector<1x128xf32>
    %473 = arith.addf %459, %471 : vector<32x128xf32>
    %474 = vector.broadcast %472 : vector<1x128xf32> to vector<32x128xf32>
    %475 = arith.mulf %471, %474 : vector<32x128xf32>
    %476 = arith.addf %462, %475 : vector<32x128xf32>
    %c29 = arith.constant 29 : index
    %c0_127 = arith.constant 0 : index
    %477 = vector.load %arg2[%c29, %c0_127] : memref<32x128xf32, #tpu.memory_space<vmem>>, vector<1x128xf32>
    %478 = vector.broadcast %1 : f32 to vector<1x128xf32>
    %479 = arith.mulf %478, %477 : vector<1x128xf32>
    %480 = vector.broadcast %4 : f32 to vector<1x128xf32>
    %481 = arith.addf %479, %480 : vector<1x128xf32>
    %482 = vector.broadcast %481 : vector<1x128xf32> to vector<32x128xf32>
    %483 = arith.mulf %44, %482 : vector<32x128xf32>
    %484 = arith.subf %483, %68 : vector<32x128xf32>
    %485 = math.exp %484 : vector<32x128xf32>
    %c29_128 = arith.constant 29 : index
    %c0_129 = arith.constant 0 : index
    %486 = vector.load %arg14[%c29_128, %c0_129] : memref<32x128xf32, #tpu.memory_space<vmem>>, vector<1x128xf32>
    %487 = arith.addf %473, %485 : vector<32x128xf32>
    %488 = vector.broadcast %486 : vector<1x128xf32> to vector<32x128xf32>
    %489 = arith.mulf %485, %488 : vector<32x128xf32>
    %490 = arith.addf %476, %489 : vector<32x128xf32>
    %c30 = arith.constant 30 : index
    %c0_130 = arith.constant 0 : index
    %491 = vector.load %arg2[%c30, %c0_130] : memref<32x128xf32, #tpu.memory_space<vmem>>, vector<1x128xf32>
    %492 = vector.broadcast %1 : f32 to vector<1x128xf32>
    %493 = arith.mulf %492, %491 : vector<1x128xf32>
    %494 = vector.broadcast %4 : f32 to vector<1x128xf32>
    %495 = arith.addf %493, %494 : vector<1x128xf32>
    %496 = vector.broadcast %495 : vector<1x128xf32> to vector<32x128xf32>
    %497 = arith.mulf %44, %496 : vector<32x128xf32>
    %498 = arith.subf %497, %68 : vector<32x128xf32>
    %499 = math.exp %498 : vector<32x128xf32>
    %c30_131 = arith.constant 30 : index
    %c0_132 = arith.constant 0 : index
    %500 = vector.load %arg14[%c30_131, %c0_132] : memref<32x128xf32, #tpu.memory_space<vmem>>, vector<1x128xf32>
    %501 = arith.addf %487, %499 : vector<32x128xf32>
    %502 = vector.broadcast %500 : vector<1x128xf32> to vector<32x128xf32>
    %503 = arith.mulf %499, %502 : vector<32x128xf32>
    %504 = arith.addf %490, %503 : vector<32x128xf32>
    %c31 = arith.constant 31 : index
    %c0_133 = arith.constant 0 : index
    %505 = vector.load %arg2[%c31, %c0_133] : memref<32x128xf32, #tpu.memory_space<vmem>>, vector<1x128xf32>
    %506 = vector.broadcast %1 : f32 to vector<1x128xf32>
    %507 = arith.mulf %506, %505 : vector<1x128xf32>
    %508 = vector.broadcast %4 : f32 to vector<1x128xf32>
    %509 = arith.addf %507, %508 : vector<1x128xf32>
    %510 = vector.broadcast %509 : vector<1x128xf32> to vector<32x128xf32>
    %511 = arith.mulf %44, %510 : vector<32x128xf32>
    %512 = arith.subf %511, %68 : vector<32x128xf32>
    %513 = math.exp %512 : vector<32x128xf32>
    %c31_134 = arith.constant 31 : index
    %c0_135 = arith.constant 0 : index
    %514 = vector.load %arg14[%c31_134, %c0_135] : memref<32x128xf32, #tpu.memory_space<vmem>>, vector<1x128xf32>
    %515 = arith.addf %501, %513 : vector<32x128xf32>
    %516 = vector.broadcast %514 : vector<1x128xf32> to vector<32x128xf32>
    %517 = arith.mulf %513, %516 : vector<32x128xf32>
    %518 = arith.addf %504, %517 : vector<32x128xf32>
    %519 = vector.broadcast %2 : f32 to vector<32x128xf32>
    %520 = arith.mulf %519, %518 : vector<32x128xf32>
    %521 = tpu.reciprocal %515 : vector<32x128xf32> -> vector<32x128xf32>
    %522 = arith.mulf %520, %521 : vector<32x128xf32>
    %523 = vector.broadcast %5 : f32 to vector<32x128xf32>
    %524 = arith.addf %522, %523 : vector<32x128xf32>
    %525 = vector.broadcast %6 : f32 to vector<32x128xf32>
    %526 = arith.mulf %525, %524 : vector<32x128xf32>
    %527 = vector.broadcast %7 : f32 to vector<32x128xf32>
    %528 = arith.addf %526, %527 : vector<32x128xf32>
    %529 = arith.addf %528, %38 : vector<32x128xf32>
    %cst_136 = arith.constant dense<0.000000e+00> : vector<128xf32>
    %530 = vector.multi_reduction <add>, %529, %cst_136 [0] : vector<32x128xf32> to vector<128xf32>
    %531 = vector.shape_cast %530 : vector<128xf32> to vector<1x128xf32>
    %cst_137 = arith.constant 3.200000e+01 : f32
    %532 = vector.broadcast %cst_137 : f32 to vector<1x128xf32>
    %533 = arith.divf %531, %532 : vector<1x128xf32>
    %534 = vector.broadcast %533 : vector<1x128xf32> to vector<32x128xf32>
    %535 = arith.subf %529, %534 : vector<32x128xf32>
    %536 = arith.mulf %535, %535 : vector<32x128xf32>
    %cst_138 = arith.constant dense<0.000000e+00> : vector<128xf32>
    %537 = vector.multi_reduction <add>, %536, %cst_138 [0] : vector<32x128xf32> to vector<128xf32>
    %538 = vector.shape_cast %537 : vector<128xf32> to vector<1x128xf32>
    %cst_139 = arith.constant 3.200000e+01 : f32
    %539 = vector.broadcast %cst_139 : f32 to vector<1x128xf32>
    %540 = arith.divf %538, %539 : vector<1x128xf32>
    %541 = vector.broadcast %533 : vector<1x128xf32> to vector<32x128xf32>
    %542 = arith.subf %529, %541 : vector<32x128xf32>
    %cst_140 = arith.constant 9.99999974E-6 : f32
    %543 = vector.broadcast %cst_140 : f32 to vector<1x128xf32>
    %544 = arith.addf %540, %543 : vector<1x128xf32>
    %545 = math.rsqrt %544 : vector<1x128xf32>
    %546 = vector.broadcast %545 : vector<1x128xf32> to vector<32x128xf32>
    %547 = arith.mulf %542, %546 : vector<32x128xf32>
    %548 = vector.broadcast %10 : vector<32x1xf32> to vector<32x128xf32>
    %549 = arith.mulf %547, %548 : vector<32x128xf32>
    %550 = vector.broadcast %11 : vector<32x1xf32> to vector<32x128xf32>
    %551 = arith.addf %549, %550 : vector<32x128xf32>
    %cst_141 = arith.constant dense<0.000000e+00> : vector<128x128xf32>
    %552 = tpu.matmul %12, %551, %cst_141 {dimension_numbers = #tpu.dot_dimension_numbers<[1], [0], [0], [1], [0, 0, 1, 1], [], []>, precision = #tpu.contract_precision<fp32>} : vector<128x32xf32>, vector<32x128xf32>, vector<128x128xf32> -> vector<128x128xf32>
    %553 = vector.broadcast %13 : vector<128x1xf32> to vector<128x128xf32>
    %554 = arith.addf %552, %553 : vector<128x128xf32>
    %cst_142 = arith.constant 5.000000e-01 : f32
    %555 = vector.broadcast %cst_142 : f32 to vector<128x128xf32>
    %556 = arith.mulf %555, %554 : vector<128x128xf32>
    %cst_143 = arith.constant 2.000000e+00 : f32
    %557 = math.sqrt %cst_143 : f32
    %cst_144 = arith.constant 1.000000e+00 : f32
    %558 = arith.divf %cst_144, %557 : f32
    %559 = vector.broadcast %558 : f32 to vector<128x128xf32>
    %560 = arith.mulf %554, %559 : vector<128x128xf32>
    %561 = math.erf %560 : vector<128x128xf32>
    %cst_145 = arith.constant 1.000000e+00 : f32
    %562 = vector.broadcast %cst_145 : f32 to vector<128x128xf32>
    %563 = arith.addf %562, %561 : vector<128x128xf32>
    %564 = arith.mulf %556, %563 : vector<128x128xf32>
    %cst_146 = arith.constant dense<0.000000e+00> : vector<32x128xf32>
    %565 = tpu.matmul %14, %564, %cst_146 {dimension_numbers = #tpu.dot_dimension_numbers<[1], [0], [0], [1], [0, 0, 1, 1], [], []>, precision = #tpu.contract_precision<fp32>} : vector<32x128xf32>, vector<128x128xf32>, vector<32x128xf32> -> vector<32x128xf32>
    %566 = vector.broadcast %15 : vector<32x1xf32> to vector<32x128xf32>
    %567 = arith.addf %565, %566 : vector<32x128xf32>
    %568 = arith.addf %551, %567 : vector<32x128xf32>
    %c0_147 = arith.constant 0 : index
    %c0_148 = arith.constant 0 : index
    %569 = vector.load %arg13[%c0_147, %c0_148] : memref<32x128xf32, #tpu.memory_space<vmem>>, vector<32x128xf32>
    tpu.vector_store %arg13[%c0_147, %c0_148], %568 {strides = array<i32>} : memref<32x128xf32, #tpu.memory_space<vmem>>, vector<32x128xf32>,
    return
  }
  func.func @transform_0(%arg0: i32) -> (i32, i32) {
    %c0_i32 = arith.constant 0 : i32
    %c0_i32_0 = arith.constant 0 : i32
    return %c0_i32, %arg0 : i32, i32
  }
  func.func @transform_1(%arg0: i32) -> (i32, i32) {
    %c0_i32 = arith.constant 0 : i32
    %c0_i32_0 = arith.constant 0 : i32
    return %c0_i32, %arg0 : i32, i32
  }
  func.func @transform_2(%arg0: i32) -> (i32, i32) {
    %c0_i32 = arith.constant 0 : i32
    %c0_i32_0 = arith.constant 0 : i32
    return %c0_i32, %arg0 : i32, i32
  }
  func.func @transform_3(%arg0: i32) -> (i32, i32) {
    %c0_i32 = arith.constant 0 : i32
    %c0_i32_0 = arith.constant 0 : i32
    %c0_i32_1 = arith.constant 0 : i32
    return %c0_i32, %c0_i32_0 : i32, i32
  }
  func.func @transform_4(%arg0: i32) -> (i32, i32) {
    %c0_i32 = arith.constant 0 : i32
    %c0_i32_0 = arith.constant 0 : i32
    %c0_i32_1 = arith.constant 0 : i32
    return %c0_i32, %c0_i32_0 : i32, i32
  }
  func.func @transform_5(%arg0: i32) -> (i32, i32) {
    %c0_i32 = arith.constant 0 : i32
    %c0_i32_0 = arith.constant 0 : i32
    %c0_i32_1 = arith.constant 0 : i32
    return %c0_i32, %c0_i32_0 : i32, i32
  }
  func.func @transform_6(%arg0: i32) -> (i32, i32) {
    %c0_i32 = arith.constant 0 : i32
    %c0_i32_0 = arith.constant 0 : i32
    %c0_i32_1 = arith.constant 0 : i32
    return %c0_i32, %c0_i32_0 : i32, i32
  }
  func.func @transform_7(%arg0: i32) -> i32 {
    %c0_i32 = arith.constant 0 : i32
    %c0_i32_0 = arith.constant 0 : i32
    return %c0_i32 : i32
  }
  func.func @transform_8(%arg0: i32) -> (i32, i32) {
    %c0_i32 = arith.constant 0 : i32
    %c0_i32_0 = arith.constant 0 : i32
    %c0_i32_1 = arith.constant 0 : i32
    return %c0_i32, %c0_i32_0 : i32, i32
  }
  func.func @transform_9(%arg0: i32) -> (i32, i32) {
    %c0_i32 = arith.constant 0 : i32
    %c0_i32_0 = arith.constant 0 : i32
    %c0_i32_1 = arith.constant 0 : i32
    return %c0_i32, %c0_i32_0 : i32, i32
  }
  func.func @transform_10(%arg0: i32) -> (i32, i32) {
    %c0_i32 = arith.constant 0 : i32
    %c0_i32_0 = arith.constant 0 : i32
    %c0_i32_1 = arith.constant 0 : i32
    return %c0_i32, %c0_i32_0 : i32, i32
  }
  func.func @transform_11(%arg0: i32) -> (i32, i32) {
    %c0_i32 = arith.constant 0 : i32
    %c0_i32_0 = arith.constant 0 : i32
    %c0_i32_1 = arith.constant 0 : i32
    return %c0_i32, %c0_i32_0 : i32, i32
  }
  func.func @transform_12(%arg0: i32) -> (i32, i32) {
    %c0_i32 = arith.constant 0 : i32
    %c0_i32_0 = arith.constant 0 : i32
    return %c0_i32, %arg0 : i32, i32
  }
}

</mosaic_0001>

<llo_original>
// kernel: tpu_custom_call.1
$region0: #{tpu_custom_call.1}
  #allocation0 [shape = 'u32[]', space=smem, size = 0x4, offset = 0x4, fixed_abs, tag = 'smem constant byte address 0x4 - core index']
  #allocation1 [shape = 'u32[144,128]{1,0:T(1,128)}', space=vmem, size = 0x12000, scoped, tag = 'internal scratch']
  #allocation2 [shape = 'f32[32,128]{1,0:T(8,128)}', space=vmem, size = 0x4000, scoped, tag = 'scratch operand']
  %s0 = inlined_call_operand.vmem [shape: f32[32,128], index: 0, kind: input, shape index: {}]
  %s1 = inlined_call_operand.vmem [shape: f32[32,128], index: 1, kind: input, shape index: {}]
  %s2 = inlined_call_operand.vmem [shape: f32[32,128], index: 2, kind: input, shape index: {}]
  %s3 = inlined_call_operand.vmem [shape: f32[32,1], index: 3, kind: input, shape index: {}]
  %s4 = inlined_call_operand.vmem [shape: f32[32,1], index: 4, kind: input, shape index: {}]
  %s5 = inlined_call_operand.vmem [shape: f32[32,1], index: 5, kind: input, shape index: {}]
  %s6 = inlined_call_operand.vmem [shape: f32[32,1], index: 6, kind: input, shape index: {}]
  %s7 = inlined_call_operand.vmem [shape: f32[8], index: 7, kind: input, shape index: {}]
  %s8 = inlined_call_operand.vmem [shape: f32[128,32], index: 8, kind: input, shape index: {}]
  %s9 = inlined_call_operand.vmem [shape: f32[128,1], index: 9, kind: input, shape index: {}]
  %s10 = inlined_call_operand.vmem [shape: f32[32,128], index: 10, kind: input, shape index: {}]
  %s11 = inlined_call_operand.vmem [shape: f32[32,1], index: 11, kind: input, shape index: {}]
  %s12 = inlined_call_operand.hbm [shape: f32[32,128], index: 12, kind: output, shape index: {}]
  %s13 = sld [smem:[#allocation0]]
  $region62: #{tpu_custom_call.1} parent=0
    _
  %s15 = ssub.s32 1, %s13
  %s16 = scalar_select 0, %s15, %s13
  $region1: #{tpu_custom_call.1} parent=0
    #allocation3 [shape = 'u8[512]{0}', space=smem, size = 0x200, scoped, tag = 'input window, operand 7, single buffered']
    #allocation4 [shape = 's32[1]{0}', space=sflag, size = 0x4, scoped, tag = 'scoped memory for tpu_custom_call.1']
    #allocation5 [shape = 's32[1]{0}', space=sflag, size = 0x4, scoped, tag = 'scoped memory for tpu_custom_call.1']
    #allocation6 [shape = 'u8[16384]{0}', space=vmem, size = 0x4000, scoped, tag = 'output window, operand 0, single buffered']
    %17 = vsyncpa [#allocation5], 0
    %18 = vsyncpa [#allocation4], 0
    // Predicated region
    $region2: #{tpu_custom_call.1} parent=1 // pred_check
      _
    $region3: #{tpu_custom_call.1} parent=1 // pred_check_branch
      %20 = sbr.rel (0) target = $region5
    $region4: #{tpu_custom_call.1} parent=1 // pred_region
      _
    $region5: #{tpu_custom_call.1} parent=1 // pred_fallthru
      _
    // Predicated region
    $region6: #{tpu_custom_call.1} parent=1 // pred_check
      _
    $region7: #{tpu_custom_call.1} parent=1 // pred_check_branch
      %22 = sbr.rel (0) target = $region9
    $region8: #{tpu_custom_call.1} parent=1 // pred_region
      _
    $region9: #{tpu_custom_call.1} parent=1 // pred_fallthru
      _
    // Predicated region
    $region10: #{tpu_custom_call.1} parent=1 // pred_check
      _
    $region11: #{tpu_custom_call.1} parent=1 // pred_check_branch
      %24 = sbr.rel (0) target = $region13
    $region12: #{tpu_custom_call.1} parent=1 // pred_region
      _
    $region13: #{tpu_custom_call.1} parent=1 // pred_fallthru
      _
    // Predicated region
    $region14: #{tpu_custom_call.1} parent=1 // pred_check
      _
    $region15: #{tpu_custom_call.1} parent=1 // pred_check_branch
      %26 = sbr.rel (0) target = $region17
    $region16: #{tpu_custom_call.1} parent=1 // pred_region
      _
    $region17: #{tpu_custom_call.1} parent=1 // pred_fallthru
      _
    // Predicated region
    $region18: #{tpu_custom_call.1} parent=1 // pred_check
      _
    $region19: #{tpu_custom_call.1} parent=1 // pred_check_branch
      %28 = sbr.rel (0) target = $region21
    $region20: #{tpu_custom_call.1} parent=1 // pred_region
      _
    $region21: #{tpu_custom_call.1} parent=1 // pred_fallthru
      _
    // Predicated region
    $region22: #{tpu_custom_call.1} parent=1 // pred_check
      _
    $region23: #{tpu_custom_call.1} parent=1 // pred_check_branch
      %30 = sbr.rel (0) target = $region25
    $region24: #{tpu_custom_call.1} parent=1 // pred_region
      _
    $region25: #{tpu_custom_call.1} parent=1 // pred_fallthru
      _
    // Predicated region
    $region26: #{tpu_custom_call.1} parent=1 // pred_check
      _
    $region27: #{tpu_custom_call.1} parent=1 // pred_check_branch
      %32 = sbr.rel (0) target = $region29
    $region28: #{tpu_custom_call.1} parent=1 // pred_region
      _
    $region29: #{tpu_custom_call.1} parent=1 // pred_fallthru
      _
    // Predicated region
    $region30: #{tpu_custom_call.1} parent=1 // pred_check
      _
    $region31: #{tpu_custom_call.1} parent=1 // pred_check_branch
      %34 = sbr.rel (0) target = $region33
    $region32: #{tpu_custom_call.1} parent=1 // pred_region
      %s36 = ssub.s32 16, 16
      %37 = vsyncadd [#allocation5], %s36
      %s39 = sshll.u32 %s7, 4
      %s40 = int_to_ptr.vmem [resolvable:$true] %s39
      %42 = dma.vmem_to_smem %s40, 16, [#allocation3], [#allocation5]
    $region33: #{tpu_custom_call.1} parent=1 // pred_fallthru
      _
    // Predicated region
    $region34: #{tpu_custom_call.1} parent=1 // pred_check
      _
    $region35: #{tpu_custom_call.1} parent=1 // pred_check_branch
      %44 = sbr.rel (0) target = $region37
    $region36: #{tpu_custom_call.1} parent=1 // pred_region
      _
    $region37: #{tpu_custom_call.1} parent=1 // pred_fallthru
      _
    // Predicated region
    $region38: #{tpu_custom_call.1} parent=1 // pred_check
      _
    $region39: #{tpu_custom_call.1} parent=1 // pred_check_branch
      %46 = sbr.rel (0) target = $region41
    $region40: #{tpu_custom_call.1} parent=1 // pred_region
      _
    $region41: #{tpu_custom_call.1} parent=1 // pred_fallthru
      _
    // Predicated region
    $region42: #{tpu_custom_call.1} parent=1 // pred_check
      _
    $region43: #{tpu_custom_call.1} parent=1 // pred_check_branch
      %48 = sbr.rel (0) target = $region45
    $region44: #{tpu_custom_call.1} parent=1 // pred_region
      _
    $region45: #{tpu_custom_call.1} parent=1 // pred_fallthru
      _
    // Predicated region
    $region46: #{tpu_custom_call.1} parent=1 // pred_check
      _
    $region47: #{tpu_custom_call.1} parent=1 // pred_check_branch
      %50 = sbr.rel (0) target = $region49
    $region48: #{tpu_custom_call.1} parent=1 // pred_region
      _
    $region49: #{tpu_custom_call.1} parent=1 // pred_fallthru
      _
    // Predicated region
    $region50: #{tpu_custom_call.1} parent=1 // pred_check
      _
    $region51: #{tpu_custom_call.1} parent=1 // pred_check_branch
      %52 = sbr.rel (0) target = $region53
    $region52: #{tpu_custom_call.1} parent=1 // pred_region
      %53 = dma.done [#allocation5], 16
    $region53: #{tpu_custom_call.1} parent=1 // pred_fallthru
      _
    %54 = sfence
    %s55 = sld [smem:[#allocation3]]
    %s56 = sld [smem:[#allocation3 + $0x1]]
    %s57 = sld [smem:[#allocation3 + $0x2]]
    %s58 = sld [smem:[#allocation3 + $0x3]]
    %s59 = sld [smem:[#allocation3 + $0x4]]
    %s60 = sld [smem:[#allocation3 + $0x5]]
    %s61 = sld [smem:[#allocation3 + $0x6]]
    %s62 = sld [smem:[#allocation3 + $0x7]]
    %v63 = vld [vmem:[%s3] sm:$0xff]
    %v64 = vld [vmem:[%s3 + $0x8] sm:$0xff]
    %v65 = vld [vmem:[%s3 + $0x10] sm:$0xff]
    %v66 = vld [vmem:[%s3 + $0x18] sm:$0xff]
    %v67 = vld [vmem:[%s4] sm:$0xff]
    %v68 = vld [vmem:[%s4 + $0x8] sm:$0xff]
    %v69 = vld [vmem:[%s4 + $0x10] sm:$0xff]
    %v70 = vld [vmem:[%s4 + $0x18] sm:$0xff]
    %v71 = vld [vmem:[%s5] sm:$0xff]
    %v72 = vld [vmem:[%s5 + $0x8] sm:$0xff]
    %v73 = vld [vmem:[%s5 + $0x10] sm:$0xff]
    %v74 = vld [vmem:[%s5 + $0x18] sm:$0xff]
    %v75 = vld [vmem:[%s6] sm:$0xff]
    %v76 = vld [vmem:[%s6 + $0x8] sm:$0xff]
    %v77 = vld [vmem:[%s6 + $0x10] sm:$0xff]
    %v78 = vld [vmem:[%s6 + $0x18] sm:$0xff]
    %v79 = vld [vmem:[%s8] sm:$0xff]
    %v80 = vld [vmem:[%s8 + $0x8] sm:$0xff]
    %v81 = vld [vmem:[%s8 + $0x10] sm:$0xff]
    %v82 = vld [vmem:[%s8 + $0x18] sm:$0xff]
    %v83 = vld [vmem:[%s8 + $0x20] sm:$0xff]
    %v84 = vld [vmem:[%s8 + $0x28] sm:$0xff]
    %v85 = vld [vmem:[%s8 + $0x30] sm:$0xff]
    %v86 = vld [vmem:[%s8 + $0x38] sm:$0xff]
    %v87 = vld [vmem:[%s8 + $0x40] sm:$0xff]
    %v88 = vld [vmem:[%s8 + $0x48] sm:$0xff]
    %v89 = vld [vmem:[%s8 + $0x50] sm:$0xff]
    %v90 = vld [vmem:[%s8 + $0x58] sm:$0xff]
    %v91 = vld [vmem:[%s8 + $0x60] sm:$0xff]
    %v92 = vld [vmem:[%s8 + $0x68] sm:$0xff]
    %v93 = vld [vmem:[%s8 + $0x70] sm:$0xff]
    %v94 = vld [vmem:[%s8 + $0x78] sm:$0xff]
    %v95 = vld [vmem:[%s9] sm:$0xff]
    %v96 = vld [vmem:[%s9 + $0x8] sm:$0xff]
    %v97 = vld [vmem:[%s9 + $0x10] sm:$0xff]
    %v98 = vld [vmem:[%s9 + $0x18] sm:$0xff]
    %v99 = vld [vmem:[%s9 + $0x20] sm:$0xff]
    %v100 = vld [vmem:[%s9 + $0x28] sm:$0xff]
    %v101 = vld [vmem:[%s9 + $0x30] sm:$0xff]
    %v102 = vld [vmem:[%s9 + $0x38] sm:$0xff]
    %v103 = vld [vmem:[%s9 + $0x40] sm:$0xff]
    %v104 = vld [vmem:[%s9 + $0x48] sm:$0xff]
    %v105 = vld [vmem:[%s9 + $0x50] sm:$0xff]
    %v106 = vld [vmem:[%s9 + $0x58] sm:$0xff]
    %v107 = vld [vmem:[%s9 + $0x60] sm:$0xff]
    %v108 = vld [vmem:[%s9 + $0x68] sm:$0xff]
    %v109 = vld [vmem:[%s9 + $0x70] sm:$0xff]
    %v110 = vld [vmem:[%s9 + $0x78] sm:$0xff]
    %v111 = vld [vmem:[%s10] sm:$0xff]
    %v112 = vld [vmem:[%s10 + $0x8] sm:$0xff]
    %v113 = vld [vmem:[%s10 + $0x10] sm:$0xff]
    %v114 = vld [vmem:[%s10 + $0x18] sm:$0xff]
    %v115 = vld [vmem:[%s11] sm:$0xff]
    %v116 = vld [vmem:[%s11 + $0x8] sm:$0xff]
    %v117 = vld [vmem:[%s11 + $0x10] sm:$0xff]
    %v118 = vld [vmem:[%s11 + $0x18] sm:$0xff]
    %v119 = vld [vmem:[%s2] sm:$0xff]
    %v120 = vld [vmem:[%s2 + $0x8] sm:$0xff]
    %v121 = vld [vmem:[%s2 + $0x10] sm:$0xff]
    %v122 = vld [vmem:[%s2 + $0x18] sm:$0xff]
    %v123 = vadd.f32 %v119, %v120
    %v124 = vadd.f32 %v123, %v121
    %v125 = vadd.f32 %v124, %v122
    %v126 = vrot.slane %v125, 4
    %v127 = vadd.f32 %v125, %v126
    %v128 = vrot.slane %v127, 2
    %v129 = vadd.f32 %v127, %v128
    %v130 = vrot.slane %v129, 1
    %v131 = vadd.f32 %v129, %v130
    %v132 = vrcp.pop 32.0
    %v133 = vmul.f32 %v131, %v132
    %v134 = vsub.f32 %v119, %v133
    %v135 = vsub.f32 %v120, %v133
    %v136 = vsub.f32 %v121, %v133
    %v137 = vsub.f32 %v122, %v133
    %v138 = vmul.f32 %v134, %v134
    %v139 = vmul.f32 %v135, %v135
    %v140 = vmul.f32 %v136, %v136
    %v141 = vmul.f32 %v137, %v137
    %v142 = vadd.f32 %v138, %v139
    %v143 = vadd.f32 %v142, %v140
    %v144 = vadd.f32 %v143, %v141
    %v145 = vrot.slane %v144, 4
    %v146 = vadd.f32 %v144, %v145
    %v147 = vrot.slane %v146, 2
    %v148 = vadd.f32 %v146, %v147
    %v149 = vrot.slane %v148, 1
    %v150 = vadd.f32 %v148, %v149
    %v151 = vmul.f32 %v150, %v132
    %v152 = vadd.f32 %v151, 1e-05
    %v153 = vrsqrt.pop %v152
    %v154 = vmul.f32 %v134, %v153
    %v155 = vmul.f32 %v135, %v153
    %v156 = vmul.f32 %v136, %v153
    %v157 = vmul.f32 %v137, %v153
    %159 = vset.pattern.permute.xlu0 0
    %160 = vperm.xlu0 %159, %v63
    %v161 = vpop.permute.xlu0 %160
    %164 = vset.pattern.permute.xlu0 0
    %165 = vperm.xlu0 %164, %v64
    %v166 = vpop.permute.xlu0 %165
    %169 = vset.pattern.permute.xlu0 0
    %170 = vperm.xlu0 %169, %v65
    %v171 = vpop.permute.xlu0 %170
    %174 = vset.pattern.permute.xlu0 0
    %175 = vperm.xlu0 %174, %v66
    %v176 = vpop.permute.xlu0 %175
    %v178 = vmul.f32 %v154, %v161
    %v179 = vmul.f32 %v155, %v166
    %v180 = vmul.f32 %v156, %v171
    %v181 = vmul.f32 %v157, %v176
    %183 = vset.pattern.permute.xlu0 0
    %184 = vperm.xlu0 %183, %v67
    %v185 = vpop.permute.xlu0 %184
    %188 = vset.pattern.permute.xlu0 0
    %189 = vperm.xlu0 %188, %v68
    %v190 = vpop.permute.xlu0 %189
    %193 = vset.pattern.permute.xlu0 0
    %194 = vperm.xlu0 %193, %v69
    %v195 = vpop.permute.xlu0 %194
    %198 = vset.pattern.permute.xlu0 0
    %199 = vperm.xlu0 %198, %v70
    %v200 = vpop.permute.xlu0 %199
    %v202 = vadd.f32 %v178, %v185
    %v203 = vadd.f32 %v179, %v190
    %v204 = vadd.f32 %v180, %v195
    %v205 = vadd.f32 %v181, %v200
    %206 = vst [vmem:[#allocation2] sm:$0xff] %v202
    %207 = vst [vmem:[#allocation2 + $0x8] sm:$0xff] %v203
    %208 = vst [vmem:[#allocation2 + $0x10] sm:$0xff] %v204
    %209 = vst [vmem:[#allocation2 + $0x18] sm:$0xff] %v205
    %v210 = vld [vmem:[%s0] sm:$0xff]
    %v211 = vld [vmem:[%s0 + $0x8] sm:$0xff]
    %v212 = vld [vmem:[%s0 + $0x10] sm:$0xff]
    %v213 = vld [vmem:[%s0 + $0x18] sm:$0xff]
    %v214 = vstv %s55
    %v215 = vmul.f32 %v214, %v210
    %v216 = vmul.f32 %v214, %v211
    %v217 = vmul.f32 %v214, %v212
    %v218 = vmul.f32 %v214, %v213
    %v219 = vstv %s58
    %v220 = vadd.f32 %v215, %v219
    %v221 = vadd.f32 %v216, %v219
    %v222 = vadd.f32 %v217, %v219
    %v223 = vadd.f32 %v218, %v219
    %v224 = vld [vmem:[%s1] sm:$0xff]
    %v225 = vld [vmem:[%s1 + $0x8] sm:$0xff]
    %v226 = vld [vmem:[%s1 + $0x10] sm:$0xff]
    %v227 = vld [vmem:[%s1 + $0x18] sm:$0xff]
    %v228 = vmax.f32 %v224, %v225
    %v229 = vmax.f32 %v226, %v227
    %v230 = vmax.f32 %v228, %v229
    %v231 = vrot.slane %v230, 4
    %v232 = vmax.f32 %v230, %v231
    %v233 = vrot.slane %v232, 2
    %v234 = vmax.f32 %v232, %v233
    %v235 = vrot.slane %v234, 1
    %v236 = vmax.f32 %v234, %v235
    %v237 = vmin.f32 %v224, %v225
    %v238 = vmin.f32 %v226, %v227
    %v239 = vmin.f32 %v237, %v238
    %v240 = vrot.slane %v239, 4
    %v241 = vmin.f32 %v239, %v240
    %v242 = vrot.slane %v241, 2
    %v243 = vmin.f32 %v241, %v242
    %v244 = vrot.slane %v243, 1
    %v245 = vmin.f32 %v243, %v244
    %v246 = vstv %s56
    %v247 = vmul.f32 %v246, %v236
    %v248 = vmul.f32 %v246, %v245
    %v249 = vmax.f32 %v247, %v248
    %v250 = vstv %s59
    %v251 = vadd.f32 %v249, %v250
    %v252 = vmin.f32 %v247, %v248
    %v253 = vadd.f32 %v252, %v250
    %v254 = vmul.f32 %v220, %v251
    %v255 = vmul.f32 %v221, %v251
    %v256 = vmul.f32 %v222, %v251
    %v257 = vmul.f32 %v223, %v251
    %v258 = vmul.f32 %v220, %v253
    %v259 = vmul.f32 %v221, %v253
    %v260 = vmul.f32 %v222, %v253
    %v261 = vmul.f32 %v223, %v253
    %v262 = vmax.f32 %v254, %v258
    %v263 = vmax.f32 %v255, %v259
    %v264 = vmax.f32 %v256, %v260
    %v265 = vmax.f32 %v257, %v261
    %v266 = vld [vmem:[%s1] sm:$0x1]
    %v267 = vmul.f32 %v246, %v266
    %v268 = vadd.f32 %v267, %v250
    %v269 = vlaneseq
    %v270 = vshrl.u32 %v269, 7
    %v271 = vsub.s32 0, %v270
    %v272 = vrot.slane %v268, %v271
    %v273 = vmul.f32 %v220, %v272
    %v274 = vmul.f32 %v221, %v272
    %v275 = vmul.f32 %v222, %v272
    %v276 = vmul.f32 %v223, %v272
    %v277 = vsub.f32 %v273, %v262
    %v278 = vsub.f32 %v274, %v263
    %v279 = vsub.f32 %v275, %v264
    %v280 = vsub.f32 %v276, %v265
    %v281 = vmul.f32 %v277, 1.442695
    %v282 = vpow.pop %v281
    %v283 = vmul.f32 %v278, 1.442695
    %v284 = vpow.pop %v283
    %v285 = vmul.f32 %v279, 1.442695
    %v286 = vpow.pop %v285
    %v287 = vmul.f32 %v280, 1.442695
    %v288 = vpow.pop %v287
    %v289 = vld [vmem:[#allocation2] sm:$0x1]
    %v290 = vadd.f32 %v282, 0.0
    %v291 = vadd.f32 %v284, 0.0
    %v292 = vadd.f32 %v286, 0.0
    %v293 = vadd.f32 %v288, 0.0
    %v294 = vlaneseq
    %v295 = vshrl.u32 %v294, 7
    %v296 = vsub.s32 0, %v295
    %v297 = vrot.slane %v289, %v296
    %v298 = vmul.f32 %v282, %v297
    %v299 = vmul.f32 %v284, %v297
    %v300 = vmul.f32 %v286, %v297
    %v301 = vmul.f32 %v288, %v297
    %v302 = vadd.f32 %v298, 0.0
    %v303 = vadd.f32 %v299, 0.0
    %v304 = vadd.f32 %v300, 0.0
    %v305 = vadd.f32 %v301, 0.0
    %v306 = vld [vmem:[%s1 + $0x1] sm:$0x1]
    %v307 = vmul.f32 %v246, %v306
    %v308 = vadd.f32 %v307, %v250
    %v309 = vlaneseq
    %v310 = vshrl.u32 %v309, 7
    %v311 = vsub.s32 0, %v310
    %v312 = vrot.slane %v308, %v311
    %v313 = vmul.f32 %v220, %v312
    %v314 = vmul.f32 %v221, %v312
    %v315 = vmul.f32 %v222, %v312
    %v316 = vmul.f32 %v223, %v312
    %v317 = vsub.f32 %v313, %v262
    %v318 = vsub.f32 %v314, %v263
    %v319 = vsub.f32 %v315, %v264
    %v320 = vsub.f32 %v316, %v265
    %v321 = vmul.f32 %v317, 1.442695
    %v322 = vpow.pop %v321
    %v323 = vmul.f32 %v318, 1.442695
    %v324 = vpow.pop %v323
    %v325 = vmul.f32 %v319, 1.442695
    %v326 = vpow.pop %v325
    %v327 = vmul.f32 %v320, 1.442695
    %v328 = vpow.pop %v327
    %v329 = vld [vmem:[#allocation2 + $0x1] sm:$0x1]
    %v330 = vadd.f32 %v290, %v322
    %v331 = vadd.f32 %v291, %v324
    %v332 = vadd.f32 %v292, %v326
    %v333 = vadd.f32 %v293, %v328
    %v334 = vlaneseq
    %v335 = vshrl.u32 %v334, 7
    %v336 = vsub.s32 0, %v335
    %v337 = vrot.slane %v329, %v336
    %v338 = vmul.f32 %v322, %v337
    %v339 = vmul.f32 %v324, %v337
    %v340 = vmul.f32 %v326, %v337
    %v341 = vmul.f32 %v328, %v337
    %v342 = vadd.f32 %v302, %v338
    %v343 = vadd.f32 %v303, %v339
    %v344 = vadd.f32 %v304, %v340
    %v345 = vadd.f32 %v305, %v341
    %v346 = vld [vmem:[%s1 + $0x2] sm:$0x1]
    %v347 = vmul.f32 %v246, %v346
    %v348 = vadd.f32 %v347, %v250
    %v349 = vlaneseq
    %v350 = vshrl.u32 %v349, 7
    %v351 = vsub.s32 0, %v350
    %v352 = vrot.slane %v348, %v351
    %v353 = vmul.f32 %v220, %v352
    %v354 = vmul.f32 %v221, %v352
    %v355 = vmul.f32 %v222, %v352
    %v356 = vmul.f32 %v223, %v352
    %v357 = vsub.f32 %v353, %v262
    %v358 = vsub.f32 %v354, %v263
    %v359 = vsub.f32 %v355, %v264
    %v360 = vsub.f32 %v356, %v265
    %v361 = vmul.f32 %v357, 1.442695
    %v362 = vpow.pop %v361
    %v363 = vmul.f32 %v358, 1.442695
    %v364 = vpow.pop %v363
    %v365 = vmul.f32 %v359, 1.442695
    %v366 = vpow.pop %v365
    %v367 = vmul.f32 %v360, 1.442695
    %v368 = vpow.pop %v367
    %v369 = vld [vmem:[#allocation2 + $0x2] sm:$0x1]
    %v370 = vadd.f32 %v330, %v362
    %v371 = vadd.f32 %v331, %v364
    %v372 = vadd.f32 %v332, %v366
    %v373 = vadd.f32 %v333, %v368
    %v374 = vlaneseq
    %v375 = vshrl.u32 %v374, 7
    %v376 = vsub.s32 0, %v375
    %v377 = vrot.slane %v369, %v376
    %v378 = vmul.f32 %v362, %v377
    %v379 = vmul.f32 %v364, %v377
    %v380 = vmul.f32 %v366, %v377
    %v381 = vmul.f32 %v368, %v377
    %v382 = vadd.f32 %v342, %v378
    %v383 = vadd.f32 %v343, %v379
    %v384 = vadd.f32 %v344, %v380
    %v385 = vadd.f32 %v345, %v381
    %v386 = vld [vmem:[%s1 + $0x3] sm:$0x1]
    %v387 = vmul.f32 %v246, %v386
    %v388 = vadd.f32 %v387, %v250
    %v389 = vlaneseq
    %v390 = vshrl.u32 %v389, 7
    %v391 = vsub.s32 0, %v390
    %v392 = vrot.slane %v388, %v391
    %v393 = vmul.f32 %v220, %v392
    %v394 = vmul.f32 %v221, %v392
    %v395 = vmul.f32 %v222, %v392
    %v396 = vmul.f32 %v223, %v392
    %v397 = vsub.f32 %v393, %v262
    %v398 = vsub.f32 %v394, %v263
    %v399 = vsub.f32 %v395, %v264
    %v400 = vsub.f32 %v396, %v265
    %v401 = vmul.f32 %v397, 1.442695
    %v402 = vpow.pop %v401
    %v403 = vmul.f32 %v398, 1.442695
    %v404 = vpow.pop %v403
    %v405 = vmul.f32 %v399, 1.442695
    %v406 = vpow.pop %v405
    %v407 = vmul.f32 %v400, 1.442695
    %v408 = vpow.pop %v407
    %v409 = vld [vmem:[#allocation2 + $0x3] sm:$0x1]
    %v410 = vadd.f32 %v370, %v402
    %v411 = vadd.f32 %v371, %v404
    %v412 = vadd.f32 %v372, %v406
    %v413 = vadd.f32 %v373, %v408
    %v414 = vlaneseq
    %v415 = vshrl.u32 %v414, 7
    %v416 = vsub.s32 0, %v415
    %v417 = vrot.slane %v409, %v416
    %v418 = vmul.f32 %v402, %v417
    %v419 = vmul.f32 %v404, %v417
    %v420 = vmul.f32 %v406, %v417
    %v421 = vmul.f32 %v408, %v417
    %v422 = vadd.f32 %v382, %v418
    %v423 = vadd.f32 %v383, %v419
    %v424 = vadd.f32 %v384, %v420
    %v425 = vadd.f32 %v385, %v421
    %v426 = vld [vmem:[%s1 + $0x4] sm:$0x1]
    %v427 = vmul.f32 %v246, %v426
    %v428 = vadd.f32 %v427, %v250
    %v429 = vlaneseq
    %v430 = vshrl.u32 %v429, 7
    %v431 = vsub.s32 0, %v430
    %v432 = vrot.slane %v428, %v431
    %v433 = vmul.f32 %v220, %v432
    %v434 = vmul.f32 %v221, %v432
    %v435 = vmul.f32 %v222, %v432
    %v436 = vmul.f32 %v223, %v432
    %v437 = vsub.f32 %v433, %v262
    %v438 = vsub.f32 %v434, %v263
    %v439 = vsub.f32 %v435, %v264
    %v440 = vsub.f32 %v436, %v265
    %v441 = vmul.f32 %v437, 1.442695
    %v442 = vpow.pop %v441
    %v443 = vmul.f32 %v438, 1.442695
    %v444 = vpow.pop %v443
    %v445 = vmul.f32 %v439, 1.442695
    %v446 = vpow.pop %v445
    %v447 = vmul.f32 %v440, 1.442695
    %v448 = vpow.pop %v447
    %v449 = vld [vmem:[#allocation2 + $0x4] sm:$0x1]
    %v450 = vadd.f32 %v410, %v442
    %v451 = vadd.f32 %v411, %v444
    %v452 = vadd.f32 %v412, %v446
    %v453 = vadd.f32 %v413, %v448
    %v454 = vlaneseq
    %v455 = vshrl.u32 %v454, 7
    %v456 = vsub.s32 0, %v455
    %v457 = vrot.slane %v449, %v456
    %v458 = vmul.f32 %v442, %v457
    %v459 = vmul.f32 %v444, %v457
    %v460 = vmul.f32 %v446, %v457
    %v461 = vmul.f32 %v448, %v457
    %v462 = vadd.f32 %v422, %v458
    %v463 = vadd.f32 %v423, %v459
    %v464 = vadd.f32 %v424, %v460
    %v465 = vadd.f32 %v425, %v461
    %v466 = vld [vmem:[%s1 + $0x5] sm:$0x1]
    %v467 = vmul.f32 %v246, %v466
    %v468 = vadd.f32 %v467, %v250
    %v469 = vlaneseq
    %v470 = vshrl.u32 %v469, 7
    %v471 = vsub.s32 0, %v470
    %v472 = vrot.slane %v468, %v471
    %v473 = vmul.f32 %v220, %v472
    %v474 = vmul.f32 %v221, %v472
    %v475 = vmul.f32 %v222, %v472
    %v476 = vmul.f32 %v223, %v472
    %v477 = vsub.f32 %v473, %v262
    %v478 = vsub.f32 %v474, %v263
    %v479 = vsub.f32 %v475, %v264
    %v480 = vsub.f32 %v476, %v265
    %v481 = vmul.f32 %v477, 1.442695
    %v482 = vpow.pop %v481
    %v483 = vmul.f32 %v478, 1.442695
    %v484 = vpow.pop %v483
    %v485 = vmul.f32 %v479, 1.442695
    %v486 = vpow.pop %v485
    %v487 = vmul.f32 %v480, 1.442695
    %v488 = vpow.pop %v487
    %v489 = vld [vmem:[#allocation2 + $0x5] sm:$0x1]
    %v490 = vadd.f32 %v450, %v482
    %v491 = vadd.f32 %v451, %v484
    %v492 = vadd.f32 %v452, %v486
    %v493 = vadd.f32 %v453, %v488
    %v494 = vlaneseq
    %v495 = vshrl.u32 %v494, 7
    %v496 = vsub.s32 0, %v495
    %v497 = vrot.slane %v489, %v496
    %v498 = vmul.f32 %v482, %v497
    %v499 = vmul.f32 %v484, %v497
    %v500 = vmul.f32 %v486, %v497
    %v501 = vmul.f32 %v488, %v497
    %v502 = vadd.f32 %v462, %v498
    %v503 = vadd.f32 %v463, %v499
    %v504 = vadd.f32 %v464, %v500
    %v505 = vadd.f32 %v465, %v501
    %v506 = vld [vmem:[%s1 + $0x6] sm:$0x1]
    %v507 = vmul.f32 %v246, %v506
    %v508 = vadd.f32 %v507, %v250
    %v509 = vlaneseq
    %v510 = vshrl.u32 %v509, 7
    %v511 = vsub.s32 0, %v510
    %v512 = vrot.slane %v508, %v511
    %v513 = vmul.f32 %v220, %v512
    %v514 = vmul.f32 %v221, %v512
    %v515 = vmul.f32 %v222, %v512
    %v516 = vmul.f32 %v223, %v512
    %v517 = vsub.f32 %v513, %v262
    %v518 = vsub.f32 %v514, %v263
    %v519 = vsub.f32 %v515, %v264
    %v520 = vsub.f32 %v516, %v265
    %v521 = vmul.f32 %v517, 1.442695
    %v522 = vpow.pop %v521
    %v523 = vmul.f32 %v518, 1.442695
    %v524 = vpow.pop %v523
    %v525 = vmul.f32 %v519, 1.442695
    %v526 = vpow.pop %v525
    %v527 = vmul.f32 %v520, 1.442695
    %v528 = vpow.pop %v527
    %v529 = vld [vmem:[#allocation2 + $0x6] sm:$0x1]
    %v530 = vadd.f32 %v490, %v522
    %v531 = vadd.f32 %v491, %v524
    %v532 = vadd.f32 %v492, %v526
    %v533 = vadd.f32 %v493, %v528
    %v534 = vlaneseq
    %v535 = vshrl.u32 %v534, 7
    %v536 = vsub.s32 0, %v535
    %v537 = vrot.slane %v529, %v536
    %v538 = vmul.f32 %v522, %v537
    %v539 = vmul.f32 %v524, %v537
    %v540 = vmul.f32 %v526, %v537
    %v541 = vmul.f32 %v528, %v537
    %v542 = vadd.f32 %v502, %v538
    %v543 = vadd.f32 %v503, %v539
    %v544 = vadd.f32 %v504, %v540
    %v545 = vadd.f32 %v505, %v541
    %v546 = vld [vmem:[%s1 + $0x7] sm:$0x1]
    %v547 = vmul.f32 %v246, %v546
    %v548 = vadd.f32 %v547, %v250
    %v549 = vlaneseq
    %v550 = vshrl.u32 %v549, 7
    %v551 = vsub.s32 0, %v550
    %v552 = vrot.slane %v548, %v551
    %v553 = vmul.f32 %v220, %v552
    %v554 = vmul.f32 %v221, %v552
    %v555 = vmul.f32 %v222, %v552
    %v556 = vmul.f32 %v223, %v552
    %v557 = vsub.f32 %v553, %v262
    %v558 = vsub.f32 %v554, %v263
    %v559 = vsub.f32 %v555, %v264
    %v560 = vsub.f32 %v556, %v265
    %v561 = vmul.f32 %v557, 1.442695
    %v562 = vpow.pop %v561
    %v563 = vmul.f32 %v558, 1.442695
    %v564 = vpow.pop %v563
    %v565 = vmul.f32 %v559, 1.442695
    %v566 = vpow.pop %v565
    %v567 = vmul.f32 %v560, 1.442695
    %v568 = vpow.pop %v567
    %v569 = vld [vmem:[#allocation2 + $0x7] sm:$0x1]
    %v570 = vadd.f32 %v530, %v562
    %v571 = vadd.f32 %v531, %v564
    %v572 = vadd.f32 %v532, %v566
    %v573 = vadd.f32 %v533, %v568
    %v574 = vlaneseq
    %v575 = vshrl.u32 %v574, 7
    %v576 = vsub.s32 0, %v575
    %v577 = vrot.slane %v569, %v576
    %v578 = vmul.f32 %v562, %v577
    %v579 = vmul.f32 %v564, %v577
    %v580 = vmul.f32 %v566, %v577
    %v581 = vmul.f32 %v568, %v577
    %v582 = vadd.f32 %v542, %v578
    %v583 = vadd.f32 %v543, %v579
    %v584 = vadd.f32 %v544, %v580
    %v585 = vadd.f32 %v545, %v581
    %v586 = vld [vmem:[%s1 + $0x8] sm:$0x1]
    %v587 = vmul.f32 %v246, %v586
    %v588 = vadd.f32 %v587, %v250
    %v589 = vlaneseq
    %v590 = vshrl.u32 %v589, 7
    %v591 = vsub.s32 0, %v590
    %v592 = vrot.slane %v588, %v591
    %v593 = vmul.f32 %v220, %v592
    %v594 = vmul.f32 %v221, %v592
    %v595 = vmul.f32 %v222, %v592
    %v596 = vmul.f32 %v223, %v592
    %v597 = vsub.f32 %v593, %v262
    %v598 = vsub.f32 %v594, %v263
    %v599 = vsub.f32 %v595, %v264
    %v600 = vsub.f32 %v596, %v265
    %v601 = vmul.f32 %v597, 1.442695
    %v602 = vpow.pop %v601
    %v603 = vmul.f32 %v598, 1.442695
    %v604 = vpow.pop %v603
    %v605 = vmul.f32 %v599, 1.442695
    %v606 = vpow.pop %v605
    %v607 = vmul.f32 %v600, 1.442695
    %v608 = vpow.pop %v607
    %v609 = vld [vmem:[#allocation2 + $0x8] sm:$0x1]
    %v610 = vadd.f32 %v570, %v602
    %v611 = vadd.f32 %v571, %v604
    %v612 = vadd.f32 %v572, %v606
    %v613 = vadd.f32 %v573, %v608
    %v614 = vlaneseq
    %v615 = vshrl.u32 %v614, 7
    %v616 = vsub.s32 0, %v615
    %v617 = vrot.slane %v609, %v616
    %v618 = vmul.f32 %v602, %v617
    %v619 = vmul.f32 %v604, %v617
    %v620 = vmul.f32 %v606, %v617
    %v621 = vmul.f32 %v608, %v617
    %v622 = vadd.f32 %v582, %v618
    %v623 = vadd.f32 %v583, %v619
    %v624 = vadd.f32 %v584, %v620
    %v625 = vadd.f32 %v585, %v621
    %v626 = vld [vmem:[%s1 + $0x9] sm:$0x1]
    %v627 = vmul.f32 %v246, %v626
    %v628 = vadd.f32 %v627, %v250
    %v629 = vlaneseq
    %v630 = vshrl.u32 %v629, 7
    %v631 = vsub.s32 0, %v630
    %v632 = vrot.slane %v628, %v631
    %v633 = vmul.f32 %v220, %v632
    %v634 = vmul.f32 %v221, %v632
    %v635 = vmul.f32 %v222, %v632
    %v636 = vmul.f32 %v223, %v632
    %v637 = vsub.f32 %v633, %v262
    %v638 = vsub.f32 %v634, %v263
    %v639 = vsub.f32 %v635, %v264
    %v640 = vsub.f32 %v636, %v265
    %v641 = vmul.f32 %v637, 1.442695
    %v642 = vpow.pop %v641
    %v643 = vmul.f32 %v638, 1.442695
    %v644 = vpow.pop %v643
    %v645 = vmul.f32 %v639, 1.442695
    %v646 = vpow.pop %v645
    %v647 = vmul.f32 %v640, 1.442695
    %v648 = vpow.pop %v647
    %v649 = vld [vmem:[#allocation2 + $0x9] sm:$0x1]
    %v650 = vadd.f32 %v610, %v642
    %v651 = vadd.f32 %v611, %v644
    %v652 = vadd.f32 %v612, %v646
    %v653 = vadd.f32 %v613, %v648
    %v654 = vlaneseq
    %v655 = vshrl.u32 %v654, 7
    %v656 = vsub.s32 0, %v655
    %v657 = vrot.slane %v649, %v656
    %v658 = vmul.f32 %v642, %v657
    %v659 = vmul.f32 %v644, %v657
    %v660 = vmul.f32 %v646, %v657
    %v661 = vmul.f32 %v648, %v657
    %v662 = vadd.f32 %v622, %v658
    %v663 = vadd.f32 %v623, %v659
    %v664 = vadd.f32 %v624, %v660
    %v665 = vadd.f32 %v625, %v661
    %v666 = vld [vmem:[%s1 + $0xa] sm:$0x1]
    %v667 = vmul.f32 %v246, %v666
    %v668 = vadd.f32 %v667, %v250
    %v669 = vlaneseq
    %v670 = vshrl.u32 %v669, 7
    %v671 = vsub.s32 0, %v670
    %v672 = vrot.slane %v668, %v671
    %v673 = vmul.f32 %v220, %v672
    %v674 = vmul.f32 %v221, %v672
    %v675 = vmul.f32 %v222, %v672
    %v676 = vmul.f32 %v223, %v672
    %v677 = vsub.f32 %v673, %v262
    %v678 = vsub.f32 %v674, %v263
    %v679 = vsub.f32 %v675, %v264
    %v680 = vsub.f32 %v676, %v265
    %v681 = vmul.f32 %v677, 1.442695
    %v682 = vpow.pop %v681
    %v683 = vmul.f32 %v678, 1.442695
    %v684 = vpow.pop %v683
    %v685 = vmul.f32 %v679, 1.442695
    %v686 = vpow.pop %v685
    %v687 = vmul.f32 %v680, 1.442695
    %v688 = vpow.pop %v687
    %v689 = vld [vmem:[#allocation2 + $0xa] sm:$0x1]
    %v690 = vadd.f32 %v650, %v682
    %v691 = vadd.f32 %v651, %v684
    %v692 = vadd.f32 %v652, %v686
    %v693 = vadd.f32 %v653, %v688
    %v694 = vlaneseq
    %v695 = vshrl.u32 %v694, 7
    %v696 = vsub.s32 0, %v695
    %v697 = vrot.slane %v689, %v696
    %v698 = vmul.f32 %v682, %v697
    %v699 = vmul.f32 %v684, %v697
    %v700 = vmul.f32 %v686, %v697
    %v701 = vmul.f32 %v688, %v697
    %v702 = vadd.f32 %v662, %v698
    %v703 = vadd.f32 %v663, %v699
    %v704 = vadd.f32 %v664, %v700
    %v705 = vadd.f32 %v665, %v701
    %v706 = vld [vmem:[%s1 + $0xb] sm:$0x1]
    %v707 = vmul.f32 %v246, %v706
    %v708 = vadd.f32 %v707, %v250
    %v709 = vlaneseq
    %v710 = vshrl.u32 %v709, 7
    %v711 = vsub.s32 0, %v710
    %v712 = vrot.slane %v708, %v711
    %v713 = vmul.f32 %v220, %v712
    %v714 = vmul.f32 %v221, %v712
    %v715 = vmul.f32 %v222, %v712
    %v716 = vmul.f32 %v223, %v712
    %v717 = vsub.f32 %v713, %v262
    %v718 = vsub.f32 %v714, %v263
    %v719 = vsub.f32 %v715, %v264
    %v720 = vsub.f32 %v716, %v265
    %v721 = vmul.f32 %v717, 1.442695
    %v722 = vpow.pop %v721
    %v723 = vmul.f32 %v718, 1.442695
    %v724 = vpow.pop %v723
    %v725 = vmul.f32 %v719, 1.442695
    %v726 = vpow.pop %v725
    %v727 = vmul.f32 %v720, 1.442695
    %v728 = vpow.pop %v727
    %v729 = vld [vmem:[#allocation2 + $0xb] sm:$0x1]
    %v730 = vadd.f32 %v690, %v722
    %v731 = vadd.f32 %v691, %v724
    %v732 = vadd.f32 %v692, %v726
    %v733 = vadd.f32 %v693, %v728
    %v734 = vlaneseq
    %v735 = vshrl.u32 %v734, 7
    %v736 = vsub.s32 0, %v735
    %v737 = vrot.slane %v729, %v736
    %v738 = vmul.f32 %v722, %v737
    %v739 = vmul.f32 %v724, %v737
    %v740 = vmul.f32 %v726, %v737
    %v741 = vmul.f32 %v728, %v737
    %v742 = vadd.f32 %v702, %v738
    %v743 = vadd.f32 %v703, %v739
    %v744 = vadd.f32 %v704, %v740
    %v745 = vadd.f32 %v705, %v741
    %v746 = vld [vmem:[%s1 + $0xc] sm:$0x1]
    %v747 = vmul.f32 %v246, %v746
    %v748 = vadd.f32 %v747, %v250
    %v749 = vlaneseq
    %v750 = vshrl.u32 %v749, 7
    %v751 = vsub.s32 0, %v750
    %v752 = vrot.slane %v748, %v751
    %v753 = vmul.f32 %v220, %v752
    %v754 = vmul.f32 %v221, %v752
    %v755 = vmul.f32 %v222, %v752
    %v756 = vmul.f32 %v223, %v752
    %v757 = vsub.f32 %v753, %v262
    %v758 = vsub.f32 %v754, %v263
    %v759 = vsub.f32 %v755, %v264
    %v760 = vsub.f32 %v756, %v265
    %v761 = vmul.f32 %v757, 1.442695
    %v762 = vpow.pop %v761
    %v763 = vmul.f32 %v758, 1.442695
    %v764 = vpow.pop %v763
    %v765 = vmul.f32 %v759, 1.442695
    %v766 = vpow.pop %v765
    %v767 = vmul.f32 %v760, 1.442695
    %v768 = vpow.pop %v767
    %v769 = vld [vmem:[#allocation2 + $0xc] sm:$0x1]
    %v770 = vadd.f32 %v730, %v762
    %v771 = vadd.f32 %v731, %v764
    %v772 = vadd.f32 %v732, %v766
    %v773 = vadd.f32 %v733, %v768
    %v774 = vlaneseq
    %v775 = vshrl.u32 %v774, 7
    %v776 = vsub.s32 0, %v775
    %v777 = vrot.slane %v769, %v776
    %v778 = vmul.f32 %v762, %v777
    %v779 = vmul.f32 %v764, %v777
    %v780 = vmul.f32 %v766, %v777
    %v781 = vmul.f32 %v768, %v777
    %v782 = vadd.f32 %v742, %v778
    %v783 = vadd.f32 %v743, %v779
    %v784 = vadd.f32 %v744, %v780
    %v785 = vadd.f32 %v745, %v781
    %v786 = vld [vmem:[%s1 + $0xd] sm:$0x1]
    %v787 = vmul.f32 %v246, %v786
    %v788 = vadd.f32 %v787, %v250
    %v789 = vlaneseq
    %v790 = vshrl.u32 %v789, 7
    %v791 = vsub.s32 0, %v790
    %v792 = vrot.slane %v788, %v791
    %v793 = vmul.f32 %v220, %v792
    %v794 = vmul.f32 %v221, %v792
    %v795 = vmul.f32 %v222, %v792
    %v796 = vmul.f32 %v223, %v792
    %v797 = vsub.f32 %v793, %v262
    %v798 = vsub.f32 %v794, %v263
    %v799 = vsub.f32 %v795, %v264
    %v800 = vsub.f32 %v796, %v265
    %v801 = vmul.f32 %v797, 1.442695
    %v802 = vpow.pop %v801
    %v803 = vmul.f32 %v798, 1.442695
    %v804 = vpow.pop %v803
    %v805 = vmul.f32 %v799, 1.442695
    %v806 = vpow.pop %v805
    %v807 = vmul.f32 %v800, 1.442695
    %v808 = vpow.pop %v807
    %v809 = vld [vmem:[#allocation2 + $0xd] sm:$0x1]
    %v810 = vadd.f32 %v770, %v802
    %v811 = vadd.f32 %v771, %v804
    %v812 = vadd.f32 %v772, %v806
    %v813 = vadd.f32 %v773, %v808
    %v814 = vlaneseq
    %v815 = vshrl.u32 %v814, 7
    %v816 = vsub.s32 0, %v815
    %v817 = vrot.slane %v809, %v816
    %v818 = vmul.f32 %v802, %v817
    %v819 = vmul.f32 %v804, %v817
    %v820 = vmul.f32 %v806, %v817
    %v821 = vmul.f32 %v808, %v817
    %v822 = vadd.f32 %v782, %v818
    %v823 = vadd.f32 %v783, %v819
    %v824 = vadd.f32 %v784, %v820
    %v825 = vadd.f32 %v785, %v821
    %v826 = vld [vmem:[%s1 + $0xe] sm:$0x1]
    %v827 = vmul.f32 %v246, %v826
    %v828 = vadd.f32 %v827, %v250
    %v829 = vlaneseq
    %v830 = vshrl.u32 %v829, 7
    %v831 = vsub.s32 0, %v830
    %v832 = vrot.slane %v828, %v831
    %v833 = vmul.f32 %v220, %v832
    %v834 = vmul.f32 %v221, %v832
    %v835 = vmul.f32 %v222, %v832
    %v836 = vmul.f32 %v223, %v832
    %v837 = vsub.f32 %v833, %v262
    %v838 = vsub.f32 %v834, %v263
    %v839 = vsub.f32 %v835, %v264
    %v840 = vsub.f32 %v836, %v265
    %v841 = vmul.f32 %v837, 1.442695
    %v842 = vpow.pop %v841
    %v843 = vmul.f32 %v838, 1.442695
    %v844 = vpow.pop %v843
    %v845 = vmul.f32 %v839, 1.442695
    %v846 = vpow.pop %v845
    %v847 = vmul.f32 %v840, 1.442695
    %v848 = vpow.pop %v847
    %v849 = vld [vmem:[#allocation2 + $0xe] sm:$0x1]
    %v850 = vadd.f32 %v810, %v842
    %v851 = vadd.f32 %v811, %v844
    %v852 = vadd.f32 %v812, %v846
    %v853 = vadd.f32 %v813, %v848
    %v854 = vlaneseq
    %v855 = vshrl.u32 %v854, 7
    %v856 = vsub.s32 0, %v855
    %v857 = vrot.slane %v849, %v856
    %v858 = vmul.f32 %v842, %v857
    %v859 = vmul.f32 %v844, %v857
    %v860 = vmul.f32 %v846, %v857
    %v861 = vmul.f32 %v848, %v857
    %v862 = vadd.f32 %v822, %v858
    %v863 = vadd.f32 %v823, %v859
    %v864 = vadd.f32 %v824, %v860
    %v865 = vadd.f32 %v825, %v861
    %v866 = vld [vmem:[%s1 + $0xf] sm:$0x1]
    %v867 = vmul.f32 %v246, %v866
    %v868 = vadd.f32 %v867, %v250
    %v869 = vlaneseq
    %v870 = vshrl.u32 %v869, 7
    %v871 = vsub.s32 0, %v870
    %v872 = vrot.slane %v868, %v871
    %v873 = vmul.f32 %v220, %v872
    %v874 = vmul.f32 %v221, %v872
    %v875 = vmul.f32 %v222, %v872
    %v876 = vmul.f32 %v223, %v872
    %v877 = vsub.f32 %v873, %v262
    %v878 = vsub.f32 %v874, %v263
    %v879 = vsub.f32 %v875, %v264
    %v880 = vsub.f32 %v876, %v265
    %v881 = vmul.f32 %v877, 1.442695
    %v882 = vpow.pop %v881
    %v883 = vmul.f32 %v878, 1.442695
    %v884 = vpow.pop %v883
    %v885 = vmul.f32 %v879, 1.442695
    %v886 = vpow.pop %v885
    %v887 = vmul.f32 %v880, 1.442695
    %v888 = vpow.pop %v887
    %v889 = vld [vmem:[#allocation2 + $0xf] sm:$0x1]
    %v890 = vadd.f32 %v850, %v882
    %v891 = vadd.f32 %v851, %v884
    %v892 = vadd.f32 %v852, %v886
    %v893 = vadd.f32 %v853, %v888
    %v894 = vlaneseq
    %v895 = vshrl.u32 %v894, 7
    %v896 = vsub.s32 0, %v895
    %v897 = vrot.slane %v889, %v896
    %v898 = vmul.f32 %v882, %v897
    %v899 = vmul.f32 %v884, %v897
    %v900 = vmul.f32 %v886, %v897
    %v901 = vmul.f32 %v888, %v897
    %v902 = vadd.f32 %v862, %v898
    %v903 = vadd.f32 %v863, %v899
    %v904 = vadd.f32 %v864, %v900
    %v905 = vadd.f32 %v865, %v901
    %v906 = vld [vmem:[%s1 + $0x10] sm:$0x1]
    %v907 = vmul.f32 %v246, %v906
    %v908 = vadd.f32 %v907, %v250
    %v909 = vlaneseq
    %v910 = vshrl.u32 %v909, 7
    %v911 = vsub.s32 0, %v910
    %v912 = vrot.slane %v908, %v911
    %v913 = vmul.f32 %v220, %v912
    %v914 = vmul.f32 %v221, %v912
    %v915 = vmul.f32 %v222, %v912
    %v916 = vmul.f32 %v223, %v912
    %v917 = vsub.f32 %v913, %v262
    %v918 = vsub.f32 %v914, %v263
    %v919 = vsub.f32 %v915, %v264
    %v920 = vsub.f32 %v916, %v265
    %v921 = vmul.f32 %v917, 1.442695
    %v922 = vpow.pop %v921
    %v923 = vmul.f32 %v918, 1.442695
    %v924 = vpow.pop %v923
    %v925 = vmul.f32 %v919, 1.442695
    %v926 = vpow.pop %v925
    %v927 = vmul.f32 %v920, 1.442695
    %v928 = vpow.pop %v927
    %v929 = vld [vmem:[#allocation2 + $0x10] sm:$0x1]
    %v930 = vadd.f32 %v890, %v922
    %v931 = vadd.f32 %v891, %v924
    %v932 = vadd.f32 %v892, %v926
    %v933 = vadd.f32 %v893, %v928
    %v934 = vlaneseq
    %v935 = vshrl.u32 %v934, 7
    %v936 = vsub.s32 0, %v935
    %v937 = vrot.slane %v929, %v936
    %v938 = vmul.f32 %v922, %v937
    %v939 = vmul.f32 %v924, %v937
    %v940 = vmul.f32 %v926, %v937
    %v941 = vmul.f32 %v928, %v937
    %v942 = vadd.f32 %v902, %v938
    %v943 = vadd.f32 %v903, %v939
    %v944 = vadd.f32 %v904, %v940
    %v945 = vadd.f32 %v905, %v941
    %v946 = vld [vmem:[%s1 + $0x11] sm:$0x1]
    %v947 = vmul.f32 %v246, %v946
    %v948 = vadd.f32 %v947, %v250
    %v949 = vlaneseq
    %v950 = vshrl.u32 %v949, 7
    %v951 = vsub.s32 0, %v950
    %v952 = vrot.slane %v948, %v951
    %v953 = vmul.f32 %v220, %v952
    %v954 = vmul.f32 %v221, %v952
    %v955 = vmul.f32 %v222, %v952
    %v956 = vmul.f32 %v223, %v952
    %v957 = vsub.f32 %v953, %v262
    %v958 = vsub.f32 %v954, %v263
    %v959 = vsub.f32 %v955, %v264
    %v960 = vsub.f32 %v956, %v265
    %v961 = vmul.f32 %v957, 1.442695
    %v962 = vpow.pop %v961
    %v963 = vmul.f32 %v958, 1.442695
    %v964 = vpow.pop %v963
    %v965 = vmul.f32 %v959, 1.442695
    %v966 = vpow.pop %v965
    %v967 = vmul.f32 %v960, 1.442695
    %v968 = vpow.pop %v967
    %v969 = vld [vmem:[#allocation2 + $0x11] sm:$0x1]
    %v970 = vadd.f32 %v930, %v962
    %v971 = vadd.f32 %v931, %v964
    %v972 = vadd.f32 %v932, %v966
    %v973 = vadd.f32 %v933, %v968
    %v974 = vlaneseq
    %v975 = vshrl.u32 %v974, 7
    %v976 = vsub.s32 0, %v975
    %v977 = vrot.slane %v969, %v976
    %v978 = vmul.f32 %v962, %v977
    %v979 = vmul.f32 %v964, %v977
    %v980 = vmul.f32 %v966, %v977
    %v981 = vmul.f32 %v968, %v977
    %v982 = vadd.f32 %v942, %v978
    %v983 = vadd.f32 %v943, %v979
    %v984 = vadd.f32 %v944, %v980
    %v985 = vadd.f32 %v945, %v981
    %v986 = vld [vmem:[%s1 + $0x12] sm:$0x1]
    %v987 = vmul.f32 %v246, %v986
    %v988 = vadd.f32 %v987, %v250
    %v989 = vlaneseq
    %v990 = vshrl.u32 %v989, 7
    %v991 = vsub.s32 0, %v990
    %v992 = vrot.slane %v988, %v991
    %v993 = vmul.f32 %v220, %v992
    %v994 = vmul.f32 %v221, %v992
    %v995 = vmul.f32 %v222, %v992
    %v996 = vmul.f32 %v223, %v992
    %v997 = vsub.f32 %v993, %v262
    %v998 = vsub.f32 %v994, %v263
    %v999 = vsub.f32 %v995, %v264
    %v1000 = vsub.f32 %v996, %v265
    %v1001 = vmul.f32 %v997, 1.442695
    %v1002 = vpow.pop %v1001
    %v1003 = vmul.f32 %v998, 1.442695
    %v1004 = vpow.pop %v1003
    %v1005 = vmul.f32 %v999, 1.442695
    %v1006 = vpow.pop %v1005
    %v1007 = vmul.f32 %v1000, 1.442695
    %v1008 = vpow.pop %v1007
    %v1009 = vld [vmem:[#allocation2 + $0x12] sm:$0x1]
    %v1010 = vadd.f32 %v970, %v1002
    %v1011 = vadd.f32 %v971, %v1004
    %v1012 = vadd.f32 %v972, %v1006
    %v1013 = vadd.f32 %v973, %v1008
    %v1014 = vlaneseq
    %v1015 = vshrl.u32 %v1014, 7
    %v1016 = vsub.s32 0, %v1015
    %v1017 = vrot.slane %v1009, %v1016
    %v1018 = vmul.f32 %v1002, %v1017
    %v1019 = vmul.f32 %v1004, %v1017
    %v1020 = vmul.f32 %v1006, %v1017
    %v1021 = vmul.f32 %v1008, %v1017
    %v1022 = vadd.f32 %v982, %v1018
    %v1023 = vadd.f32 %v983, %v1019
    %v1024 = vadd.f32 %v984, %v1020
    %v1025 = vadd.f32 %v985, %v1021
    %v1026 = vld [vmem:[%s1 + $0x13] sm:$0x1]
    %v1027 = vmul.f32 %v246, %v1026
    %v1028 = vadd.f32 %v1027, %v250
    %v1029 = vlaneseq
    %v1030 = vshrl.u32 %v1029, 7
    %v1031 = vsub.s32 0, %v1030
    %v1032 = vrot.slane %v1028, %v1031
    %v1033 = vmul.f32 %v220, %v1032
    %v1034 = vmul.f32 %v221, %v1032
    %v1035 = vmul.f32 %v222, %v1032
    %v1036 = vmul.f32 %v223, %v1032
    %v1037 = vsub.f32 %v1033, %v262
    %v1038 = vsub.f32 %v1034, %v263
    %v1039 = vsub.f32 %v1035, %v264
    %v1040 = vsub.f32 %v1036, %v265
    %v1041 = vmul.f32 %v1037, 1.442695
    %v1042 = vpow.pop %v1041
    %v1043 = vmul.f32 %v1038, 1.442695
    %v1044 = vpow.pop %v1043
    %v1045 = vmul.f32 %v1039, 1.442695
    %v1046 = vpow.pop %v1045
    %v1047 = vmul.f32 %v1040, 1.442695
    %v1048 = vpow.pop %v1047
    %v1049 = vld [vmem:[#allocation2 + $0x13] sm:$0x1]
    %v1050 = vadd.f32 %v1010, %v1042
    %v1051 = vadd.f32 %v1011, %v1044
    %v1052 = vadd.f32 %v1012, %v1046
    %v1053 = vadd.f32 %v1013, %v1048
    %v1054 = vlaneseq
    %v1055 = vshrl.u32 %v1054, 7
    %v1056 = vsub.s32 0, %v1055
    %v1057 = vrot.slane %v1049, %v1056
    %v1058 = vmul.f32 %v1042, %v1057
    %v1059 = vmul.f32 %v1044, %v1057
    %v1060 = vmul.f32 %v1046, %v1057
    %v1061 = vmul.f32 %v1048, %v1057
    %v1062 = vadd.f32 %v1022, %v1058
    %v1063 = vadd.f32 %v1023, %v1059
    %v1064 = vadd.f32 %v1024, %v1060
    %v1065 = vadd.f32 %v1025, %v1061
    %v1066 = vld [vmem:[%s1 + $0x14] sm:$0x1]
    %v1067 = vmul.f32 %v246, %v1066
    %v1068 = vadd.f32 %v1067, %v250
    %v1069 = vlaneseq
    %v1070 = vshrl.u32 %v1069, 7
    %v1071 = vsub.s32 0, %v1070
    %v1072 = vrot.slane %v1068, %v1071
    %v1073 = vmul.f32 %v220, %v1072
    %v1074 = vmul.f32 %v221, %v1072
    %v1075 = vmul.f32 %v222, %v1072
    %v1076 = vmul.f32 %v223, %v1072
    %v1077 = vsub.f32 %v1073, %v262
    %v1078 = vsub.f32 %v1074, %v263
    %v1079 = vsub.f32 %v1075, %v264
    %v1080 = vsub.f32 %v1076, %v265
    %v1081 = vmul.f32 %v1077, 1.442695
    %v1082 = vpow.pop %v1081
    %v1083 = vmul.f32 %v1078, 1.442695
    %v1084 = vpow.pop %v1083
    %v1085 = vmul.f32 %v1079, 1.442695
    %v1086 = vpow.pop %v1085
    %v1087 = vmul.f32 %v1080, 1.442695
    %v1088 = vpow.pop %v1087
    %v1089 = vld [vmem:[#allocation2 + $0x14] sm:$0x1]
    %v1090 = vadd.f32 %v1050, %v1082
    %v1091 = vadd.f32 %v1051, %v1084
    %v1092 = vadd.f32 %v1052, %v1086
    %v1093 = vadd.f32 %v1053, %v1088
    %v1094 = vlaneseq
    %v1095 = vshrl.u32 %v1094, 7
    %v1096 = vsub.s32 0, %v1095
    %v1097 = vrot.slane %v1089, %v1096
    %v1098 = vmul.f32 %v1082, %v1097
    %v1099 = vmul.f32 %v1084, %v1097
    %v1100 = vmul.f32 %v1086, %v1097
    %v1101 = vmul.f32 %v1088, %v1097
    %v1102 = vadd.f32 %v1062, %v1098
    %v1103 = vadd.f32 %v1063, %v1099
    %v1104 = vadd.f32 %v1064, %v1100
    %v1105 = vadd.f32 %v1065, %v1101
    %v1106 = vld [vmem:[%s1 + $0x15] sm:$0x1]
    %v1107 = vmul.f32 %v246, %v1106
    %v1108 = vadd.f32 %v1107, %v250
    %v1109 = vlaneseq
    %v1110 = vshrl.u32 %v1109, 7
    %v1111 = vsub.s32 0, %v1110
    %v1112 = vrot.slane %v1108, %v1111
    %v1113 = vmul.f32 %v220, %v1112
    %v1114 = vmul.f32 %v221, %v1112
    %v1115 = vmul.f32 %v222, %v1112
    %v1116 = vmul.f32 %v223, %v1112
    %v1117 = vsub.f32 %v1113, %v262
    %v1118 = vsub.f32 %v1114, %v263
    %v1119 = vsub.f32 %v1115, %v264
    %v1120 = vsub.f32 %v1116, %v265
    %v1121 = vmul.f32 %v1117, 1.442695
    %v1122 = vpow.pop %v1121
    %v1123 = vmul.f32 %v1118, 1.442695
    %v1124 = vpow.pop %v1123
    %v1125 = vmul.f32 %v1119, 1.442695
    %v1126 = vpow.pop %v1125
    %v1127 = vmul.f32 %v1120, 1.442695
    %v1128 = vpow.pop %v1127
    %v1129 = vld [vmem:[#allocation2 + $0x15] sm:$0x1]
    %v1130 = vadd.f32 %v1090, %v1122
    %v1131 = vadd.f32 %v1091, %v1124
    %v1132 = vadd.f32 %v1092, %v1126
    %v1133 = vadd.f32 %v1093, %v1128
    %v1134 = vlaneseq
    %v1135 = vshrl.u32 %v1134, 7
    %v1136 = vsub.s32 0, %v1135
    %v1137 = vrot.slane %v1129, %v1136
    %v1138 = vmul.f32 %v1122, %v1137
    %v1139 = vmul.f32 %v1124, %v1137
    %v1140 = vmul.f32 %v1126, %v1137
    %v1141 = vmul.f32 %v1128, %v1137
    %v1142 = vadd.f32 %v1102, %v1138
    %v1143 = vadd.f32 %v1103, %v1139
    %v1144 = vadd.f32 %v1104, %v1140
    %v1145 = vadd.f32 %v1105, %v1141
    %v1146 = vld [vmem:[%s1 + $0x16] sm:$0x1]
    %v1147 = vmul.f32 %v246, %v1146
    %v1148 = vadd.f32 %v1147, %v250
    %v1149 = vlaneseq
    %v1150 = vshrl.u32 %v1149, 7
    %v1151 = vsub.s32 0, %v1150
    %v1152 = vrot.slane %v1148, %v1151
    %v1153 = vmul.f32 %v220, %v1152
    %v1154 = vmul.f32 %v221, %v1152
    %v1155 = vmul.f32 %v222, %v1152
    %v1156 = vmul.f32 %v223, %v1152
    %v1157 = vsub.f32 %v1153, %v262
    %v1158 = vsub.f32 %v1154, %v263
    %v1159 = vsub.f32 %v1155, %v264
    %v1160 = vsub.f32 %v1156, %v265
    %v1161 = vmul.f32 %v1157, 1.442695
    %v1162 = vpow.pop %v1161
    %v1163 = vmul.f32 %v1158, 1.442695
    %v1164 = vpow.pop %v1163
    %v1165 = vmul.f32 %v1159, 1.442695
    %v1166 = vpow.pop %v1165
    %v1167 = vmul.f32 %v1160, 1.442695
    %v1168 = vpow.pop %v1167
    %v1169 = vld [vmem:[#allocation2 + $0x16] sm:$0x1]
    %v1170 = vadd.f32 %v1130, %v1162
    %v1171 = vadd.f32 %v1131, %v1164
    %v1172 = vadd.f32 %v1132, %v1166
    %v1173 = vadd.f32 %v1133, %v1168
    %v1174 = vlaneseq
    %v1175 = vshrl.u32 %v1174, 7
    %v1176 = vsub.s32 0, %v1175
    %v1177 = vrot.slane %v1169, %v1176
    %v1178 = vmul.f32 %v1162, %v1177
    %v1179 = vmul.f32 %v1164, %v1177
    %v1180 = vmul.f32 %v1166, %v1177
    %v1181 = vmul.f32 %v1168, %v1177
    %v1182 = vadd.f32 %v1142, %v1178
    %v1183 = vadd.f32 %v1143, %v1179
    %v1184 = vadd.f32 %v1144, %v1180
    %v1185 = vadd.f32 %v1145, %v1181
    %v1186 = vld [vmem:[%s1 + $0x17] sm:$0x1]
    %v1187 = vmul.f32 %v246, %v1186
    %v1188 = vadd.f32 %v1187, %v250
    %v1189 = vlaneseq
    %v1190 = vshrl.u32 %v1189, 7
    %v1191 = vsub.s32 0, %v1190
    %v1192 = vrot.slane %v1188, %v1191
    %v1193 = vmul.f32 %v220, %v1192
    %v1194 = vmul.f32 %v221, %v1192
    %v1195 = vmul.f32 %v222, %v1192
    %v1196 = vmul.f32 %v223, %v1192
    %v1197 = vsub.f32 %v1193, %v262
    %v1198 = vsub.f32 %v1194, %v263
    %v1199 = vsub.f32 %v1195, %v264
    %v1200 = vsub.f32 %v1196, %v265
    %v1201 = vmul.f32 %v1197, 1.442695
    %v1202 = vpow.pop %v1201
    %v1203 = vmul.f32 %v1198, 1.442695
    %v1204 = vpow.pop %v1203
    %v1205 = vmul.f32 %v1199, 1.442695
    %v1206 = vpow.pop %v1205
    %v1207 = vmul.f32 %v1200, 1.442695
    %v1208 = vpow.pop %v1207
    %v1209 = vld [vmem:[#allocation2 + $0x17] sm:$0x1]
    %v1210 = vadd.f32 %v1170, %v1202
    %v1211 = vadd.f32 %v1171, %v1204
    %v1212 = vadd.f32 %v1172, %v1206
    %v1213 = vadd.f32 %v1173, %v1208
    %v1214 = vlaneseq
    %v1215 = vshrl.u32 %v1214, 7
    %v1216 = vsub.s32 0, %v1215
    %v1217 = vrot.slane %v1209, %v1216
    %v1218 = vmul.f32 %v1202, %v1217
    %v1219 = vmul.f32 %v1204, %v1217
    %v1220 = vmul.f32 %v1206, %v1217
    %v1221 = vmul.f32 %v1208, %v1217
    %v1222 = vadd.f32 %v1182, %v1218
    %v1223 = vadd.f32 %v1183, %v1219
    %v1224 = vadd.f32 %v1184, %v1220
    %v1225 = vadd.f32 %v1185, %v1221
    %v1226 = vld [vmem:[%s1 + $0x18] sm:$0x1]
    %v1227 = vmul.f32 %v246, %v1226
    %v1228 = vadd.f32 %v1227, %v250
    %v1229 = vlaneseq
    %v1230 = vshrl.u32 %v1229, 7
    %v1231 = vsub.s32 0, %v1230
    %v1232 = vrot.slane %v1228, %v1231
    %v1233 = vmul.f32 %v220, %v1232
    %v1234 = vmul.f32 %v221, %v1232
    %v1235 = vmul.f32 %v222, %v1232
    %v1236 = vmul.f32 %v223, %v1232
    %v1237 = vsub.f32 %v1233, %v262
    %v1238 = vsub.f32 %v1234, %v263
    %v1239 = vsub.f32 %v1235, %v264
    %v1240 = vsub.f32 %v1236, %v265
    %v1241 = vmul.f32 %v1237, 1.442695
    %v1242 = vpow.pop %v1241
    %v1243 = vmul.f32 %v1238, 1.442695
    %v1244 = vpow.pop %v1243
    %v1245 = vmul.f32 %v1239, 1.442695
    %v1246 = vpow.pop %v1245
    %v1247 = vmul.f32 %v1240, 1.442695
    %v1248 = vpow.pop %v1247
    %v1249 = vld [vmem:[#allocation2 + $0x18] sm:$0x1]
    %v1250 = vadd.f32 %v1210, %v1242
    %v1251 = vadd.f32 %v1211, %v1244
    %v1252 = vadd.f32 %v1212, %v1246
    %v1253 = vadd.f32 %v1213, %v1248
    %v1254 = vlaneseq
    %v1255 = vshrl.u32 %v1254, 7
    %v1256 = vsub.s32 0, %v1255
    %v1257 = vrot.slane %v1249, %v1256
    %v1258 = vmul.f32 %v1242, %v1257
    %v1259 = vmul.f32 %v1244, %v1257
    %v1260 = vmul.f32 %v1246, %v1257
    %v1261 = vmul.f32 %v1248, %v1257
    %v1262 = vadd.f32 %v1222, %v1258
    %v1263 = vadd.f32 %v1223, %v1259
    %v1264 = vadd.f32 %v1224, %v1260
    %v1265 = vadd.f32 %v1225, %v1261
    %v1266 = vld [vmem:[%s1 + $0x19] sm:$0x1]
    %v1267 = vmul.f32 %v246, %v1266
    %v1268 = vadd.f32 %v1267, %v250
    %v1269 = vlaneseq
    %v1270 = vshrl.u32 %v1269, 7
    %v1271 = vsub.s32 0, %v1270
    %v1272 = vrot.slane %v1268, %v1271
    %v1273 = vmul.f32 %v220, %v1272
    %v1274 = vmul.f32 %v221, %v1272
    %v1275 = vmul.f32 %v222, %v1272
    %v1276 = vmul.f32 %v223, %v1272
    %v1277 = vsub.f32 %v1273, %v262
    %v1278 = vsub.f32 %v1274, %v263
    %v1279 = vsub.f32 %v1275, %v264
    %v1280 = vsub.f32 %v1276, %v265
    %v1281 = vmul.f32 %v1277, 1.442695
    %v1282 = vpow.pop %v1281
    %v1283 = vmul.f32 %v1278, 1.442695
    %v1284 = vpow.pop %v1283
    %v1285 = vmul.f32 %v1279, 1.442695
    %v1286 = vpow.pop %v1285
    %v1287 = vmul.f32 %v1280, 1.442695
    %v1288 = vpow.pop %v1287
    %v1289 = vld [vmem:[#allocation2 + $0x19] sm:$0x1]
    %v1290 = vadd.f32 %v1250, %v1282
    %v1291 = vadd.f32 %v1251, %v1284
    %v1292 = vadd.f32 %v1252, %v1286
    %v1293 = vadd.f32 %v1253, %v1288
    %v1294 = vlaneseq
    %v1295 = vshrl.u32 %v1294, 7
    %v1296 = vsub.s32 0, %v1295
    %v1297 = vrot.slane %v1289, %v1296
    %v1298 = vmul.f32 %v1282, %v1297
    %v1299 = vmul.f32 %v1284, %v1297
    %v1300 = vmul.f32 %v1286, %v1297
    %v1301 = vmul.f32 %v1288, %v1297
    %v1302 = vadd.f32 %v1262, %v1298
    %v1303 = vadd.f32 %v1263, %v1299
    %v1304 = vadd.f32 %v1264, %v1300
    %v1305 = vadd.f32 %v1265, %v1301
    %v1306 = vld [vmem:[%s1 + $0x1a] sm:$0x1]
    %v1307 = vmul.f32 %v246, %v1306
    %v1308 = vadd.f32 %v1307, %v250
    %v1309 = vlaneseq
    %v1310 = vshrl.u32 %v1309, 7
    %v1311 = vsub.s32 0, %v1310
    %v1312 = vrot.slane %v1308, %v1311
    %v1313 = vmul.f32 %v220, %v1312
    %v1314 = vmul.f32 %v221, %v1312
    %v1315 = vmul.f32 %v222, %v1312
    %v1316 = vmul.f32 %v223, %v1312
    %v1317 = vsub.f32 %v1313, %v262
    %v1318 = vsub.f32 %v1314, %v263
    %v1319 = vsub.f32 %v1315, %v264
    %v1320 = vsub.f32 %v1316, %v265
    %v1321 = vmul.f32 %v1317, 1.442695
    %v1322 = vpow.pop %v1321
    %v1323 = vmul.f32 %v1318, 1.442695
    %v1324 = vpow.pop %v1323
    %v1325 = vmul.f32 %v1319, 1.442695
    %v1326 = vpow.pop %v1325
    %v1327 = vmul.f32 %v1320, 1.442695
    %v1328 = vpow.pop %v1327
    %v1329 = vld [vmem:[#allocation2 + $0x1a] sm:$0x1]
    %v1330 = vadd.f32 %v1290, %v1322
    %v1331 = vadd.f32 %v1291, %v1324
    %v1332 = vadd.f32 %v1292, %v1326
    %v1333 = vadd.f32 %v1293, %v1328
    %v1334 = vlaneseq
    %v1335 = vshrl.u32 %v1334, 7
    %v1336 = vsub.s32 0, %v1335
    %v1337 = vrot.slane %v1329, %v1336
    %v1338 = vmul.f32 %v1322, %v1337
    %v1339 = vmul.f32 %v1324, %v1337
    %v1340 = vmul.f32 %v1326, %v1337
    %v1341 = vmul.f32 %v1328, %v1337
    %v1342 = vadd.f32 %v1302, %v1338
    %v1343 = vadd.f32 %v1303, %v1339
    %v1344 = vadd.f32 %v1304, %v1340
    %v1345 = vadd.f32 %v1305, %v1341
    %v1346 = vld [vmem:[%s1 + $0x1b] sm:$0x1]
    %v1347 = vmul.f32 %v246, %v1346
    %v1348 = vadd.f32 %v1347, %v250
    %v1349 = vlaneseq
    %v1350 = vshrl.u32 %v1349, 7
    %v1351 = vsub.s32 0, %v1350
    %v1352 = vrot.slane %v1348, %v1351
    %v1353 = vmul.f32 %v220, %v1352
    %v1354 = vmul.f32 %v221, %v1352
    %v1355 = vmul.f32 %v222, %v1352
    %v1356 = vmul.f32 %v223, %v1352
    %v1357 = vsub.f32 %v1353, %v262
    %v1358 = vsub.f32 %v1354, %v263
    %v1359 = vsub.f32 %v1355, %v264
    %v1360 = vsub.f32 %v1356, %v265
    %v1361 = vmul.f32 %v1357, 1.442695
    %v1362 = vpow.pop %v1361
    %v1363 = vmul.f32 %v1358, 1.442695
    %v1364 = vpow.pop %v1363
    %v1365 = vmul.f32 %v1359, 1.442695
    %v1366 = vpow.pop %v1365
    %v1367 = vmul.f32 %v1360, 1.442695
    %v1368 = vpow.pop %v1367
    %v1369 = vld [vmem:[#allocation2 + $0x1b] sm:$0x1]
    %v1370 = vadd.f32 %v1330, %v1362
    %v1371 = vadd.f32 %v1331, %v1364
    %v1372 = vadd.f32 %v1332, %v1366
    %v1373 = vadd.f32 %v1333, %v1368
    %v1374 = vlaneseq
    %v1375 = vshrl.u32 %v1374, 7
    %v1376 = vsub.s32 0, %v1375
    %v1377 = vrot.slane %v1369, %v1376
    %v1378 = vmul.f32 %v1362, %v1377
    %v1379 = vmul.f32 %v1364, %v1377
    %v1380 = vmul.f32 %v1366, %v1377
    %v1381 = vmul.f32 %v1368, %v1377
    %v1382 = vadd.f32 %v1342, %v1378
    %v1383 = vadd.f32 %v1343, %v1379
    %v1384 = vadd.f32 %v1344, %v1380
    %v1385 = vadd.f32 %v1345, %v1381
    %v1386 = vld [vmem:[%s1 + $0x1c] sm:$0x1]
    %v1387 = vmul.f32 %v246, %v1386
    %v1388 = vadd.f32 %v1387, %v250
    %v1389 = vlaneseq
    %v1390 = vshrl.u32 %v1389, 7
    %v1391 = vsub.s32 0, %v1390
    %v1392 = vrot.slane %v1388, %v1391
    %v1393 = vmul.f32 %v220, %v1392
    %v1394 = vmul.f32 %v221, %v1392
    %v1395 = vmul.f32 %v222, %v1392
    %v1396 = vmul.f32 %v223, %v1392
    %v1397 = vsub.f32 %v1393, %v262
    %v1398 = vsub.f32 %v1394, %v263
    %v1399 = vsub.f32 %v1395, %v264
    %v1400 = vsub.f32 %v1396, %v265
    %v1401 = vmul.f32 %v1397, 1.442695
    %v1402 = vpow.pop %v1401
    %v1403 = vmul.f32 %v1398, 1.442695
    %v1404 = vpow.pop %v1403
    %v1405 = vmul.f32 %v1399, 1.442695
    %v1406 = vpow.pop %v1405
    %v1407 = vmul.f32 %v1400, 1.442695
    %v1408 = vpow.pop %v1407
    %v1409 = vld [vmem:[#allocation2 + $0x1c] sm:$0x1]
    %v1410 = vadd.f32 %v1370, %v1402
    %v1411 = vadd.f32 %v1371, %v1404
    %v1412 = vadd.f32 %v1372, %v1406
    %v1413 = vadd.f32 %v1373, %v1408
    %v1414 = vlaneseq
    %v1415 = vshrl.u32 %v1414, 7
    %v1416 = vsub.s32 0, %v1415
    %v1417 = vrot.slane %v1409, %v1416
    %v1418 = vmul.f32 %v1402, %v1417
    %v1419 = vmul.f32 %v1404, %v1417
    %v1420 = vmul.f32 %v1406, %v1417
    %v1421 = vmul.f32 %v1408, %v1417
    %v1422 = vadd.f32 %v1382, %v1418
    %v1423 = vadd.f32 %v1383, %v1419
    %v1424 = vadd.f32 %v1384, %v1420
    %v1425 = vadd.f32 %v1385, %v1421
    %v1426 = vld [vmem:[%s1 + $0x1d] sm:$0x1]
    %v1427 = vmul.f32 %v246, %v1426
    %v1428 = vadd.f32 %v1427, %v250
    %v1429 = vlaneseq
    %v1430 = vshrl.u32 %v1429, 7
    %v1431 = vsub.s32 0, %v1430
    %v1432 = vrot.slane %v1428, %v1431
    %v1433 = vmul.f32 %v220, %v1432
    %v1434 = vmul.f32 %v221, %v1432
    %v1435 = vmul.f32 %v222, %v1432
    %v1436 = vmul.f32 %v223, %v1432
    %v1437 = vsub.f32 %v1433, %v262
    %v1438 = vsub.f32 %v1434, %v263
    %v1439 = vsub.f32 %v1435, %v264
    %v1440 = vsub.f32 %v1436, %v265
    %v1441 = vmul.f32 %v1437, 1.442695
    %v1442 = vpow.pop %v1441
    %v1443 = vmul.f32 %v1438, 1.442695
    %v1444 = vpow.pop %v1443
    %v1445 = vmul.f32 %v1439, 1.442695
    %v1446 = vpow.pop %v1445
    %v1447 = vmul.f32 %v1440, 1.442695
    %v1448 = vpow.pop %v1447
    %v1449 = vld [vmem:[#allocation2 + $0x1d] sm:$0x1]
    %v1450 = vadd.f32 %v1410, %v1442
    %v1451 = vadd.f32 %v1411, %v1444
    %v1452 = vadd.f32 %v1412, %v1446
    %v1453 = vadd.f32 %v1413, %v1448
    %v1454 = vlaneseq
    %v1455 = vshrl.u32 %v1454, 7
    %v1456 = vsub.s32 0, %v1455
    %v1457 = vrot.slane %v1449, %v1456
    %v1458 = vmul.f32 %v1442, %v1457
    %v1459 = vmul.f32 %v1444, %v1457
    %v1460 = vmul.f32 %v1446, %v1457
    %v1461 = vmul.f32 %v1448, %v1457
    %v1462 = vadd.f32 %v1422, %v1458
    %v1463 = vadd.f32 %v1423, %v1459
    %v1464 = vadd.f32 %v1424, %v1460
    %v1465 = vadd.f32 %v1425, %v1461
    %v1466 = vld [vmem:[%s1 + $0x1e] sm:$0x1]
    %v1467 = vmul.f32 %v246, %v1466
    %v1468 = vadd.f32 %v1467, %v250
    %v1469 = vlaneseq
    %v1470 = vshrl.u32 %v1469, 7
    %v1471 = vsub.s32 0, %v1470
    %v1472 = vrot.slane %v1468, %v1471
    %v1473 = vmul.f32 %v220, %v1472
    %v1474 = vmul.f32 %v221, %v1472
    %v1475 = vmul.f32 %v222, %v1472
    %v1476 = vmul.f32 %v223, %v1472
    %v1477 = vsub.f32 %v1473, %v262
    %v1478 = vsub.f32 %v1474, %v263
    %v1479 = vsub.f32 %v1475, %v264
    %v1480 = vsub.f32 %v1476, %v265
    %v1481 = vmul.f32 %v1477, 1.442695
    %v1482 = vpow.pop %v1481
    %v1483 = vmul.f32 %v1478, 1.442695
    %v1484 = vpow.pop %v1483
    %v1485 = vmul.f32 %v1479, 1.442695
    %v1486 = vpow.pop %v1485
    %v1487 = vmul.f32 %v1480, 1.442695
    %v1488 = vpow.pop %v1487
    %v1489 = vld [vmem:[#allocation2 + $0x1e] sm:$0x1]
    %v1490 = vadd.f32 %v1450, %v1482
    %v1491 = vadd.f32 %v1451, %v1484
    %v1492 = vadd.f32 %v1452, %v1486
    %v1493 = vadd.f32 %v1453, %v1488
    %v1494 = vlaneseq
    %v1495 = vshrl.u32 %v1494, 7
    %v1496 = vsub.s32 0, %v1495
    %v1497 = vrot.slane %v1489, %v1496
    %v1498 = vmul.f32 %v1482, %v1497
    %v1499 = vmul.f32 %v1484, %v1497
    %v1500 = vmul.f32 %v1486, %v1497
    %v1501 = vmul.f32 %v1488, %v1497
    %v1502 = vadd.f32 %v1462, %v1498
    %v1503 = vadd.f32 %v1463, %v1499
    %v1504 = vadd.f32 %v1464, %v1500
    %v1505 = vadd.f32 %v1465, %v1501
    %v1506 = vld [vmem:[%s1 + $0x1f] sm:$0x1]
    %v1507 = vmul.f32 %v246, %v1506
    %v1508 = vadd.f32 %v1507, %v250
    %v1509 = vlaneseq
    %v1510 = vshrl.u32 %v1509, 7
    %v1511 = vsub.s32 0, %v1510
    %v1512 = vrot.slane %v1508, %v1511
    %v1513 = vmul.f32 %v220, %v1512
    %v1514 = vmul.f32 %v221, %v1512
    %v1515 = vmul.f32 %v222, %v1512
    %v1516 = vmul.f32 %v223, %v1512
    %v1517 = vsub.f32 %v1513, %v262
    %v1518 = vsub.f32 %v1514, %v263
    %v1519 = vsub.f32 %v1515, %v264
    %v1520 = vsub.f32 %v1516, %v265
    %v1521 = vmul.f32 %v1517, 1.442695
    %v1522 = vpow.pop %v1521
    %v1523 = vmul.f32 %v1518, 1.442695
    %v1524 = vpow.pop %v1523
    %v1525 = vmul.f32 %v1519, 1.442695
    %v1526 = vpow.pop %v1525
    %v1527 = vmul.f32 %v1520, 1.442695
    %v1528 = vpow.pop %v1527
    %v1529 = vld [vmem:[#allocation2 + $0x1f] sm:$0x1]
    %v1530 = vadd.f32 %v1490, %v1522
    %v1531 = vadd.f32 %v1491, %v1524
    %v1532 = vadd.f32 %v1492, %v1526
    %v1533 = vadd.f32 %v1493, %v1528
    %v1534 = vlaneseq
    %v1535 = vshrl.u32 %v1534, 7
    %v1536 = vsub.s32 0, %v1535
    %v1537 = vrot.slane %v1529, %v1536
    %v1538 = vmul.f32 %v1522, %v1537
    %v1539 = vmul.f32 %v1524, %v1537
    %v1540 = vmul.f32 %v1526, %v1537
    %v1541 = vmul.f32 %v1528, %v1537
    %v1542 = vadd.f32 %v1502, %v1538
    %v1543 = vadd.f32 %v1503, %v1539
    %v1544 = vadd.f32 %v1504, %v1540
    %v1545 = vadd.f32 %v1505, %v1541
    %v1546 = vstv %s57
    %v1547 = vmul.f32 %v1546, %v1542
    %v1548 = vmul.f32 %v1546, %v1543
    %v1549 = vmul.f32 %v1546, %v1544
    %v1550 = vmul.f32 %v1546, %v1545
    %v1551 = vrcp.pop %v1530
    %v1552 = vrcp.pop %v1531
    %v1553 = vrcp.pop %v1532
    %v1554 = vrcp.pop %v1533
    %v1555 = vmul.f32 %v1547, %v1551
    %v1556 = vmul.f32 %v1548, %v1552
    %v1557 = vmul.f32 %v1549, %v1553
    %v1558 = vmul.f32 %v1550, %v1554
    %v1559 = vstv %s60
    %v1560 = vadd.f32 %v1555, %v1559
    %v1561 = vadd.f32 %v1556, %v1559
    %v1562 = vadd.f32 %v1557, %v1559
    %v1563 = vadd.f32 %v1558, %v1559
    %v1564 = vstv %s61
    %v1565 = vmul.f32 %v1564, %v1560
    %v1566 = vmul.f32 %v1564, %v1561
    %v1567 = vmul.f32 %v1564, %v1562
    %v1568 = vmul.f32 %v1564, %v1563
    %v1569 = vstv %s62
    %v1570 = vadd.f32 %v1565, %v1569
    %v1571 = vadd.f32 %v1566, %v1569
    %v1572 = vadd.f32 %v1567, %v1569
    %v1573 = vadd.f32 %v1568, %v1569
    %v1574 = vadd.f32 %v1570, %v202
    %v1575 = vadd.f32 %v1571, %v203
    %v1576 = vadd.f32 %v1572, %v204
    %v1577 = vadd.f32 %v1573, %v205
    %v1578 = vadd.f32 %v1574, %v1575
    %v1579 = vadd.f32 %v1578, %v1576
    %v1580 = vadd.f32 %v1579, %v1577
    %v1581 = vrot.slane %v1580, 4
    %v1582 = vadd.f32 %v1580, %v1581
    %v1583 = vrot.slane %v1582, 2
    %v1584 = vadd.f32 %v1582, %v1583
    %v1585 = vrot.slane %v1584, 1
    %v1586 = vadd.f32 %v1584, %v1585
    %v1587 = vmul.f32 %v1586, %v132
    %v1588 = vsub.f32 %v1574, %v1587
    %v1589 = vsub.f32 %v1575, %v1587
    %v1590 = vsub.f32 %v1576, %v1587
    %v1591 = vsub.f32 %v1577, %v1587
    %v1592 = vmul.f32 %v1588, %v1588
    %v1593 = vmul.f32 %v1589, %v1589
    %v1594 = vmul.f32 %v1590, %v1590
    %v1595 = vmul.f32 %v1591, %v1591
    %v1596 = vadd.f32 %v1592, %v1593
    %v1597 = vadd.f32 %v1596, %v1594
    %v1598 = vadd.f32 %v1597, %v1595
    %v1599 = vrot.slane %v1598, 4
    %v1600 = vadd.f32 %v1598, %v1599
    %v1601 = vrot.slane %v1600, 2
    %v1602 = vadd.f32 %v1600, %v1601
    %v1603 = vrot.slane %v1602, 1
    %v1604 = vadd.f32 %v1602, %v1603
    %v1605 = vmul.f32 %v1604, %v132
    %v1606 = vadd.f32 %v1605, 1e-05
    %v1607 = vrsqrt.pop %v1606
    %v1608 = vmul.f32 %v1588, %v1607
    %v1609 = vmul.f32 %v1589, %v1607
    %v1610 = vmul.f32 %v1590, %v1607
    %v1611 = vmul.f32 %v1591, %v1607
    %1613 = vset.pattern.permute.xlu0 0
    %1614 = vperm.xlu0 %1613, %v71
    %v1615 = vpop.permute.xlu0 %1614
    %1618 = vset.pattern.permute.xlu0 0
    %1619 = vperm.xlu0 %1618, %v72
    %v1620 = vpop.permute.xlu0 %1619
    %1623 = vset.pattern.permute.xlu0 0
    %1624 = vperm.xlu0 %1623, %v73
    %v1625 = vpop.permute.xlu0 %1624
    %1628 = vset.pattern.permute.xlu0 0
    %1629 = vperm.xlu0 %1628, %v74
    %v1630 = vpop.permute.xlu0 %1629
    %v1632 = vmul.f32 %v1608, %v1615
    %v1633 = vmul.f32 %v1609, %v1620
    %v1634 = vmul.f32 %v1610, %v1625
    %v1635 = vmul.f32 %v1611, %v1630
    %1637 = vset.pattern.permute.xlu0 0
    %1638 = vperm.xlu0 %1637, %v75
    %v1639 = vpop.permute.xlu0 %1638
    %1642 = vset.pattern.permute.xlu0 0
    %1643 = vperm.xlu0 %1642, %v76
    %v1644 = vpop.permute.xlu0 %1643
    %1647 = vset.pattern.permute.xlu0 0
    %1648 = vperm.xlu0 %1647, %v77
    %v1649 = vpop.permute.xlu0 %1648
    %1652 = vset.pattern.permute.xlu0 0
    %1653 = vperm.xlu0 %1652, %v78
    %v1654 = vpop.permute.xlu0 %1653
    %v1656 = vadd.f32 %v1632, %v1639
    %v1657 = vadd.f32 %v1633, %v1644
    %v1658 = vadd.f32 %v1634, %v1649
    %v1659 = vadd.f32 %v1635, %v1654
    %1661 = vset.pattern.permute.xlu0 0
    %1662 = vperm.xlu0 %1661, %v95
    %v1663 = vpop.permute.xlu0 %1662
    %1666 = vset.pattern.permute.xlu0 0
    %1667 = vperm.xlu0 %1666, %v96
    %v1668 = vpop.permute.xlu0 %1667
    %1671 = vset.pattern.permute.xlu0 0
    %1672 = vperm.xlu0 %1671, %v97
    %v1673 = vpop.permute.xlu0 %1672
    %1676 = vset.pattern.permute.xlu0 0
    %1677 = vperm.xlu0 %1676, %v98
    %v1678 = vpop.permute.xlu0 %1677
    %1681 = vset.pattern.permute.xlu0 0
    %1682 = vperm.xlu0 %1681, %v99
    %v1683 = vpop.permute.xlu0 %1682
    %1686 = vset.pattern.permute.xlu0 0
    %1687 = vperm.xlu0 %1686, %v100
    %v1688 = vpop.permute.xlu0 %1687
    %1691 = vset.pattern.permute.xlu0 0
    %1692 = vperm.xlu0 %1691, %v101
    %v1693 = vpop.permute.xlu0 %1692
    %1696 = vset.pattern.permute.xlu0 0
    %1697 = vperm.xlu0 %1696, %v102
    %v1698 = vpop.permute.xlu0 %1697
    %1701 = vset.pattern.permute.xlu0 0
    %1702 = vperm.xlu0 %1701, %v103
    %v1703 = vpop.permute.xlu0 %1702
    %1706 = vset.pattern.permute.xlu0 0
    %1707 = vperm.xlu0 %1706, %v104
    %v1708 = vpop.permute.xlu0 %1707
    %1711 = vset.pattern.permute.xlu0 0
    %1712 = vperm.xlu0 %1711, %v105
    %v1713 = vpop.permute.xlu0 %1712
    %1716 = vset.pattern.permute.xlu0 0
    %1717 = vperm.xlu0 %1716, %v106
    %v1718 = vpop.permute.xlu0 %1717
    %1721 = vset.pattern.permute.xlu0 0
    %1722 = vperm.xlu0 %1721, %v107
    %v1723 = vpop.permute.xlu0 %1722
    %1726 = vset.pattern.permute.xlu0 0
    %1727 = vperm.xlu0 %1726, %v108
    %v1728 = vpop.permute.xlu0 %1727
    %1731 = vset.pattern.permute.xlu0 0
    %1732 = vperm.xlu0 %1731, %v109
    %v1733 = vpop.permute.xlu0 %1732
    %1736 = vset.pattern.permute.xlu0 0
    %1737 = vperm.xlu0 %1736, %v110
    %v1738 = vpop.permute.xlu0 %1737
    %vm1740 = vcmask 261120
    %v1742 = vsel %vm1740, %v79, 0
    %v1745 = vsel %vm1740, %v80, 0
    %v1748 = vsel %vm1740, %v81, 0
    %v1751 = vsel %vm1740, %v82, 0
    %v1754 = vsel %vm1740, %v83, 0
    %v1757 = vsel %vm1740, %v84, 0
    %v1760 = vsel %vm1740, %v85, 0
    %v1763 = vsel %vm1740, %v86, 0
    %v1766 = vsel %vm1740, %v87, 0
    %v1769 = vsel %vm1740, %v88, 0
    %v1772 = vsel %vm1740, %v89, 0
    %v1775 = vsel %vm1740, %v90, 0
    %v1778 = vsel %vm1740, %v91, 0
    %v1781 = vsel %vm1740, %v92, 0
    %v1784 = vsel %vm1740, %v93, 0
    %v1787 = vsel %vm1740, %v94, 0
    %1789 = vmatprep.subr.mxu0 0.0
    %1790 = vmatpush1.msra.mxu0 0.0
    %1791 = vmatprep.subr.mxu0 0.0
    %1792 = vmatpush1.msra.mxu0 0.0
    %1793 = vmatprep.subr.mxu0 0.0
    %1794 = vmatpush1.msra.mxu0 0.0
    %1795 = vmatprep.subr.mxu0 0.0
    %1796 = vmatpush1.msra.mxu0 0.0
    %1797 = vmatprep.subr.mxu0 0.0
    %1798 = vmatpush1.msra.mxu0 0.0
    %1799 = vmatprep.subr.mxu0 0.0
    %1800 = vmatpush1.msra.mxu0 0.0
    %1801 = vmatprep.subr.mxu0 0.0
    %1802 = vmatpush1.msra.mxu0 0.0
    %1803 = vmatprep.subr.mxu0 0.0
    %1804 = vmatpush1.msra.mxu0 0.0
    %1805 = vmatprep.subr.mxu0 0.0
    %1806 = vmatpush1.msra.mxu0 0.0
    %1807 = vmatprep.subr.mxu0 0.0
    %1808 = vmatpush1.msra.mxu0 0.0
    %1809 = vmatprep.subr.mxu0 0.0
    %1810 = vmatpush1.msra.mxu0 0.0
    %1811 = vmatprep.subr.mxu0 0.0
    %1812 = vmatpush1.msra.mxu0 0.0
    %1813 = vmatprep.subr.mxu0 0.0
    %v1814 = vand.u32 %v1659, 4294901760
    %1815 = vmatpush1.msra.mxu0 %v1814
    %1816 = vmatprep.subr.mxu0 0.0
    %v1817 = vand.u32 %v1658, 4294901760
    %1818 = vmatpush1.msra.mxu0 %v1817
    %1819 = vmatprep.subr.mxu0 0.0
    %v1820 = vand.u32 %v1657, 4294901760
    %1821 = vmatpush1.msra.mxu0 %v1820
    %1822 = vmatprep.subr.mxu0 0.0
    %v1823 = vand.u32 %v1656, 4294901760
    %1824 = vmatpush1.msra.mxu0 %v1823
    %1825 = vmatprep.subr.mxu0 0.0
    %1826 = vmatpush2.msra.mxu0 0.0
    %1827 = vmatprep.subr.mxu0 0.0
    %1828 = vmatpush2.msra.mxu0 0.0
    %1829 = vmatprep.subr.mxu0 0.0
    %1830 = vmatpush2.msra.mxu0 0.0
    %1831 = vmatprep.subr.mxu0 0.0
    %1832 = vmatpush2.msra.mxu0 0.0
    %1833 = vmatprep.subr.mxu0 0.0
    %1834 = vmatpush2.msra.mxu0 0.0
    %1835 = vmatprep.subr.mxu0 0.0
    %1836 = vmatpush2.msra.mxu0 0.0
    %1837 = vmatprep.subr.mxu0 0.0
    %1838 = vmatpush2.msra.mxu0 0.0
    %1839 = vmatprep.subr.mxu0 0.0
    %1840 = vmatpush2.msra.mxu0 0.0
    %1841 = vmatprep.subr.mxu0 0.0
    %1842 = vmatpush2.msra.mxu0 0.0
    %1843 = vmatprep.subr.mxu0 0.0
    %1844 = vmatpush2.msra.mxu0 0.0
    %1845 = vmatprep.subr.mxu0 0.0
    %1846 = vmatpush2.msra.mxu0 0.0
    %1847 = vmatprep.subr.mxu0 0.0
    %1848 = vmatpush2.msra.mxu0 0.0
    %1849 = vmatprep.subr.mxu0 0.0
    %1850 = vmatpush2.msra.mxu0 0.0
    %1851 = vmatprep.subr.mxu0 0.0
    %1852 = vmatpush2.msra.mxu0 0.0
    %1853 = vmatprep.subr.mxu0 0.0
    %1854 = vmatpush2.msra.mxu0 0.0
    %1855 = vmatprep.subr.mxu0 0.0
    %1856 = vmatpush2.msra.mxu0 0.0
    %1857 = vmatprep.mubr.f32.mxu0 0.0
    %v1858 = vand.u32 %v1742, 4294901760
    %v1859 = vsub.f32 %v1742, %v1858
    %v1860 = vand.u32 %v1859, 4294901760
    %v1861 = vsub.f32 %v1859, %v1860
    %v1862 = vand.u32 %v1861, 4294901760
    %1863 = vmatmul.mubr.f32.gmra.mxu0 %v1862
    %v1864 = vpop.f32.mrf.mxu0
    %v1865 = vadd.f32 %v1663, %v1864
    %v1866 = vpop.f32.mrf.mxu0
    %1867 = vmatprep.mubr.f32.mxu0 0.0
    %v1868 = vand.u32 %v1745, 4294901760
    %v1869 = vsub.f32 %v1745, %v1868
    %v1870 = vand.u32 %v1869, 4294901760
    %v1871 = vsub.f32 %v1869, %v1870
    %v1872 = vand.u32 %v1871, 4294901760
    %1873 = vmatmul.mubr.f32.gmra.mxu0 %v1872
    %v1874 = vpop.f32.mrf.mxu0
    %v1875 = vadd.f32 %v1668, %v1874
    %v1876 = vpop.f32.mrf.mxu0
    %1877 = vmatprep.mubr.f32.mxu0 0.0
    %v1878 = vand.u32 %v1748, 4294901760
    %v1879 = vsub.f32 %v1748, %v1878
    %v1880 = vand.u32 %v1879, 4294901760
    %v1881 = vsub.f32 %v1879, %v1880
    %v1882 = vand.u32 %v1881, 4294901760
    %1883 = vmatmul.mubr.f32.gmra.mxu0 %v1882
    %v1884 = vpop.f32.mrf.mxu0
    %v1885 = vadd.f32 %v1673, %v1884
    %v1886 = vpop.f32.mrf.mxu0
    %1887 = vmatprep.mubr.f32.mxu0 0.0
    %v1888 = vand.u32 %v1751, 4294901760
    %v1889 = vsub.f32 %v1751, %v1888
    %v1890 = vand.u32 %v1889, 4294901760
    %v1891 = vsub.f32 %v1889, %v1890
    %v1892 = vand.u32 %v1891, 4294901760
    %1893 = vmatmul.mubr.f32.gmra.mxu0 %v1892
    %v1894 = vpop.f32.mrf.mxu0
    %v1895 = vadd.f32 %v1678, %v1894
    %v1896 = vpop.f32.mrf.mxu0
    %1897 = vmatprep.mubr.f32.mxu0 0.0
    %v1898 = vand.u32 %v1754, 4294901760
    %v1899 = vsub.f32 %v1754, %v1898
    %v1900 = vand.u32 %v1899, 4294901760
    %v1901 = vsub.f32 %v1899, %v1900
    %v1902 = vand.u32 %v1901, 4294901760
    %1903 = vmatmul.mubr.f32.gmra.mxu0 %v1902
    %v1904 = vpop.f32.mrf.mxu0
    %v1905 = vadd.f32 %v1683, %v1904
    %v1906 = vpop.f32.mrf.mxu0
    %1907 = vmatprep.mubr.f32.mxu0 0.0
    %v1908 = vand.u32 %v1757, 4294901760
    %v1909 = vsub.f32 %v1757, %v1908
    %v1910 = vand.u32 %v1909, 4294901760
    %v1911 = vsub.f32 %v1909, %v1910
    %v1912 = vand.u32 %v1911, 4294901760
    %1913 = vmatmul.mubr.f32.gmra.mxu0 %v1912
    %v1914 = vpop.f32.mrf.mxu0
    %v1915 = vadd.f32 %v1688, %v1914
    %v1916 = vpop.f32.mrf.mxu0
    %1917 = vmatprep.mubr.f32.mxu0 0.0
    %v1918 = vand.u32 %v1760, 4294901760
    %v1919 = vsub.f32 %v1760, %v1918
    %v1920 = vand.u32 %v1919, 4294901760
    %v1921 = vsub.f32 %v1919, %v1920
    %v1922 = vand.u32 %v1921, 4294901760
    %1923 = vmatmul.mubr.f32.gmra.mxu0 %v1922
    %v1924 = vpop.f32.mrf.mxu0
    %v1925 = vadd.f32 %v1693, %v1924
    %v1926 = vpop.f32.mrf.mxu0
    %1927 = vmatprep.mubr.f32.mxu0 0.0
    %v1928 = vand.u32 %v1763, 4294901760
    %v1929 = vsub.f32 %v1763, %v1928
    %v1930 = vand.u32 %v1929, 4294901760
    %v1931 = vsub.f32 %v1929, %v1930
    %v1932 = vand.u32 %v1931, 4294901760
    %1933 = vmatmul.mubr.f32.gmra.mxu0 %v1932
    %v1934 = vpop.f32.mrf.mxu0
    %v1935 = vadd.f32 %v1698, %v1934
    %v1936 = vpop.f32.mrf.mxu0
    %1937 = vmatprep.mubr.f32.mxu0 0.0
    %v1938 = vand.u32 %v1766, 4294901760
    %v1939 = vsub.f32 %v1766, %v1938
    %v1940 = vand.u32 %v1939, 4294901760
    %v1941 = vsub.f32 %v1939, %v1940
    %v1942 = vand.u32 %v1941, 4294901760
    %1943 = vmatmul.mubr.f32.gmra.mxu0 %v1942
    %v1944 = vpop.f32.mrf.mxu0
    %v1945 = vadd.f32 %v1703, %v1944
    %v1946 = vpop.f32.mrf.mxu0
    %1947 = vmatprep.mubr.f32.mxu0 0.0
    %v1948 = vand.u32 %v1769, 4294901760
    %v1949 = vsub.f32 %v1769, %v1948
    %v1950 = vand.u32 %v1949, 4294901760
    %v1951 = vsub.f32 %v1949, %v1950
    %v1952 = vand.u32 %v1951, 4294901760
    %1953 = vmatmul.mubr.f32.gmra.mxu0 %v1952
    %v1954 = vpop.f32.mrf.mxu0
    %v1955 = vadd.f32 %v1708, %v1954
    %v1956 = vpop.f32.mrf.mxu0
    %1957 = vmatprep.mubr.f32.mxu0 0.0
    %v1958 = vand.u32 %v1772, 4294901760
    %v1959 = vsub.f32 %v1772, %v1958
    %v1960 = vand.u32 %v1959, 4294901760
    %v1961 = vsub.f32 %v1959, %v1960
    %v1962 = vand.u32 %v1961, 4294901760
    %1963 = vmatmul.mubr.f32.gmra.mxu0 %v1962
    %v1964 = vpop.f32.mrf.mxu0
    %v1965 = vadd.f32 %v1713, %v1964
    %v1966 = vpop.f32.mrf.mxu0
    %1967 = vmatprep.mubr.f32.mxu0 0.0
    %v1968 = vand.u32 %v1775, 4294901760
    %v1969 = vsub.f32 %v1775, %v1968
    %v1970 = vand.u32 %v1969, 4294901760
    %v1971 = vsub.f32 %v1969, %v1970
    %v1972 = vand.u32 %v1971, 4294901760
    %1973 = vmatmul.mubr.f32.gmra.mxu0 %v1972
    %v1974 = vpop.f32.mrf.mxu0
    %v1975 = vadd.f32 %v1718, %v1974
    %v1976 = vpop.f32.mrf.mxu0
    %1977 = vmatprep.mubr.f32.mxu0 0.0
    %v1978 = vand.u32 %v1778, 4294901760
    %v1979 = vsub.f32 %v1778, %v1978
    %v1980 = vand.u32 %v1979, 4294901760
    %v1981 = vsub.f32 %v1979, %v1980
    %v1982 = vand.u32 %v1981, 4294901760
    %1983 = vmatmul.mubr.f32.gmra.mxu0 %v1982
    %v1984 = vpop.f32.mrf.mxu0
    %v1985 = vadd.f32 %v1723, %v1984
    %v1986 = vpop.f32.mrf.mxu0
    %1987 = vmatprep.mubr.f32.mxu0 0.0
    %v1988 = vand.u32 %v1781, 4294901760
    %v1989 = vsub.f32 %v1781, %v1988
    %v1990 = vand.u32 %v1989, 4294901760
    %v1991 = vsub.f32 %v1989, %v1990
    %v1992 = vand.u32 %v1991, 4294901760
    %1993 = vmatmul.mubr.f32.gmra.mxu0 %v1992
    %v1994 = vpop.f32.mrf.mxu0
    %v1995 = vadd.f32 %v1728, %v1994
    %v1996 = vpop.f32.mrf.mxu0
    %1997 = vmatprep.mubr.f32.mxu0 0.0
    %v1998 = vand.u32 %v1784, 4294901760
    %v1999 = vsub.f32 %v1784, %v1998
    %v2000 = vand.u32 %v1999, 4294901760
    %v2001 = vsub.f32 %v1999, %v2000
    %v2002 = vand.u32 %v2001, 4294901760
    %2003 = vmatmul.mubr.f32.gmra.mxu0 %v2002
    %v2004 = vpop.f32.mrf.mxu0
    %v2005 = vadd.f32 %v1733, %v2004
    %v2006 = vpop.f32.mrf.mxu0
    %2007 = vmatprep.mubr.f32.mxu0 0.0
    %v2008 = vand.u32 %v1787, 4294901760
    %v2009 = vsub.f32 %v1787, %v2008
    %v2010 = vand.u32 %v2009, 4294901760
    %v2011 = vsub.f32 %v2009, %v2010
    %v2012 = vand.u32 %v2011, 4294901760
    %2013 = vmatmul.mubr.f32.gmra.mxu0 %v2012
    %v2014 = vpop.f32.mrf.mxu0
    %v2015 = vadd.f32 %v1738, %v2014
    %v2016 = vpop.f32.mrf.mxu0
    %2017 = vdwg.mxu0
    %2018 = vmatprep.subr.mxu0 0.0
    %2019 = vmatpush1.msra.mxu0 0.0
    %2020 = vmatprep.subr.mxu0 0.0
    %2021 = vmatpush1.msra.mxu0 0.0
    %2022 = vmatprep.subr.mxu0 0.0
    %2023 = vmatpush1.msra.mxu0 0.0
    %2024 = vmatprep.subr.mxu0 0.0
    %2025 = vmatpush1.msra.mxu0 0.0
    %2026 = vmatprep.subr.mxu0 0.0
    %2027 = vmatpush1.msra.mxu0 0.0
    %2028 = vmatprep.subr.mxu0 0.0
    %2029 = vmatpush1.msra.mxu0 0.0
    %2030 = vmatprep.subr.mxu0 0.0
    %2031 = vmatpush1.msra.mxu0 0.0
    %2032 = vmatprep.subr.mxu0 0.0
    %2033 = vmatpush1.msra.mxu0 0.0
    %2034 = vmatprep.subr.mxu0 0.0
    %2035 = vmatpush1.msra.mxu0 0.0
    %2036 = vmatprep.subr.mxu0 0.0
    %2037 = vmatpush1.msra.mxu0 0.0
    %2038 = vmatprep.subr.mxu0 0.0
    %2039 = vmatpush1.msra.mxu0 0.0
    %2040 = vmatprep.subr.mxu0 0.0
    %2041 = vmatpush1.msra.mxu0 0.0
    %2042 = vmatprep.subr.mxu0 0.0
    %v2043 = vand.u32 %v1659, 4294901760
    %v2044 = vsub.f32 %v1659, %v2043
    %v2045 = vand.u32 %v2044, 4294901760
    %v2046 = vsub.f32 %v2044, %v2045
    %v2047 = vand.u32 %v2046, 4294901760
    %2048 = vmatpush1.msra.mxu0 %v2047
    %2049 = vmatprep.subr.mxu0 0.0
    %v2050 = vand.u32 %v1658, 4294901760
    %v2051 = vsub.f32 %v1658, %v2050
    %v2052 = vand.u32 %v2051, 4294901760
    %v2053 = vsub.f32 %v2051, %v2052
    %v2054 = vand.u32 %v2053, 4294901760
    %2055 = vmatpush1.msra.mxu0 %v2054
    %2056 = vmatprep.subr.mxu0 0.0
    %v2057 = vand.u32 %v1657, 4294901760
    %v2058 = vsub.f32 %v1657, %v2057
    %v2059 = vand.u32 %v2058, 4294901760
    %v2060 = vsub.f32 %v2058, %v2059
    %v2061 = vand.u32 %v2060, 4294901760
    %2062 = vmatpush1.msra.mxu0 %v2061
    %2063 = vmatprep.subr.mxu0 0.0
    %v2064 = vand.u32 %v1656, 4294901760
    %v2065 = vsub.f32 %v1656, %v2064
    %v2066 = vand.u32 %v2065, 4294901760
    %v2067 = vsub.f32 %v2065, %v2066
    %v2068 = vand.u32 %v2067, 4294901760
    %2069 = vmatpush1.msra.mxu0 %v2068
    %2070 = vmatprep.subr.mxu0 0.0
    %2071 = vmatpush2.msra.mxu0 0.0
    %2072 = vmatprep.subr.mxu0 0.0
    %2073 = vmatpush2.msra.mxu0 0.0
    %2074 = vmatprep.subr.mxu0 0.0
    %2075 = vmatpush2.msra.mxu0 0.0
    %2076 = vmatprep.subr.mxu0 0.0
    %2077 = vmatpush2.msra.mxu0 0.0
    %2078 = vmatprep.subr.mxu0 0.0
    %2079 = vmatpush2.msra.mxu0 0.0
    %2080 = vmatprep.subr.mxu0 0.0
    %2081 = vmatpush2.msra.mxu0 0.0
    %2082 = vmatprep.subr.mxu0 0.0
    %2083 = vmatpush2.msra.mxu0 0.0
    %2084 = vmatprep.subr.mxu0 0.0
    %2085 = vmatpush2.msra.mxu0 0.0
    %2086 = vmatprep.subr.mxu0 0.0
    %2087 = vmatpush2.msra.mxu0 0.0
    %2088 = vmatprep.subr.mxu0 0.0
    %2089 = vmatpush2.msra.mxu0 0.0
    %2090 = vmatprep.subr.mxu0 0.0
    %2091 = vmatpush2.msra.mxu0 0.0
    %2092 = vmatprep.subr.mxu0 0.0
    %2093 = vmatpush2.msra.mxu0 0.0
    %2094 = vmatprep.subr.mxu0 0.0
    %2095 = vmatpush2.msra.mxu0 0.0
    %2096 = vmatprep.subr.mxu0 0.0
    %2097 = vmatpush2.msra.mxu0 0.0
    %2098 = vmatprep.subr.mxu0 0.0
    %2099 = vmatpush2.msra.mxu0 0.0
    %2100 = vmatprep.subr.mxu0 0.0
    %2101 = vmatpush2.msra.mxu0 0.0
    %2102 = vmatprep.mubr.f32.mxu0 0.0
    %v2103 = vand.u32 %v1742, 4294901760
    %2104 = vmatmul.mubr.f32.gmra.mxu0 %v2103
    %v2105 = vpop.f32.mrf.mxu0
    %v2106 = vadd.f32 %v1865, %v2105
    %v2107 = vpop.f32.mrf.mxu0
    %2108 = vmatprep.mubr.f32.mxu0 0.0
    %v2109 = vand.u32 %v1745, 4294901760
    %2110 = vmatmul.mubr.f32.gmra.mxu0 %v2109
    %v2111 = vpop.f32.mrf.mxu0
    %v2112 = vadd.f32 %v1875, %v2111
    %v2113 = vpop.f32.mrf.mxu0
    %2114 = vmatprep.mubr.f32.mxu0 0.0
    %v2115 = vand.u32 %v1748, 4294901760
    %2116 = vmatmul.mubr.f32.gmra.mxu0 %v2115
    %v2117 = vpop.f32.mrf.mxu0
    %v2118 = vadd.f32 %v1885, %v2117
    %v2119 = vpop.f32.mrf.mxu0
    %2120 = vmatprep.mubr.f32.mxu0 0.0
    %v2121 = vand.u32 %v1751, 4294901760
    %2122 = vmatmul.mubr.f32.gmra.mxu0 %v2121
    %v2123 = vpop.f32.mrf.mxu0
    %v2124 = vadd.f32 %v1895, %v2123
    %v2125 = vpop.f32.mrf.mxu0
    %2126 = vmatprep.mubr.f32.mxu0 0.0
    %v2127 = vand.u32 %v1754, 4294901760
    %2128 = vmatmul.mubr.f32.gmra.mxu0 %v2127
    %v2129 = vpop.f32.mrf.mxu0
    %v2130 = vadd.f32 %v1905, %v2129
    %v2131 = vpop.f32.mrf.mxu0
    %2132 = vmatprep.mubr.f32.mxu0 0.0
    %v2133 = vand.u32 %v1757, 4294901760
    %2134 = vmatmul.mubr.f32.gmra.mxu0 %v2133
    %v2135 = vpop.f32.mrf.mxu0
    %v2136 = vadd.f32 %v1915, %v2135
    %v2137 = vpop.f32.mrf.mxu0
    %2138 = vmatprep.mubr.f32.mxu0 0.0
    %v2139 = vand.u32 %v1760, 4294901760
    %2140 = vmatmul.mubr.f32.gmra.mxu0 %v2139
    %v2141 = vpop.f32.mrf.mxu0
    %v2142 = vadd.f32 %v1925, %v2141
    %v2143 = vpop.f32.mrf.mxu0
    %2144 = vmatprep.mubr.f32.mxu0 0.0
    %v2145 = vand.u32 %v1763, 4294901760
    %2146 = vmatmul.mubr.f32.gmra.mxu0 %v2145
    %v2147 = vpop.f32.mrf.mxu0
    %v2148 = vadd.f32 %v1935, %v2147
    %v2149 = vpop.f32.mrf.mxu0
    %2150 = vmatprep.mubr.f32.mxu0 0.0
    %v2151 = vand.u32 %v1766, 4294901760
    %2152 = vmatmul.mubr.f32.gmra.mxu0 %v2151
    %v2153 = vpop.f32.mrf.mxu0
    %v2154 = vadd.f32 %v1945, %v2153
    %v2155 = vpop.f32.mrf.mxu0
    %2156 = vmatprep.mubr.f32.mxu0 0.0
    %v2157 = vand.u32 %v1769, 4294901760
    %2158 = vmatmul.mubr.f32.gmra.mxu0 %v2157
    %v2159 = vpop.f32.mrf.mxu0
    %v2160 = vadd.f32 %v1955, %v2159
    %v2161 = vpop.f32.mrf.mxu0
    %2162 = vmatprep.mubr.f32.mxu0 0.0
    %v2163 = vand.u32 %v1772, 4294901760
    %2164 = vmatmul.mubr.f32.gmra.mxu0 %v2163
    %v2165 = vpop.f32.mrf.mxu0
    %v2166 = vadd.f32 %v1965, %v2165
    %v2167 = vpop.f32.mrf.mxu0
    %2168 = vmatprep.mubr.f32.mxu0 0.0
    %v2169 = vand.u32 %v1775, 4294901760
    %2170 = vmatmul.mubr.f32.gmra.mxu0 %v2169
    %v2171 = vpop.f32.mrf.mxu0
    %v2172 = vadd.f32 %v1975, %v2171
    %v2173 = vpop.f32.mrf.mxu0
    %2174 = vmatprep.mubr.f32.mxu0 0.0
    %v2175 = vand.u32 %v1778, 4294901760
    %2176 = vmatmul.mubr.f32.gmra.mxu0 %v2175
    %v2177 = vpop.f32.mrf.mxu0
    %v2178 = vadd.f32 %v1985, %v2177
    %v2179 = vpop.f32.mrf.mxu0
    %2180 = vmatprep.mubr.f32.mxu0 0.0
    %v2181 = vand.u32 %v1781, 4294901760
    %2182 = vmatmul.mubr.f32.gmra.mxu0 %v2181
    %v2183 = vpop.f32.mrf.mxu0
    %v2184 = vadd.f32 %v1995, %v2183
    %v2185 = vpop.f32.mrf.mxu0
    %2186 = vmatprep.mubr.f32.mxu0 0.0
    %v2187 = vand.u32 %v1784, 4294901760
    %2188 = vmatmul.mubr.f32.gmra.mxu0 %v2187
    %v2189 = vpop.f32.mrf.mxu0
    %v2190 = vadd.f32 %v2005, %v2189
    %v2191 = vpop.f32.mrf.mxu0
    %2192 = vmatprep.mubr.f32.mxu0 0.0
    %v2193 = vand.u32 %v1787, 4294901760
    %2194 = vmatmul.mubr.f32.gmra.mxu0 %v2193
    %v2195 = vpop.f32.mrf.mxu0
    %v2196 = vadd.f32 %v2015, %v2195
    %v2197 = vpop.f32.mrf.mxu0
    %2198 = vdwg.mxu0
    %2199 = vmatprep.subr.mxu0 0.0
    %2200 = vmatpush1.msra.mxu0 0.0
    %2201 = vmatprep.subr.mxu0 0.0
    %2202 = vmatpush1.msra.mxu0 0.0
    %2203 = vmatprep.subr.mxu0 0.0
    %2204 = vmatpush1.msra.mxu0 0.0
    %2205 = vmatprep.subr.mxu0 0.0
    %2206 = vmatpush1.msra.mxu0 0.0
    %2207 = vmatprep.subr.mxu0 0.0
    %2208 = vmatpush1.msra.mxu0 0.0
    %2209 = vmatprep.subr.mxu0 0.0
    %2210 = vmatpush1.msra.mxu0 0.0
    %2211 = vmatprep.subr.mxu0 0.0
    %2212 = vmatpush1.msra.mxu0 0.0
    %2213 = vmatprep.subr.mxu0 0.0
    %2214 = vmatpush1.msra.mxu0 0.0
    %2215 = vmatprep.subr.mxu0 0.0
    %2216 = vmatpush1.msra.mxu0 0.0
    %2217 = vmatprep.subr.mxu0 0.0
    %2218 = vmatpush1.msra.mxu0 0.0
    %2219 = vmatprep.subr.mxu0 0.0
    %2220 = vmatpush1.msra.mxu0 0.0
    %2221 = vmatprep.subr.mxu0 0.0
    %2222 = vmatpush1.msra.mxu0 0.0
    %2223 = vmatprep.subr.mxu0 0.0
    %v2224 = vand.u32 %v1659, 4294901760
    %v2225 = vsub.f32 %v1659, %v2224
    %2226 = vmatpush1.msra.mxu0 %v2225
    %2227 = vmatprep.subr.mxu0 0.0
    %v2228 = vand.u32 %v1658, 4294901760
    %v2229 = vsub.f32 %v1658, %v2228
    %2230 = vmatpush1.msra.mxu0 %v2229
    %2231 = vmatprep.subr.mxu0 0.0
    %v2232 = vand.u32 %v1657, 4294901760
    %v2233 = vsub.f32 %v1657, %v2232
    %2234 = vmatpush1.msra.mxu0 %v2233
    %2235 = vmatprep.subr.mxu0 0.0
    %v2236 = vand.u32 %v1656, 4294901760
    %v2237 = vsub.f32 %v1656, %v2236
    %2238 = vmatpush1.msra.mxu0 %v2237
    %2239 = vmatprep.subr.mxu0 0.0
    %2240 = vmatpush2.msra.mxu0 0.0
    %2241 = vmatprep.subr.mxu0 0.0
    %2242 = vmatpush2.msra.mxu0 0.0
    %2243 = vmatprep.subr.mxu0 0.0
    %2244 = vmatpush2.msra.mxu0 0.0
    %2245 = vmatprep.subr.mxu0 0.0
    %2246 = vmatpush2.msra.mxu0 0.0
    %2247 = vmatprep.subr.mxu0 0.0
    %2248 = vmatpush2.msra.mxu0 0.0
    %2249 = vmatprep.subr.mxu0 0.0
    %2250 = vmatpush2.msra.mxu0 0.0
    %2251 = vmatprep.subr.mxu0 0.0
    %2252 = vmatpush2.msra.mxu0 0.0
    %2253 = vmatprep.subr.mxu0 0.0
    %2254 = vmatpush2.msra.mxu0 0.0
    %2255 = vmatprep.subr.mxu0 0.0
    %2256 = vmatpush2.msra.mxu0 0.0
    %2257 = vmatprep.subr.mxu0 0.0
    %2258 = vmatpush2.msra.mxu0 0.0
    %2259 = vmatprep.subr.mxu0 0.0
    %2260 = vmatpush2.msra.mxu0 0.0
    %2261 = vmatprep.subr.mxu0 0.0
    %2262 = vmatpush2.msra.mxu0 0.0
    %2263 = vmatprep.subr.mxu0 0.0
    %2264 = vmatpush2.msra.mxu0 0.0
    %2265 = vmatprep.subr.mxu0 0.0
    %2266 = vmatpush2.msra.mxu0 0.0
    %2267 = vmatprep.subr.mxu0 0.0
    %2268 = vmatpush2.msra.mxu0 0.0
    %2269 = vmatprep.subr.mxu0 0.0
    %2270 = vmatpush2.msra.mxu0 0.0
    %2271 = vmatprep.mubr.f32.mxu0 0.0
    %v2272 = vand.u32 %v1742, 4294901760
    %v2273 = vsub.f32 %v1742, %v2272
    %2274 = vmatmul.mubr.f32.gmra.mxu0 %v2273
    %v2275 = vpop.f32.mrf.mxu0
    %v2276 = vadd.f32 %v2106, %v2275
    %v2277 = vpop.f32.mrf.mxu0
    %2278 = vmatprep.mubr.f32.mxu0 0.0
    %v2279 = vand.u32 %v1745, 4294901760
    %v2280 = vsub.f32 %v1745, %v2279
    %2281 = vmatmul.mubr.f32.gmra.mxu0 %v2280
    %v2282 = vpop.f32.mrf.mxu0
    %v2283 = vadd.f32 %v2112, %v2282
    %v2284 = vpop.f32.mrf.mxu0
    %2285 = vmatprep.mubr.f32.mxu0 0.0
    %v2286 = vand.u32 %v1748, 4294901760
    %v2287 = vsub.f32 %v1748, %v2286
    %2288 = vmatmul.mubr.f32.gmra.mxu0 %v2287
    %v2289 = vpop.f32.mrf.mxu0
    %v2290 = vadd.f32 %v2118, %v2289
    %v2291 = vpop.f32.mrf.mxu0
    %2292 = vmatprep.mubr.f32.mxu0 0.0
    %v2293 = vand.u32 %v1751, 4294901760
    %v2294 = vsub.f32 %v1751, %v2293
    %2295 = vmatmul.mubr.f32.gmra.mxu0 %v2294
    %v2296 = vpop.f32.mrf.mxu0
    %v2297 = vadd.f32 %v2124, %v2296
    %v2298 = vpop.f32.mrf.mxu0
    %2299 = vmatprep.mubr.f32.mxu0 0.0
    %v2300 = vand.u32 %v1754, 4294901760
    %v2301 = vsub.f32 %v1754, %v2300
    %2302 = vmatmul.mubr.f32.gmra.mxu0 %v2301
    %v2303 = vpop.f32.mrf.mxu0
    %v2304 = vadd.f32 %v2130, %v2303
    %v2305 = vpop.f32.mrf.mxu0
    %2306 = vmatprep.mubr.f32.mxu0 0.0
    %v2307 = vand.u32 %v1757, 4294901760
    %v2308 = vsub.f32 %v1757, %v2307
    %2309 = vmatmul.mubr.f32.gmra.mxu0 %v2308
    %v2310 = vpop.f32.mrf.mxu0
    %v2311 = vadd.f32 %v2136, %v2310
    %v2312 = vpop.f32.mrf.mxu0
    %2313 = vmatprep.mubr.f32.mxu0 0.0
    %v2314 = vand.u32 %v1760, 4294901760
    %v2315 = vsub.f32 %v1760, %v2314
    %2316 = vmatmul.mubr.f32.gmra.mxu0 %v2315
    %v2317 = vpop.f32.mrf.mxu0
    %v2318 = vadd.f32 %v2142, %v2317
    %v2319 = vpop.f32.mrf.mxu0
    %2320 = vmatprep.mubr.f32.mxu0 0.0
    %v2321 = vand.u32 %v1763, 4294901760
    %v2322 = vsub.f32 %v1763, %v2321
    %2323 = vmatmul.mubr.f32.gmra.mxu0 %v2322
    %v2324 = vpop.f32.mrf.mxu0
    %v2325 = vadd.f32 %v2148, %v2324
    %v2326 = vpop.f32.mrf.mxu0
    %2327 = vmatprep.mubr.f32.mxu0 0.0
    %v2328 = vand.u32 %v1766, 4294901760
    %v2329 = vsub.f32 %v1766, %v2328
    %2330 = vmatmul.mubr.f32.gmra.mxu0 %v2329
    %v2331 = vpop.f32.mrf.mxu0
    %v2332 = vadd.f32 %v2154, %v2331
    %v2333 = vpop.f32.mrf.mxu0
    %2334 = vmatprep.mubr.f32.mxu0 0.0
    %v2335 = vand.u32 %v1769, 4294901760
    %v2336 = vsub.f32 %v1769, %v2335
    %2337 = vmatmul.mubr.f32.gmra.mxu0 %v2336
    %v2338 = vpop.f32.mrf.mxu0
    %v2339 = vadd.f32 %v2160, %v2338
    %v2340 = vpop.f32.mrf.mxu0
    %2341 = vmatprep.mubr.f32.mxu0 0.0
    %v2342 = vand.u32 %v1772, 4294901760
    %v2343 = vsub.f32 %v1772, %v2342
    %2344 = vmatmul.mubr.f32.gmra.mxu0 %v2343
    %v2345 = vpop.f32.mrf.mxu0
    %v2346 = vadd.f32 %v2166, %v2345
    %v2347 = vpop.f32.mrf.mxu0
    %2348 = vmatprep.mubr.f32.mxu0 0.0
    %v2349 = vand.u32 %v1775, 4294901760
    %v2350 = vsub.f32 %v1775, %v2349
    %2351 = vmatmul.mubr.f32.gmra.mxu0 %v2350
    %v2352 = vpop.f32.mrf.mxu0
    %v2353 = vadd.f32 %v2172, %v2352
    %v2354 = vpop.f32.mrf.mxu0
    %2355 = vmatprep.mubr.f32.mxu0 0.0
    %v2356 = vand.u32 %v1778, 4294901760
    %v2357 = vsub.f32 %v1778, %v2356
    %2358 = vmatmul.mubr.f32.gmra.mxu0 %v2357
    %v2359 = vpop.f32.mrf.mxu0
    %v2360 = vadd.f32 %v2178, %v2359
    %v2361 = vpop.f32.mrf.mxu0
    %2362 = vmatprep.mubr.f32.mxu0 0.0
    %v2363 = vand.u32 %v1781, 4294901760
    %v2364 = vsub.f32 %v1781, %v2363
    %2365 = vmatmul.mubr.f32.gmra.mxu0 %v2364
    %v2366 = vpop.f32.mrf.mxu0
    %v2367 = vadd.f32 %v2184, %v2366
    %v2368 = vpop.f32.mrf.mxu0
    %2369 = vmatprep.mubr.f32.mxu0 0.0
    %v2370 = vand.u32 %v1784, 4294901760
    %v2371 = vsub.f32 %v1784, %v2370
    %2372 = vmatmul.mubr.f32.gmra.mxu0 %v2371
    %v2373 = vpop.f32.mrf.mxu0
    %v2374 = vadd.f32 %v2190, %v2373
    %v2375 = vpop.f32.mrf.mxu0
    %2376 = vmatprep.mubr.f32.mxu0 0.0
    %v2377 = vand.u32 %v1787, 4294901760
    %v2378 = vsub.f32 %v1787, %v2377
    %2379 = vmatmul.mubr.f32.gmra.mxu0 %v2378
    %v2380 = vpop.f32.mrf.mxu0
    %v2381 = vadd.f32 %v2196, %v2380
    %v2382 = vpop.f32.mrf.mxu0
    %2383 = vdwg.mxu0
    %2384 = vmatprep.subr.mxu0 0.0
    %2385 = vmatpush1.msra.mxu0 0.0
    %2386 = vmatprep.subr.mxu0 0.0
    %2387 = vmatpush1.msra.mxu0 0.0
    %2388 = vmatprep.subr.mxu0 0.0
    %2389 = vmatpush1.msra.mxu0 0.0
    %2390 = vmatprep.subr.mxu0 0.0
    %2391 = vmatpush1.msra.mxu0 0.0
    %2392 = vmatprep.subr.mxu0 0.0
    %2393 = vmatpush1.msra.mxu0 0.0
    %2394 = vmatprep.subr.mxu0 0.0
    %2395 = vmatpush1.msra.mxu0 0.0
    %2396 = vmatprep.subr.mxu0 0.0
    %2397 = vmatpush1.msra.mxu0 0.0
    %2398 = vmatprep.subr.mxu0 0.0
    %2399 = vmatpush1.msra.mxu0 0.0
    %2400 = vmatprep.subr.mxu0 0.0
    %2401 = vmatpush1.msra.mxu0 0.0
    %2402 = vmatprep.subr.mxu0 0.0
    %2403 = vmatpush1.msra.mxu0 0.0
    %2404 = vmatprep.subr.mxu0 0.0
    %2405 = vmatpush1.msra.mxu0 0.0
    %2406 = vmatprep.subr.mxu0 0.0
    %2407 = vmatpush1.msra.mxu0 0.0
    %2408 = vmatprep.subr.mxu0 0.0
    %v2409 = vand.u32 %v1659, 4294901760
    %2410 = vmatpush1.msra.mxu0 %v2409
    %2411 = vmatprep.subr.mxu0 0.0
    %v2412 = vand.u32 %v1658, 4294901760
    %2413 = vmatpush1.msra.mxu0 %v2412
    %2414 = vmatprep.subr.mxu0 0.0
    %v2415 = vand.u32 %v1657, 4294901760
    %2416 = vmatpush1.msra.mxu0 %v2415
    %2417 = vmatprep.subr.mxu0 0.0
    %v2418 = vand.u32 %v1656, 4294901760
    %2419 = vmatpush1.msra.mxu0 %v2418
    %2420 = vmatprep.subr.mxu0 0.0
    %2421 = vmatpush2.msra.mxu0 0.0
    %2422 = vmatprep.subr.mxu0 0.0
    %2423 = vmatpush2.msra.mxu0 0.0
    %2424 = vmatprep.subr.mxu0 0.0
    %2425 = vmatpush2.msra.mxu0 0.0
    %2426 = vmatprep.subr.mxu0 0.0
    %2427 = vmatpush2.msra.mxu0 0.0
    %2428 = vmatprep.subr.mxu0 0.0
    %2429 = vmatpush2.msra.mxu0 0.0
    %2430 = vmatprep.subr.mxu0 0.0
    %2431 = vmatpush2.msra.mxu0 0.0
    %2432 = vmatprep.subr.mxu0 0.0
    %2433 = vmatpush2.msra.mxu0 0.0
    %2434 = vmatprep.subr.mxu0 0.0
    %2435 = vmatpush2.msra.mxu0 0.0
    %2436 = vmatprep.subr.mxu0 0.0
    %2437 = vmatpush2.msra.mxu0 0.0
    %2438 = vmatprep.subr.mxu0 0.0
    %2439 = vmatpush2.msra.mxu0 0.0
    %2440 = vmatprep.subr.mxu0 0.0
    %2441 = vmatpush2.msra.mxu0 0.0
    %2442 = vmatprep.subr.mxu0 0.0
    %2443 = vmatpush2.msra.mxu0 0.0
    %2444 = vmatprep.subr.mxu0 0.0
    %2445 = vmatpush2.msra.mxu0 0.0
    %2446 = vmatprep.subr.mxu0 0.0
    %2447 = vmatpush2.msra.mxu0 0.0
    %2448 = vmatprep.subr.mxu0 0.0
    %2449 = vmatpush2.msra.mxu0 0.0
    %2450 = vmatprep.subr.mxu0 0.0
    %2451 = vmatpush2.msra.mxu0 0.0
    %2452 = vmatprep.mubr.f32.mxu0 0.0
    %v2453 = vand.u32 %v1742, 4294901760
    %v2454 = vsub.f32 %v1742, %v2453
    %v2455 = vand.u32 %v2454, 4294901760
    %2456 = vmatmul.mubr.f32.gmra.mxu0 %v2455
    %v2457 = vpop.f32.mrf.mxu0
    %v2458 = vadd.f32 %v2276, %v2457
    %v2459 = vpop.f32.mrf.mxu0
    %2460 = vmatprep.mubr.f32.mxu0 0.0
    %v2461 = vand.u32 %v1745, 4294901760
    %v2462 = vsub.f32 %v1745, %v2461
    %v2463 = vand.u32 %v2462, 4294901760
    %2464 = vmatmul.mubr.f32.gmra.mxu0 %v2463
    %v2465 = vpop.f32.mrf.mxu0
    %v2466 = vadd.f32 %v2283, %v2465
    %v2467 = vpop.f32.mrf.mxu0
    %2468 = vmatprep.mubr.f32.mxu0 0.0
    %v2469 = vand.u32 %v1748, 4294901760
    %v2470 = vsub.f32 %v1748, %v2469
    %v2471 = vand.u32 %v2470, 4294901760
    %2472 = vmatmul.mubr.f32.gmra.mxu0 %v2471
    %v2473 = vpop.f32.mrf.mxu0
    %v2474 = vadd.f32 %v2290, %v2473
    %v2475 = vpop.f32.mrf.mxu0
    %2476 = vmatprep.mubr.f32.mxu0 0.0
    %v2477 = vand.u32 %v1751, 4294901760
    %v2478 = vsub.f32 %v1751, %v2477
    %v2479 = vand.u32 %v2478, 4294901760
    %2480 = vmatmul.mubr.f32.gmra.mxu0 %v2479
    %v2481 = vpop.f32.mrf.mxu0
    %v2482 = vadd.f32 %v2297, %v2481
    %v2483 = vpop.f32.mrf.mxu0
    %2484 = vmatprep.mubr.f32.mxu0 0.0
    %v2485 = vand.u32 %v1754, 4294901760
    %v2486 = vsub.f32 %v1754, %v2485
    %v2487 = vand.u32 %v2486, 4294901760
    %2488 = vmatmul.mubr.f32.gmra.mxu0 %v2487
    %v2489 = vpop.f32.mrf.mxu0
    %v2490 = vadd.f32 %v2304, %v2489
    %v2491 = vpop.f32.mrf.mxu0
    %2492 = vmatprep.mubr.f32.mxu0 0.0
    %v2493 = vand.u32 %v1757, 4294901760
    %v2494 = vsub.f32 %v1757, %v2493
    %v2495 = vand.u32 %v2494, 4294901760
    %2496 = vmatmul.mubr.f32.gmra.mxu0 %v2495
    %v2497 = vpop.f32.mrf.mxu0
    %v2498 = vadd.f32 %v2311, %v2497
    %v2499 = vpop.f32.mrf.mxu0
    %2500 = vmatprep.mubr.f32.mxu0 0.0
    %v2501 = vand.u32 %v1760, 4294901760
    %v2502 = vsub.f32 %v1760, %v2501
    %v2503 = vand.u32 %v2502, 4294901760
    %2504 = vmatmul.mubr.f32.gmra.mxu0 %v2503
    %v2505 = vpop.f32.mrf.mxu0
    %v2506 = vadd.f32 %v2318, %v2505
    %v2507 = vpop.f32.mrf.mxu0
    %2508 = vmatprep.mubr.f32.mxu0 0.0
    %v2509 = vand.u32 %v1763, 4294901760
    %v2510 = vsub.f32 %v1763, %v2509
    %v2511 = vand.u32 %v2510, 4294901760
    %2512 = vmatmul.mubr.f32.gmra.mxu0 %v2511
    %v2513 = vpop.f32.mrf.mxu0
    %v2514 = vadd.f32 %v2325, %v2513
    %v2515 = vpop.f32.mrf.mxu0
    %2516 = vmatprep.mubr.f32.mxu0 0.0
    %v2517 = vand.u32 %v1766, 4294901760
    %v2518 = vsub.f32 %v1766, %v2517
    %v2519 = vand.u32 %v2518, 4294901760
    %2520 = vmatmul.mubr.f32.gmra.mxu0 %v2519
    %v2521 = vpop.f32.mrf.mxu0
    %v2522 = vadd.f32 %v2332, %v2521
    %v2523 = vpop.f32.mrf.mxu0
    %2524 = vmatprep.mubr.f32.mxu0 0.0
    %v2525 = vand.u32 %v1769, 4294901760
    %v2526 = vsub.f32 %v1769, %v2525
    %v2527 = vand.u32 %v2526, 4294901760
    %2528 = vmatmul.mubr.f32.gmra.mxu0 %v2527
    %v2529 = vpop.f32.mrf.mxu0
    %v2530 = vadd.f32 %v2339, %v2529
    %v2531 = vpop.f32.mrf.mxu0
    %2532 = vmatprep.mubr.f32.mxu0 0.0
    %v2533 = vand.u32 %v1772, 4294901760
    %v2534 = vsub.f32 %v1772, %v2533
    %v2535 = vand.u32 %v2534, 4294901760
    %2536 = vmatmul.mubr.f32.gmra.mxu0 %v2535
    %v2537 = vpop.f32.mrf.mxu0
    %v2538 = vadd.f32 %v2346, %v2537
    %v2539 = vpop.f32.mrf.mxu0
    %2540 = vmatprep.mubr.f32.mxu0 0.0
    %v2541 = vand.u32 %v1775, 4294901760
    %v2542 = vsub.f32 %v1775, %v2541
    %v2543 = vand.u32 %v2542, 4294901760
    %2544 = vmatmul.mubr.f32.gmra.mxu0 %v2543
    %v2545 = vpop.f32.mrf.mxu0
    %v2546 = vadd.f32 %v2353, %v2545
    %v2547 = vpop.f32.mrf.mxu0
    %2548 = vmatprep.mubr.f32.mxu0 0.0
    %v2549 = vand.u32 %v1778, 4294901760
    %v2550 = vsub.f32 %v1778, %v2549
    %v2551 = vand.u32 %v2550, 4294901760
    %2552 = vmatmul.mubr.f32.gmra.mxu0 %v2551
    %v2553 = vpop.f32.mrf.mxu0
    %v2554 = vadd.f32 %v2360, %v2553
    %v2555 = vpop.f32.mrf.mxu0
    %2556 = vmatprep.mubr.f32.mxu0 0.0
    %v2557 = vand.u32 %v1781, 4294901760
    %v2558 = vsub.f32 %v1781, %v2557
    %v2559 = vand.u32 %v2558, 4294901760
    %2560 = vmatmul.mubr.f32.gmra.mxu0 %v2559
    %v2561 = vpop.f32.mrf.mxu0
    %v2562 = vadd.f32 %v2367, %v2561
    %v2563 = vpop.f32.mrf.mxu0
    %2564 = vmatprep.mubr.f32.mxu0 0.0
    %v2565 = vand.u32 %v1784, 4294901760
    %v2566 = vsub.f32 %v1784, %v2565
    %v2567 = vand.u32 %v2566, 4294901760
    %2568 = vmatmul.mubr.f32.gmra.mxu0 %v2567
    %v2569 = vpop.f32.mrf.mxu0
    %v2570 = vadd.f32 %v2374, %v2569
    %v2571 = vpop.f32.mrf.mxu0
    %2572 = vmatprep.mubr.f32.mxu0 0.0
    %v2573 = vand.u32 %v1787, 4294901760
    %v2574 = vsub.f32 %v1787, %v2573
    %v2575 = vand.u32 %v2574, 4294901760
    %2576 = vmatmul.mubr.f32.gmra.mxu0 %v2575
    %v2577 = vpop.f32.mrf.mxu0
    %v2578 = vadd.f32 %v2381, %v2577
    %v2579 = vpop.f32.mrf.mxu0
    %2580 = vdwg.mxu0
    %2581 = vmatprep.subr.mxu0 0.0
    %2582 = vmatpush1.msra.mxu0 0.0
    %2583 = vmatprep.subr.mxu0 0.0
    %2584 = vmatpush1.msra.mxu0 0.0
    %2585 = vmatprep.subr.mxu0 0.0
    %2586 = vmatpush1.msra.mxu0 0.0
    %2587 = vmatprep.subr.mxu0 0.0
    %2588 = vmatpush1.msra.mxu0 0.0
    %2589 = vmatprep.subr.mxu0 0.0
    %2590 = vmatpush1.msra.mxu0 0.0
    %2591 = vmatprep.subr.mxu0 0.0
    %2592 = vmatpush1.msra.mxu0 0.0
    %2593 = vmatprep.subr.mxu0 0.0
    %2594 = vmatpush1.msra.mxu0 0.0
    %2595 = vmatprep.subr.mxu0 0.0
    %2596 = vmatpush1.msra.mxu0 0.0
    %2597 = vmatprep.subr.mxu0 0.0
    %2598 = vmatpush1.msra.mxu0 0.0
    %2599 = vmatprep.subr.mxu0 0.0
    %2600 = vmatpush1.msra.mxu0 0.0
    %2601 = vmatprep.subr.mxu0 0.0
    %2602 = vmatpush1.msra.mxu0 0.0
    %2603 = vmatprep.subr.mxu0 0.0
    %2604 = vmatpush1.msra.mxu0 0.0
    %2605 = vmatprep.subr.mxu0 0.0
    %v2606 = vand.u32 %v1659, 4294901760
    %v2607 = vsub.f32 %v1659, %v2606
    %v2608 = vand.u32 %v2607, 4294901760
    %2609 = vmatpush1.msra.mxu0 %v2608
    %2610 = vmatprep.subr.mxu0 0.0
    %v2611 = vand.u32 %v1658, 4294901760
    %v2612 = vsub.f32 %v1658, %v2611
    %v2613 = vand.u32 %v2612, 4294901760
    %2614 = vmatpush1.msra.mxu0 %v2613
    %2615 = vmatprep.subr.mxu0 0.0
    %v2616 = vand.u32 %v1657, 4294901760
    %v2617 = vsub.f32 %v1657, %v2616
    %v2618 = vand.u32 %v2617, 4294901760
    %2619 = vmatpush1.msra.mxu0 %v2618
    %2620 = vmatprep.subr.mxu0 0.0
    %v2621 = vand.u32 %v1656, 4294901760
    %v2622 = vsub.f32 %v1656, %v2621
    %v2623 = vand.u32 %v2622, 4294901760
    %2624 = vmatpush1.msra.mxu0 %v2623
    %2625 = vmatprep.subr.mxu0 0.0
    %2626 = vmatpush2.msra.mxu0 0.0
    %2627 = vmatprep.subr.mxu0 0.0
    %2628 = vmatpush2.msra.mxu0 0.0
    %2629 = vmatprep.subr.mxu0 0.0
    %2630 = vmatpush2.msra.mxu0 0.0
    %2631 = vmatprep.subr.mxu0 0.0
    %2632 = vmatpush2.msra.mxu0 0.0
    %2633 = vmatprep.subr.mxu0 0.0
    %2634 = vmatpush2.msra.mxu0 0.0
    %2635 = vmatprep.subr.mxu0 0.0
    %2636 = vmatpush2.msra.mxu0 0.0
    %2637 = vmatprep.subr.mxu0 0.0
    %2638 = vmatpush2.msra.mxu0 0.0
    %2639 = vmatprep.subr.mxu0 0.0
    %2640 = vmatpush2.msra.mxu0 0.0
    %2641 = vmatprep.subr.mxu0 0.0
    %2642 = vmatpush2.msra.mxu0 0.0
    %2643 = vmatprep.subr.mxu0 0.0
    %2644 = vmatpush2.msra.mxu0 0.0
    %2645 = vmatprep.subr.mxu0 0.0
    %2646 = vmatpush2.msra.mxu0 0.0
    %2647 = vmatprep.subr.mxu0 0.0
    %2648 = vmatpush2.msra.mxu0 0.0
    %2649 = vmatprep.subr.mxu0 0.0
    %2650 = vmatpush2.msra.mxu0 0.0
    %2651 = vmatprep.subr.mxu0 0.0
    %2652 = vmatpush2.msra.mxu0 0.0
    %2653 = vmatprep.subr.mxu0 0.0
    %2654 = vmatpush2.msra.mxu0 0.0
    %2655 = vmatprep.subr.mxu0 0.0
    %2656 = vmatpush2.msra.mxu0 0.0
    %2657 = vmatprep.mubr.f32.mxu0 0.0
    %v2658 = vand.u32 %v1742, 4294901760
    %2659 = vmatmul.mubr.f32.gmra.mxu0 %v2658
    %v2660 = vpop.f32.mrf.mxu0
    %v2661 = vadd.f32 %v2458, %v2660
    %v2662 = vpop.f32.mrf.mxu0
    %2663 = vmatprep.mubr.f32.mxu0 0.0
    %v2664 = vand.u32 %v1745, 4294901760
    %2665 = vmatmul.mubr.f32.gmra.mxu0 %v2664
    %v2666 = vpop.f32.mrf.mxu0
    %v2667 = vadd.f32 %v2466, %v2666
    %v2668 = vpop.f32.mrf.mxu0
    %2669 = vmatprep.mubr.f32.mxu0 0.0
    %v2670 = vand.u32 %v1748, 4294901760
    %2671 = vmatmul.mubr.f32.gmra.mxu0 %v2670
    %v2672 = vpop.f32.mrf.mxu0
    %v2673 = vadd.f32 %v2474, %v2672
    %v2674 = vpop.f32.mrf.mxu0
    %2675 = vmatprep.mubr.f32.mxu0 0.0
    %v2676 = vand.u32 %v1751, 4294901760
    %2677 = vmatmul.mubr.f32.gmra.mxu0 %v2676
    %v2678 = vpop.f32.mrf.mxu0
    %v2679 = vadd.f32 %v2482, %v2678
    %v2680 = vpop.f32.mrf.mxu0
    %2681 = vmatprep.mubr.f32.mxu0 0.0
    %v2682 = vand.u32 %v1754, 4294901760
    %2683 = vmatmul.mubr.f32.gmra.mxu0 %v2682
    %v2684 = vpop.f32.mrf.mxu0
    %v2685 = vadd.f32 %v2490, %v2684
    %v2686 = vpop.f32.mrf.mxu0
    %2687 = vmatprep.mubr.f32.mxu0 0.0
    %v2688 = vand.u32 %v1757, 4294901760
    %2689 = vmatmul.mubr.f32.gmra.mxu0 %v2688
    %v2690 = vpop.f32.mrf.mxu0
    %v2691 = vadd.f32 %v2498, %v2690
    %v2692 = vpop.f32.mrf.mxu0
    %2693 = vmatprep.mubr.f32.mxu0 0.0
    %v2694 = vand.u32 %v1760, 4294901760
    %2695 = vmatmul.mubr.f32.gmra.mxu0 %v2694
    %v2696 = vpop.f32.mrf.mxu0
    %v2697 = vadd.f32 %v2506, %v2696
    %v2698 = vpop.f32.mrf.mxu0
    %2699 = vmatprep.mubr.f32.mxu0 0.0
    %v2700 = vand.u32 %v1763, 4294901760
    %2701 = vmatmul.mubr.f32.gmra.mxu0 %v2700
    %v2702 = vpop.f32.mrf.mxu0
    %v2703 = vadd.f32 %v2514, %v2702
    %v2704 = vpop.f32.mrf.mxu0
    %2705 = vmatprep.mubr.f32.mxu0 0.0
    %v2706 = vand.u32 %v1766, 4294901760
    %2707 = vmatmul.mubr.f32.gmra.mxu0 %v2706
    %v2708 = vpop.f32.mrf.mxu0
    %v2709 = vadd.f32 %v2522, %v2708
    %v2710 = vpop.f32.mrf.mxu0
    %2711 = vmatprep.mubr.f32.mxu0 0.0
    %v2712 = vand.u32 %v1769, 4294901760
    %2713 = vmatmul.mubr.f32.gmra.mxu0 %v2712
    %v2714 = vpop.f32.mrf.mxu0
    %v2715 = vadd.f32 %v2530, %v2714
    %v2716 = vpop.f32.mrf.mxu0
    %2717 = vmatprep.mubr.f32.mxu0 0.0
    %v2718 = vand.u32 %v1772, 4294901760
    %2719 = vmatmul.mubr.f32.gmra.mxu0 %v2718
    %v2720 = vpop.f32.mrf.mxu0
    %v2721 = vadd.f32 %v2538, %v2720
    %v2722 = vpop.f32.mrf.mxu0
    %2723 = vmatprep.mubr.f32.mxu0 0.0
    %v2724 = vand.u32 %v1775, 4294901760
    %2725 = vmatmul.mubr.f32.gmra.mxu0 %v2724
    %v2726 = vpop.f32.mrf.mxu0
    %v2727 = vadd.f32 %v2546, %v2726
    %v2728 = vpop.f32.mrf.mxu0
    %2729 = vmatprep.mubr.f32.mxu0 0.0
    %v2730 = vand.u32 %v1778, 4294901760
    %2731 = vmatmul.mubr.f32.gmra.mxu0 %v2730
    %v2732 = vpop.f32.mrf.mxu0
    %v2733 = vadd.f32 %v2554, %v2732
    %v2734 = vpop.f32.mrf.mxu0
    %2735 = vmatprep.mubr.f32.mxu0 0.0
    %v2736 = vand.u32 %v1781, 4294901760
    %2737 = vmatmul.mubr.f32.gmra.mxu0 %v2736
    %v2738 = vpop.f32.mrf.mxu0
    %v2739 = vadd.f32 %v2562, %v2738
    %v2740 = vpop.f32.mrf.mxu0
    %2741 = vmatprep.mubr.f32.mxu0 0.0
    %v2742 = vand.u32 %v1784, 4294901760
    %2743 = vmatmul.mubr.f32.gmra.mxu0 %v2742
    %v2744 = vpop.f32.mrf.mxu0
    %v2745 = vadd.f32 %v2570, %v2744
    %v2746 = vpop.f32.mrf.mxu0
    %2747 = vmatprep.mubr.f32.mxu0 0.0
    %v2748 = vand.u32 %v1787, 4294901760
    %2749 = vmatmul.mubr.f32.gmra.mxu0 %v2748
    %v2750 = vpop.f32.mrf.mxu0
    %v2751 = vadd.f32 %v2578, %v2750
    %v2752 = vpop.f32.mrf.mxu0
    %2753 = vdwg.mxu0
    %2754 = vmatprep.subr.mxu0 0.0
    %2755 = vmatpush1.msra.mxu0 0.0
    %2756 = vmatprep.subr.mxu0 0.0
    %2757 = vmatpush1.msra.mxu0 0.0
    %2758 = vmatprep.subr.mxu0 0.0
    %2759 = vmatpush1.msra.mxu0 0.0
    %2760 = vmatprep.subr.mxu0 0.0
    %2761 = vmatpush1.msra.mxu0 0.0
    %2762 = vmatprep.subr.mxu0 0.0
    %2763 = vmatpush1.msra.mxu0 0.0
    %2764 = vmatprep.subr.mxu0 0.0
    %2765 = vmatpush1.msra.mxu0 0.0
    %2766 = vmatprep.subr.mxu0 0.0
    %2767 = vmatpush1.msra.mxu0 0.0
    %2768 = vmatprep.subr.mxu0 0.0
    %2769 = vmatpush1.msra.mxu0 0.0
    %2770 = vmatprep.subr.mxu0 0.0
    %2771 = vmatpush1.msra.mxu0 0.0
    %2772 = vmatprep.subr.mxu0 0.0
    %2773 = vmatpush1.msra.mxu0 0.0
    %2774 = vmatprep.subr.mxu0 0.0
    %2775 = vmatpush1.msra.mxu0 0.0
    %2776 = vmatprep.subr.mxu0 0.0
    %2777 = vmatpush1.msra.mxu0 0.0
    %2778 = vmatprep.subr.mxu0 0.0
    %v2779 = vand.u32 %v1659, 4294901760
    %2780 = vmatpush1.msra.mxu0 %v2779
    %2781 = vmatprep.subr.mxu0 0.0
    %v2782 = vand.u32 %v1658, 4294901760
    %2783 = vmatpush1.msra.mxu0 %v2782
    %2784 = vmatprep.subr.mxu0 0.0
    %v2785 = vand.u32 %v1657, 4294901760
    %2786 = vmatpush1.msra.mxu0 %v2785
    %2787 = vmatprep.subr.mxu0 0.0
    %v2788 = vand.u32 %v1656, 4294901760
    %2789 = vmatpush1.msra.mxu0 %v2788
    %2790 = vmatprep.subr.mxu0 0.0
    %2791 = vmatpush2.msra.mxu0 0.0
    %2792 = vmatprep.subr.mxu0 0.0
    %2793 = vmatpush2.msra.mxu0 0.0
    %2794 = vmatprep.subr.mxu0 0.0
    %2795 = vmatpush2.msra.mxu0 0.0
    %2796 = vmatprep.subr.mxu0 0.0
    %2797 = vmatpush2.msra.mxu0 0.0
    %2798 = vmatprep.subr.mxu0 0.0
    %2799 = vmatpush2.msra.mxu0 0.0
    %2800 = vmatprep.subr.mxu0 0.0
    %2801 = vmatpush2.msra.mxu0 0.0
    %2802 = vmatprep.subr.mxu0 0.0
    %2803 = vmatpush2.msra.mxu0 0.0
    %2804 = vmatprep.subr.mxu0 0.0
    %2805 = vmatpush2.msra.mxu0 0.0
    %2806 = vmatprep.subr.mxu0 0.0
    %2807 = vmatpush2.msra.mxu0 0.0
    %2808 = vmatprep.subr.mxu0 0.0
    %2809 = vmatpush2.msra.mxu0 0.0
    %2810 = vmatprep.subr.mxu0 0.0
    %2811 = vmatpush2.msra.mxu0 0.0
    %2812 = vmatprep.subr.mxu0 0.0
    %2813 = vmatpush2.msra.mxu0 0.0
    %2814 = vmatprep.subr.mxu0 0.0
    %2815 = vmatpush2.msra.mxu0 0.0
    %2816 = vmatprep.subr.mxu0 0.0
    %2817 = vmatpush2.msra.mxu0 0.0
    %2818 = vmatprep.subr.mxu0 0.0
    %2819 = vmatpush2.msra.mxu0 0.0
    %2820 = vmatprep.subr.mxu0 0.0
    %2821 = vmatpush2.msra.mxu0 0.0
    %2822 = vmatprep.mubr.f32.mxu0 0.0
    %v2823 = vand.u32 %v1742, 4294901760
    %2824 = vmatmul.mubr.f32.gmra.mxu0 %v2823
    %v2825 = vpop.f32.mrf.mxu0
    %v2826 = vadd.f32 %v2661, %v2825
    %v2827 = vpop.f32.mrf.mxu0
    %2828 = vmatprep.mubr.f32.mxu0 0.0
    %v2829 = vand.u32 %v1745, 4294901760
    %2830 = vmatmul.mubr.f32.gmra.mxu0 %v2829
    %v2831 = vpop.f32.mrf.mxu0
    %v2832 = vadd.f32 %v2667, %v2831
    %v2833 = vpop.f32.mrf.mxu0
    %2834 = vmatprep.mubr.f32.mxu0 0.0
    %v2835 = vand.u32 %v1748, 4294901760
    %2836 = vmatmul.mubr.f32.gmra.mxu0 %v2835
    %v2837 = vpop.f32.mrf.mxu0
    %v2838 = vadd.f32 %v2673, %v2837
    %v2839 = vpop.f32.mrf.mxu0
    %2840 = vmatprep.mubr.f32.mxu0 0.0
    %v2841 = vand.u32 %v1751, 4294901760
    %2842 = vmatmul.mubr.f32.gmra.mxu0 %v2841
    %v2843 = vpop.f32.mrf.mxu0
    %v2844 = vadd.f32 %v2679, %v2843
    %v2845 = vpop.f32.mrf.mxu0
    %2846 = vmatprep.mubr.f32.mxu0 0.0
    %v2847 = vand.u32 %v1754, 4294901760
    %2848 = vmatmul.mubr.f32.gmra.mxu0 %v2847
    %v2849 = vpop.f32.mrf.mxu0
    %v2850 = vadd.f32 %v2685, %v2849
    %v2851 = vpop.f32.mrf.mxu0
    %2852 = vmatprep.mubr.f32.mxu0 0.0
    %v2853 = vand.u32 %v1757, 4294901760
    %2854 = vmatmul.mubr.f32.gmra.mxu0 %v2853
    %v2855 = vpop.f32.mrf.mxu0
    %v2856 = vadd.f32 %v2691, %v2855
    %v2857 = vpop.f32.mrf.mxu0
    %2858 = vmatprep.mubr.f32.mxu0 0.0
    %v2859 = vand.u32 %v1760, 4294901760
    %2860 = vmatmul.mubr.f32.gmra.mxu0 %v2859
    %v2861 = vpop.f32.mrf.mxu0
    %v2862 = vadd.f32 %v2697, %v2861
    %v2863 = vpop.f32.mrf.mxu0
    %2864 = vmatprep.mubr.f32.mxu0 0.0
    %v2865 = vand.u32 %v1763, 4294901760
    %2866 = vmatmul.mubr.f32.gmra.mxu0 %v2865
    %v2867 = vpop.f32.mrf.mxu0
    %v2868 = vadd.f32 %v2703, %v2867
    %v2869 = vpop.f32.mrf.mxu0
    %2870 = vmatprep.mubr.f32.mxu0 0.0
    %v2871 = vand.u32 %v1766, 4294901760
    %2872 = vmatmul.mubr.f32.gmra.mxu0 %v2871
    %v2873 = vpop.f32.mrf.mxu0
    %v2874 = vadd.f32 %v2709, %v2873
    %v2875 = vpop.f32.mrf.mxu0
    %2876 = vmatprep.mubr.f32.mxu0 0.0
    %v2877 = vand.u32 %v1769, 4294901760
    %2878 = vmatmul.mubr.f32.gmra.mxu0 %v2877
    %v2879 = vpop.f32.mrf.mxu0
    %v2880 = vadd.f32 %v2715, %v2879
    %v2881 = vpop.f32.mrf.mxu0
    %2882 = vmatprep.mubr.f32.mxu0 0.0
    %v2883 = vand.u32 %v1772, 4294901760
    %2884 = vmatmul.mubr.f32.gmra.mxu0 %v2883
    %v2885 = vpop.f32.mrf.mxu0
    %v2886 = vadd.f32 %v2721, %v2885
    %v2887 = vpop.f32.mrf.mxu0
    %2888 = vmatprep.mubr.f32.mxu0 0.0
    %v2889 = vand.u32 %v1775, 4294901760
    %2890 = vmatmul.mubr.f32.gmra.mxu0 %v2889
    %v2891 = vpop.f32.mrf.mxu0
    %v2892 = vadd.f32 %v2727, %v2891
    %v2893 = vpop.f32.mrf.mxu0
    %2894 = vmatprep.mubr.f32.mxu0 0.0
    %v2895 = vand.u32 %v1778, 4294901760
    %2896 = vmatmul.mubr.f32.gmra.mxu0 %v2895
    %v2897 = vpop.f32.mrf.mxu0
    %v2898 = vadd.f32 %v2733, %v2897
    %v2899 = vpop.f32.mrf.mxu0
    %2900 = vmatprep.mubr.f32.mxu0 0.0
    %v2901 = vand.u32 %v1781, 4294901760
    %2902 = vmatmul.mubr.f32.gmra.mxu0 %v2901
    %v2903 = vpop.f32.mrf.mxu0
    %v2904 = vadd.f32 %v2739, %v2903
    %v2905 = vpop.f32.mrf.mxu0
    %2906 = vmatprep.mubr.f32.mxu0 0.0
    %v2907 = vand.u32 %v1784, 4294901760
    %2908 = vmatmul.mubr.f32.gmra.mxu0 %v2907
    %v2909 = vpop.f32.mrf.mxu0
    %v2910 = vadd.f32 %v2745, %v2909
    %v2911 = vpop.f32.mrf.mxu0
    %2912 = vmatprep.mubr.f32.mxu0 0.0
    %v2913 = vand.u32 %v1787, 4294901760
    %2914 = vmatmul.mubr.f32.gmra.mxu0 %v2913
    %v2915 = vpop.f32.mrf.mxu0
    %v2916 = vadd.f32 %v2751, %v2915
    %v2917 = vpop.f32.mrf.mxu0
    %2918 = vdwg.mxu0
    %v2919 = vmul.f32 %v2826, 0.5
    %v2920 = vmul.f32 %v2832, 0.5
    %v2921 = vmul.f32 %v2838, 0.5
    %v2922 = vmul.f32 %v2844, 0.5
    %v2923 = vmul.f32 %v2850, 0.5
    %v2924 = vmul.f32 %v2856, 0.5
    %v2925 = vmul.f32 %v2862, 0.5
    %v2926 = vmul.f32 %v2868, 0.5
    %v2927 = vmul.f32 %v2874, 0.5
    %v2928 = vmul.f32 %v2880, 0.5
    %v2929 = vmul.f32 %v2886, 0.5
    %v2930 = vmul.f32 %v2892, 0.5
    %v2931 = vmul.f32 %v2898, 0.5
    %v2932 = vmul.f32 %v2904, 0.5
    %v2933 = vmul.f32 %v2910, 0.5
    %v2934 = vmul.f32 %v2916, 0.5
    %v2935 = vmul.f32 %v2826, 0.70710677
    %v2936 = vmul.f32 %v2832, 0.70710677
    %v2937 = vmul.f32 %v2838, 0.70710677
    %v2938 = vmul.f32 %v2844, 0.70710677
    %v2939 = vmul.f32 %v2850, 0.70710677
    %v2940 = vmul.f32 %v2856, 0.70710677
    %v2941 = vmul.f32 %v2862, 0.70710677
    %v2942 = vmul.f32 %v2868, 0.70710677
    %v2943 = vmul.f32 %v2874, 0.70710677
    %v2944 = vmul.f32 %v2880, 0.70710677
    %v2945 = vmul.f32 %v2886, 0.70710677
    %v2946 = vmul.f32 %v2892, 0.70710677
    %v2947 = vmul.f32 %v2898, 0.70710677
    %v2948 = vmul.f32 %v2904, 0.70710677
    %v2949 = vmul.f32 %v2910, 0.70710677
    %v2950 = vmul.f32 %v2916, 0.70710677
    %v2951 = verf.f32.pop %v2935
    %v2952 = verf.f32.pop %v2936
    %v2953 = verf.f32.pop %v2937
    %v2954 = verf.f32.pop %v2938
    %v2955 = verf.f32.pop %v2939
    %v2956 = verf.f32.pop %v2940
    %v2957 = verf.f32.pop %v2941
    %v2958 = verf.f32.pop %v2942
    %v2959 = verf.f32.pop %v2943
    %v2960 = verf.f32.pop %v2944
    %v2961 = verf.f32.pop %v2945
    %v2962 = verf.f32.pop %v2946
    %v2963 = verf.f32.pop %v2947
    %v2964 = verf.f32.pop %v2948
    %v2965 = verf.f32.pop %v2949
    %v2966 = verf.f32.pop %v2950
    %v2967 = vadd.f32 %v2951, 1.0
    %v2968 = vadd.f32 %v2952, 1.0
    %v2969 = vadd.f32 %v2953, 1.0
    %v2970 = vadd.f32 %v2954, 1.0
    %v2971 = vadd.f32 %v2955, 1.0
    %v2972 = vadd.f32 %v2956, 1.0
    %v2973 = vadd.f32 %v2957, 1.0
    %v2974 = vadd.f32 %v2958, 1.0
    %v2975 = vadd.f32 %v2959, 1.0
    %v2976 = vadd.f32 %v2960, 1.0
    %v2977 = vadd.f32 %v2961, 1.0
    %v2978 = vadd.f32 %v2962, 1.0
    %v2979 = vadd.f32 %v2963, 1.0
    %v2980 = vadd.f32 %v2964, 1.0
    %v2981 = vadd.f32 %v2965, 1.0
    %v2982 = vadd.f32 %v2966, 1.0
    %v2983 = vmul.f32 %v2919, %v2967
    %v2984 = vmul.f32 %v2920, %v2968
    %v2985 = vmul.f32 %v2921, %v2969
    %v2986 = vmul.f32 %v2922, %v2970
    %v2987 = vmul.f32 %v2923, %v2971
    %v2988 = vmul.f32 %v2924, %v2972
    %v2989 = vmul.f32 %v2925, %v2973
    %v2990 = vmul.f32 %v2926, %v2974
    %v2991 = vmul.f32 %v2927, %v2975
    %v2992 = vmul.f32 %v2928, %v2976
    %v2993 = vmul.f32 %v2929, %v2977
    %v2994 = vmul.f32 %v2930, %v2978
    %v2995 = vmul.f32 %v2931, %v2979
    %v2996 = vmul.f32 %v2932, %v2980
    %v2997 = vmul.f32 %v2933, %v2981
    %v2998 = vmul.f32 %v2934, %v2982
    %3000 = vset.pattern.permute.xlu0 0
    %3001 = vperm.xlu0 %3000, %v115
    %v3002 = vpop.permute.xlu0 %3001
    %3005 = vset.pattern.permute.xlu0 0
    %3006 = vperm.xlu0 %3005, %v116
    %v3007 = vpop.permute.xlu0 %3006
    %3010 = vset.pattern.permute.xlu0 0
    %3011 = vperm.xlu0 %3010, %v117
    %v3012 = vpop.permute.xlu0 %3011
    %3015 = vset.pattern.permute.xlu0 0
    %3016 = vperm.xlu0 %3015, %v118
    %v3017 = vpop.permute.xlu0 %3016
    %3019 = vmatprep.subr.mxu0 0.0
    %v3020 = vand.u32 %v2998, 4294901760
    %3021 = vmatpush1.msra.mxu0 %v3020
    %3022 = vmatprep.subr.mxu0 0.0
    %v3023 = vand.u32 %v2997, 4294901760
    %3024 = vmatpush1.msra.mxu0 %v3023
    %3025 = vmatprep.subr.mxu0 0.0
    %v3026 = vand.u32 %v2996, 4294901760
    %3027 = vmatpush1.msra.mxu0 %v3026
    %3028 = vmatprep.subr.mxu0 0.0
    %v3029 = vand.u32 %v2995, 4294901760
    %3030 = vmatpush1.msra.mxu0 %v3029
    %3031 = vmatprep.subr.mxu0 0.0
    %v3032 = vand.u32 %v2994, 4294901760
    %3033 = vmatpush1.msra.mxu0 %v3032
    %3034 = vmatprep.subr.mxu0 0.0
    %v3035 = vand.u32 %v2993, 4294901760
    %3036 = vmatpush1.msra.mxu0 %v3035
    %3037 = vmatprep.subr.mxu0 0.0
    %v3038 = vand.u32 %v2992, 4294901760
    %3039 = vmatpush1.msra.mxu0 %v3038
    %3040 = vmatprep.subr.mxu0 0.0
    %v3041 = vand.u32 %v2991, 4294901760
    %3042 = vmatpush1.msra.mxu0 %v3041
    %3043 = vmatprep.subr.mxu0 0.0
    %v3044 = vand.u32 %v2990, 4294901760
    %3045 = vmatpush1.msra.mxu0 %v3044
    %3046 = vmatprep.subr.mxu0 0.0
    %v3047 = vand.u32 %v2989, 4294901760
    %3048 = vmatpush1.msra.mxu0 %v3047
    %3049 = vmatprep.subr.mxu0 0.0
    %v3050 = vand.u32 %v2988, 4294901760
    %3051 = vmatpush1.msra.mxu0 %v3050
    %3052 = vmatprep.subr.mxu0 0.0
    %v3053 = vand.u32 %v2987, 4294901760
    %3054 = vmatpush1.msra.mxu0 %v3053
    %3055 = vmatprep.subr.mxu0 0.0
    %v3056 = vand.u32 %v2986, 4294901760
    %3057 = vmatpush1.msra.mxu0 %v3056
    %3058 = vmatprep.subr.mxu0 0.0
    %v3059 = vand.u32 %v2985, 4294901760
    %3060 = vmatpush1.msra.mxu0 %v3059
    %3061 = vmatprep.subr.mxu0 0.0
    %v3062 = vand.u32 %v2984, 4294901760
    %3063 = vmatpush1.msra.mxu0 %v3062
    %3064 = vmatprep.subr.mxu0 0.0
    %v3065 = vand.u32 %v2983, 4294901760
    %3066 = vmatpush1.msra.mxu0 %v3065
    %3067 = vmatprep.subr.mxu0 0.0
    %3068 = vmatpush2.msra.mxu0 0.0
    %3069 = vmatprep.subr.mxu0 0.0
    %3070 = vmatpush2.msra.mxu0 0.0
    %3071 = vmatprep.subr.mxu0 0.0
    %3072 = vmatpush2.msra.mxu0 0.0
    %3073 = vmatprep.subr.mxu0 0.0
    %3074 = vmatpush2.msra.mxu0 0.0
    %3075 = vmatprep.subr.mxu0 0.0
    %3076 = vmatpush2.msra.mxu0 0.0
    %3077 = vmatprep.subr.mxu0 0.0
    %3078 = vmatpush2.msra.mxu0 0.0
    %3079 = vmatprep.subr.mxu0 0.0
    %3080 = vmatpush2.msra.mxu0 0.0
    %3081 = vmatprep.subr.mxu0 0.0
    %3082 = vmatpush2.msra.mxu0 0.0
    %3083 = vmatprep.subr.mxu0 0.0
    %3084 = vmatpush2.msra.mxu0 0.0
    %3085 = vmatprep.subr.mxu0 0.0
    %3086 = vmatpush2.msra.mxu0 0.0
    %3087 = vmatprep.subr.mxu0 0.0
    %3088 = vmatpush2.msra.mxu0 0.0
    %3089 = vmatprep.subr.mxu0 0.0
    %3090 = vmatpush2.msra.mxu0 0.0
    %3091 = vmatprep.subr.mxu0 0.0
    %3092 = vmatpush2.msra.mxu0 0.0
    %3093 = vmatprep.subr.mxu0 0.0
    %3094 = vmatpush2.msra.mxu0 0.0
    %3095 = vmatprep.subr.mxu0 0.0
    %3096 = vmatpush2.msra.mxu0 0.0
    %3097 = vmatprep.subr.mxu0 0.0
    %3098 = vmatpush2.msra.mxu0 0.0
    %3099 = vmatprep.mubr.f32.mxu0 0.0
    %v3100 = vand.u32 %v111, 4294901760
    %v3101 = vsub.f32 %v111, %v3100
    %v3102 = vand.u32 %v3101, 4294901760
    %v3103 = vsub.f32 %v3101, %v3102
    %v3104 = vand.u32 %v3103, 4294901760
    %3105 = vmatmul.mubr.f32.gmra.mxu0 %v3104
    %v3106 = vpop.f32.mrf.mxu0
    %v3107 = vadd.f32 %v3002, %v3106
    %v3108 = vpop.f32.mrf.mxu0
    %3109 = vmatprep.mubr.f32.mxu0 0.0
    %v3110 = vand.u32 %v112, 4294901760
    %v3111 = vsub.f32 %v112, %v3110
    %v3112 = vand.u32 %v3111, 4294901760
    %v3113 = vsub.f32 %v3111, %v3112
    %v3114 = vand.u32 %v3113, 4294901760
    %3115 = vmatmul.mubr.f32.gmra.mxu0 %v3114
    %v3116 = vpop.f32.mrf.mxu0
    %v3117 = vadd.f32 %v3007, %v3116
    %v3118 = vpop.f32.mrf.mxu0
    %3119 = vmatprep.mubr.f32.mxu0 0.0
    %v3120 = vand.u32 %v113, 4294901760
    %v3121 = vsub.f32 %v113, %v3120
    %v3122 = vand.u32 %v3121, 4294901760
    %v3123 = vsub.f32 %v3121, %v3122
    %v3124 = vand.u32 %v3123, 4294901760
    %3125 = vmatmul.mubr.f32.gmra.mxu0 %v3124
    %v3126 = vpop.f32.mrf.mxu0
    %v3127 = vadd.f32 %v3012, %v3126
    %v3128 = vpop.f32.mrf.mxu0
    %3129 = vmatprep.mubr.f32.mxu0 0.0
    %v3130 = vand.u32 %v114, 4294901760
    %v3131 = vsub.f32 %v114, %v3130
    %v3132 = vand.u32 %v3131, 4294901760
    %v3133 = vsub.f32 %v3131, %v3132
    %v3134 = vand.u32 %v3133, 4294901760
    %3135 = vmatmul.mubr.f32.gmra.mxu0 %v3134
    %v3136 = vpop.f32.mrf.mxu0
    %v3137 = vadd.f32 %v3017, %v3136
    %v3138 = vpop.f32.mrf.mxu0
    %3139 = vdwg.mxu0
    %3140 = vmatprep.subr.mxu0 0.0
    %v3141 = vand.u32 %v2998, 4294901760
    %v3142 = vsub.f32 %v2998, %v3141
    %v3143 = vand.u32 %v3142, 4294901760
    %v3144 = vsub.f32 %v3142, %v3143
    %v3145 = vand.u32 %v3144, 4294901760
    %3146 = vmatpush1.msra.mxu0 %v3145
    %3147 = vmatprep.subr.mxu0 0.0
    %v3148 = vand.u32 %v2997, 4294901760
    %v3149 = vsub.f32 %v2997, %v3148
    %v3150 = vand.u32 %v3149, 4294901760
    %v3151 = vsub.f32 %v3149, %v3150
    %v3152 = vand.u32 %v3151, 4294901760
    %3153 = vmatpush1.msra.mxu0 %v3152
    %3154 = vmatprep.subr.mxu0 0.0
    %v3155 = vand.u32 %v2996, 4294901760
    %v3156 = vsub.f32 %v2996, %v3155
    %v3157 = vand.u32 %v3156, 4294901760
    %v3158 = vsub.f32 %v3156, %v3157
    %v3159 = vand.u32 %v3158, 4294901760
    %3160 = vmatpush1.msra.mxu0 %v3159
    %3161 = vmatprep.subr.mxu0 0.0
    %v3162 = vand.u32 %v2995, 4294901760
    %v3163 = vsub.f32 %v2995, %v3162
    %v3164 = vand.u32 %v3163, 4294901760
    %v3165 = vsub.f32 %v3163, %v3164
    %v3166 = vand.u32 %v3165, 4294901760
    %3167 = vmatpush1.msra.mxu0 %v3166
    %3168 = vmatprep.subr.mxu0 0.0
    %v3169 = vand.u32 %v2994, 4294901760
    %v3170 = vsub.f32 %v2994, %v3169
    %v3171 = vand.u32 %v3170, 4294901760
    %v3172 = vsub.f32 %v3170, %v3171
    %v3173 = vand.u32 %v3172, 4294901760
    %3174 = vmatpush1.msra.mxu0 %v3173
    %3175 = vmatprep.subr.mxu0 0.0
    %v3176 = vand.u32 %v2993, 4294901760
    %v3177 = vsub.f32 %v2993, %v3176
    %v3178 = vand.u32 %v3177, 4294901760
    %v3179 = vsub.f32 %v3177, %v3178
    %v3180 = vand.u32 %v3179, 4294901760
    %3181 = vmatpush1.msra.mxu0 %v3180
    %3182 = vmatprep.subr.mxu0 0.0
    %v3183 = vand.u32 %v2992, 4294901760
    %v3184 = vsub.f32 %v2992, %v3183
    %v3185 = vand.u32 %v3184, 4294901760
    %v3186 = vsub.f32 %v3184, %v3185
    %v3187 = vand.u32 %v3186, 4294901760
    %3188 = vmatpush1.msra.mxu0 %v3187
    %3189 = vmatprep.subr.mxu0 0.0
    %v3190 = vand.u32 %v2991, 4294901760
    %v3191 = vsub.f32 %v2991, %v3190
    %v3192 = vand.u32 %v3191, 4294901760
    %v3193 = vsub.f32 %v3191, %v3192
    %v3194 = vand.u32 %v3193, 4294901760
    %3195 = vmatpush1.msra.mxu0 %v3194
    %3196 = vmatprep.subr.mxu0 0.0
    %v3197 = vand.u32 %v2990, 4294901760
    %v3198 = vsub.f32 %v2990, %v3197
    %v3199 = vand.u32 %v3198, 4294901760
    %v3200 = vsub.f32 %v3198, %v3199
    %v3201 = vand.u32 %v3200, 4294901760
    %3202 = vmatpush1.msra.mxu0 %v3201
    %3203 = vmatprep.subr.mxu0 0.0
    %v3204 = vand.u32 %v2989, 4294901760
    %v3205 = vsub.f32 %v2989, %v3204
    %v3206 = vand.u32 %v3205, 4294901760
    %v3207 = vsub.f32 %v3205, %v3206
    %v3208 = vand.u32 %v3207, 4294901760
    %3209 = vmatpush1.msra.mxu0 %v3208
    %3210 = vmatprep.subr.mxu0 0.0
    %v3211 = vand.u32 %v2988, 4294901760
    %v3212 = vsub.f32 %v2988, %v3211
    %v3213 = vand.u32 %v3212, 4294901760
    %v3214 = vsub.f32 %v3212, %v3213
    %v3215 = vand.u32 %v3214, 4294901760
    %3216 = vmatpush1.msra.mxu0 %v3215
    %3217 = vmatprep.subr.mxu0 0.0
    %v3218 = vand.u32 %v2987, 4294901760
    %v3219 = vsub.f32 %v2987, %v3218
    %v3220 = vand.u32 %v3219, 4294901760
    %v3221 = vsub.f32 %v3219, %v3220
    %v3222 = vand.u32 %v3221, 4294901760
    %3223 = vmatpush1.msra.mxu0 %v3222
    %3224 = vmatprep.subr.mxu0 0.0
    %v3225 = vand.u32 %v2986, 4294901760
    %v3226 = vsub.f32 %v2986, %v3225
    %v3227 = vand.u32 %v3226, 4294901760
    %v3228 = vsub.f32 %v3226, %v3227
    %v3229 = vand.u32 %v3228, 4294901760
    %3230 = vmatpush1.msra.mxu0 %v3229
    %3231 = vmatprep.subr.mxu0 0.0
    %v3232 = vand.u32 %v2985, 4294901760
    %v3233 = vsub.f32 %v2985, %v3232
    %v3234 = vand.u32 %v3233, 4294901760
    %v3235 = vsub.f32 %v3233, %v3234
    %v3236 = vand.u32 %v3235, 4294901760
    %3237 = vmatpush1.msra.mxu0 %v3236
    %3238 = vmatprep.subr.mxu0 0.0
    %v3239 = vand.u32 %v2984, 4294901760
    %v3240 = vsub.f32 %v2984, %v3239
    %v3241 = vand.u32 %v3240, 4294901760
    %v3242 = vsub.f32 %v3240, %v3241
    %v3243 = vand.u32 %v3242, 4294901760
    %3244 = vmatpush1.msra.mxu0 %v3243
    %3245 = vmatprep.subr.mxu0 0.0
    %v3246 = vand.u32 %v2983, 4294901760
    %v3247 = vsub.f32 %v2983, %v3246
    %v3248 = vand.u32 %v3247, 4294901760
    %v3249 = vsub.f32 %v3247, %v3248
    %v3250 = vand.u32 %v3249, 4294901760
    %3251 = vmatpush1.msra.mxu0 %v3250
    %3252 = vmatprep.subr.mxu0 0.0
    %3253 = vmatpush2.msra.mxu0 0.0
    %3254 = vmatprep.subr.mxu0 0.0
    %3255 = vmatpush2.msra.mxu0 0.0
    %3256 = vmatprep.subr.mxu0 0.0
    %3257 = vmatpush2.msra.mxu0 0.0
    %3258 = vmatprep.subr.mxu0 0.0
    %3259 = vmatpush2.msra.mxu0 0.0
    %3260 = vmatprep.subr.mxu0 0.0
    %3261 = vmatpush2.msra.mxu0 0.0
    %3262 = vmatprep.subr.mxu0 0.0
    %3263 = vmatpush2.msra.mxu0 0.0
    %3264 = vmatprep.subr.mxu0 0.0
    %3265 = vmatpush2.msra.mxu0 0.0
    %3266 = vmatprep.subr.mxu0 0.0
    %3267 = vmatpush2.msra.mxu0 0.0
    %3268 = vmatprep.subr.mxu0 0.0
    %3269 = vmatpush2.msra.mxu0 0.0
    %3270 = vmatprep.subr.mxu0 0.0
    %3271 = vmatpush2.msra.mxu0 0.0
    %3272 = vmatprep.subr.mxu0 0.0
    %3273 = vmatpush2.msra.mxu0 0.0
    %3274 = vmatprep.subr.mxu0 0.0
    %3275 = vmatpush2.msra.mxu0 0.0
    %3276 = vmatprep.subr.mxu0 0.0
    %3277 = vmatpush2.msra.mxu0 0.0
    %3278 = vmatprep.subr.mxu0 0.0
    %3279 = vmatpush2.msra.mxu0 0.0
    %3280 = vmatprep.subr.mxu0 0.0
    %3281 = vmatpush2.msra.mxu0 0.0
    %3282 = vmatprep.subr.mxu0 0.0
    %3283 = vmatpush2.msra.mxu0 0.0
    %3284 = vmatprep.mubr.f32.mxu0 0.0
    %v3285 = vand.u32 %v111, 4294901760
    %3286 = vmatmul.mubr.f32.gmra.mxu0 %v3285
    %v3287 = vpop.f32.mrf.mxu0
    %v3288 = vadd.f32 %v3107, %v3287
    %v3289 = vpop.f32.mrf.mxu0
    %3290 = vmatprep.mubr.f32.mxu0 0.0
    %v3291 = vand.u32 %v112, 4294901760
    %3292 = vmatmul.mubr.f32.gmra.mxu0 %v3291
    %v3293 = vpop.f32.mrf.mxu0
    %v3294 = vadd.f32 %v3117, %v3293
    %v3295 = vpop.f32.mrf.mxu0
    %3296 = vmatprep.mubr.f32.mxu0 0.0
    %v3297 = vand.u32 %v113, 4294901760
    %3298 = vmatmul.mubr.f32.gmra.mxu0 %v3297
    %v3299 = vpop.f32.mrf.mxu0
    %v3300 = vadd.f32 %v3127, %v3299
    %v3301 = vpop.f32.mrf.mxu0
    %3302 = vmatprep.mubr.f32.mxu0 0.0
    %v3303 = vand.u32 %v114, 4294901760
    %3304 = vmatmul.mubr.f32.gmra.mxu0 %v3303
    %v3305 = vpop.f32.mrf.mxu0
    %v3306 = vadd.f32 %v3137, %v3305
    %v3307 = vpop.f32.mrf.mxu0
    %3308 = vdwg.mxu0
    %3309 = vmatprep.subr.mxu0 0.0
    %v3310 = vand.u32 %v2998, 4294901760
    %v3311 = vsub.f32 %v2998, %v3310
    %3312 = vmatpush1.msra.mxu0 %v3311
    %3313 = vmatprep.subr.mxu0 0.0
    %v3314 = vand.u32 %v2997, 4294901760
    %v3315 = vsub.f32 %v2997, %v3314
    %3316 = vmatpush1.msra.mxu0 %v3315
    %3317 = vmatprep.subr.mxu0 0.0
    %v3318 = vand.u32 %v2996, 4294901760
    %v3319 = vsub.f32 %v2996, %v3318
    %3320 = vmatpush1.msra.mxu0 %v3319
    %3321 = vmatprep.subr.mxu0 0.0
    %v3322 = vand.u32 %v2995, 4294901760
    %v3323 = vsub.f32 %v2995, %v3322
    %3324 = vmatpush1.msra.mxu0 %v3323
    %3325 = vmatprep.subr.mxu0 0.0
    %v3326 = vand.u32 %v2994, 4294901760
    %v3327 = vsub.f32 %v2994, %v3326
    %3328 = vmatpush1.msra.mxu0 %v3327
    %3329 = vmatprep.subr.mxu0 0.0
    %v3330 = vand.u32 %v2993, 4294901760
    %v3331 = vsub.f32 %v2993, %v3330
    %3332 = vmatpush1.msra.mxu0 %v3331
    %3333 = vmatprep.subr.mxu0 0.0
    %v3334 = vand.u32 %v2992, 4294901760
    %v3335 = vsub.f32 %v2992, %v3334
    %3336 = vmatpush1.msra.mxu0 %v3335
    %3337 = vmatprep.subr.mxu0 0.0
    %v3338 = vand.u32 %v2991, 4294901760
    %v3339 = vsub.f32 %v2991, %v3338
    %3340 = vmatpush1.msra.mxu0 %v3339
    %3341 = vmatprep.subr.mxu0 0.0
    %v3342 = vand.u32 %v2990, 4294901760
    %v3343 = vsub.f32 %v2990, %v3342
    %3344 = vmatpush1.msra.mxu0 %v3343
    %3345 = vmatprep.subr.mxu0 0.0
    %v3346 = vand.u32 %v2989, 4294901760
    %v3347 = vsub.f32 %v2989, %v3346
    %3348 = vmatpush1.msra.mxu0 %v3347
    %3349 = vmatprep.subr.mxu0 0.0
    %v3350 = vand.u32 %v2988, 4294901760
    %v3351 = vsub.f32 %v2988, %v3350
    %3352 = vmatpush1.msra.mxu0 %v3351
    %3353 = vmatprep.subr.mxu0 0.0
    %v3354 = vand.u32 %v2987, 4294901760
    %v3355 = vsub.f32 %v2987, %v3354
    %3356 = vmatpush1.msra.mxu0 %v3355
    %3357 = vmatprep.subr.mxu0 0.0
    %v3358 = vand.u32 %v2986, 4294901760
    %v3359 = vsub.f32 %v2986, %v3358
    %3360 = vmatpush1.msra.mxu0 %v3359
    %3361 = vmatprep.subr.mxu0 0.0
    %v3362 = vand.u32 %v2985, 4294901760
    %v3363 = vsub.f32 %v2985, %v3362
    %3364 = vmatpush1.msra.mxu0 %v3363
    %3365 = vmatprep.subr.mxu0 0.0
    %v3366 = vand.u32 %v2984, 4294901760
    %v3367 = vsub.f32 %v2984, %v3366
    %3368 = vmatpush1.msra.mxu0 %v3367
    %3369 = vmatprep.subr.mxu0 0.0
    %v3370 = vand.u32 %v2983, 4294901760
    %v3371 = vsub.f32 %v2983, %v3370
    %3372 = vmatpush1.msra.mxu0 %v3371
    %3373 = vmatprep.subr.mxu0 0.0
    %3374 = vmatpush2.msra.mxu0 0.0
    %3375 = vmatprep.subr.mxu0 0.0
    %3376 = vmatpush2.msra.mxu0 0.0
    %3377 = vmatprep.subr.mxu0 0.0
    %3378 = vmatpush2.msra.mxu0 0.0
    %3379 = vmatprep.subr.mxu0 0.0
    %3380 = vmatpush2.msra.mxu0 0.0
    %3381 = vmatprep.subr.mxu0 0.0
    %3382 = vmatpush2.msra.mxu0 0.0
    %3383 = vmatprep.subr.mxu0 0.0
    %3384 = vmatpush2.msra.mxu0 0.0
    %3385 = vmatprep.subr.mxu0 0.0
    %3386 = vmatpush2.msra.mxu0 0.0
    %3387 = vmatprep.subr.mxu0 0.0
    %3388 = vmatpush2.msra.mxu0 0.0
    %3389 = vmatprep.subr.mxu0 0.0
    %3390 = vmatpush2.msra.mxu0 0.0
    %3391 = vmatprep.subr.mxu0 0.0
    %3392 = vmatpush2.msra.mxu0 0.0
    %3393 = vmatprep.subr.mxu0 0.0
    %3394 = vmatpush2.msra.mxu0 0.0
    %3395 = vmatprep.subr.mxu0 0.0
    %3396 = vmatpush2.msra.mxu0 0.0
    %3397 = vmatprep.subr.mxu0 0.0
    %3398 = vmatpush2.msra.mxu0 0.0
    %3399 = vmatprep.subr.mxu0 0.0
    %3400 = vmatpush2.msra.mxu0 0.0
    %3401 = vmatprep.subr.mxu0 0.0
    %3402 = vmatpush2.msra.mxu0 0.0
    %3403 = vmatprep.subr.mxu0 0.0
    %3404 = vmatpush2.msra.mxu0 0.0
    %3405 = vmatprep.mubr.f32.mxu0 0.0
    %v3406 = vand.u32 %v111, 4294901760
    %v3407 = vsub.f32 %v111, %v3406
    %3408 = vmatmul.mubr.f32.gmra.mxu0 %v3407
    %v3409 = vpop.f32.mrf.mxu0
    %v3410 = vadd.f32 %v3288, %v3409
    %v3411 = vpop.f32.mrf.mxu0
    %3412 = vmatprep.mubr.f32.mxu0 0.0
    %v3413 = vand.u32 %v112, 4294901760
    %v3414 = vsub.f32 %v112, %v3413
    %3415 = vmatmul.mubr.f32.gmra.mxu0 %v3414
    %v3416 = vpop.f32.mrf.mxu0
    %v3417 = vadd.f32 %v3294, %v3416
    %v3418 = vpop.f32.mrf.mxu0
    %3419 = vmatprep.mubr.f32.mxu0 0.0
    %v3420 = vand.u32 %v113, 4294901760
    %v3421 = vsub.f32 %v113, %v3420
    %3422 = vmatmul.mubr.f32.gmra.mxu0 %v3421
    %v3423 = vpop.f32.mrf.mxu0
    %v3424 = vadd.f32 %v3300, %v3423
    %v3425 = vpop.f32.mrf.mxu0
    %3426 = vmatprep.mubr.f32.mxu0 0.0
    %v3427 = vand.u32 %v114, 4294901760
    %v3428 = vsub.f32 %v114, %v3427
    %3429 = vmatmul.mubr.f32.gmra.mxu0 %v3428
    %v3430 = vpop.f32.mrf.mxu0
    %v3431 = vadd.f32 %v3306, %v3430
    %v3432 = vpop.f32.mrf.mxu0
    %3433 = vdwg.mxu0
    %3434 = vmatprep.subr.mxu0 0.0
    %v3435 = vand.u32 %v2998, 4294901760
    %3436 = vmatpush1.msra.mxu0 %v3435
    %3437 = vmatprep.subr.mxu0 0.0
    %v3438 = vand.u32 %v2997, 4294901760
    %3439 = vmatpush1.msra.mxu0 %v3438
    %3440 = vmatprep.subr.mxu0 0.0
    %v3441 = vand.u32 %v2996, 4294901760
    %3442 = vmatpush1.msra.mxu0 %v3441
    %3443 = vmatprep.subr.mxu0 0.0
    %v3444 = vand.u32 %v2995, 4294901760
    %3445 = vmatpush1.msra.mxu0 %v3444
    %3446 = vmatprep.subr.mxu0 0.0
    %v3447 = vand.u32 %v2994, 4294901760
    %3448 = vmatpush1.msra.mxu0 %v3447
    %3449 = vmatprep.subr.mxu0 0.0
    %v3450 = vand.u32 %v2993, 4294901760
    %3451 = vmatpush1.msra.mxu0 %v3450
    %3452 = vmatprep.subr.mxu0 0.0
    %v3453 = vand.u32 %v2992, 4294901760
    %3454 = vmatpush1.msra.mxu0 %v3453
    %3455 = vmatprep.subr.mxu0 0.0
    %v3456 = vand.u32 %v2991, 4294901760
    %3457 = vmatpush1.msra.mxu0 %v3456
    %3458 = vmatprep.subr.mxu0 0.0
    %v3459 = vand.u32 %v2990, 4294901760
    %3460 = vmatpush1.msra.mxu0 %v3459
    %3461 = vmatprep.subr.mxu0 0.0
    %v3462 = vand.u32 %v2989, 4294901760
    %3463 = vmatpush1.msra.mxu0 %v3462
    %3464 = vmatprep.subr.mxu0 0.0
    %v3465 = vand.u32 %v2988, 4294901760
    %3466 = vmatpush1.msra.mxu0 %v3465
    %3467 = vmatprep.subr.mxu0 0.0
    %v3468 = vand.u32 %v2987, 4294901760
    %3469 = vmatpush1.msra.mxu0 %v3468
    %3470 = vmatprep.subr.mxu0 0.0
    %v3471 = vand.u32 %v2986, 4294901760
    %3472 = vmatpush1.msra.mxu0 %v3471
    %3473 = vmatprep.subr.mxu0 0.0
    %v3474 = vand.u32 %v2985, 4294901760
    %3475 = vmatpush1.msra.mxu0 %v3474
    %3476 = vmatprep.subr.mxu0 0.0
    %v3477 = vand.u32 %v2984, 4294901760
    %3478 = vmatpush1.msra.mxu0 %v3477
    %3479 = vmatprep.subr.mxu0 0.0
    %v3480 = vand.u32 %v2983, 4294901760
    %3481 = vmatpush1.msra.mxu0 %v3480
    %3482 = vmatprep.subr.mxu0 0.0
    %3483 = vmatpush2.msra.mxu0 0.0
    %3484 = vmatprep.subr.mxu0 0.0
    %3485 = vmatpush2.msra.mxu0 0.0
    %3486 = vmatprep.subr.mxu0 0.0
    %3487 = vmatpush2.msra.mxu0 0.0
    %3488 = vmatprep.subr.mxu0 0.0
    %3489 = vmatpush2.msra.mxu0 0.0
    %3490 = vmatprep.subr.mxu0 0.0
    %3491 = vmatpush2.msra.mxu0 0.0
    %3492 = vmatprep.subr.mxu0 0.0
    %3493 = vmatpush2.msra.mxu0 0.0
    %3494 = vmatprep.subr.mxu0 0.0
    %3495 = vmatpush2.msra.mxu0 0.0
    %3496 = vmatprep.subr.mxu0 0.0
    %3497 = vmatpush2.msra.mxu0 0.0
    %3498 = vmatprep.subr.mxu0 0.0
    %3499 = vmatpush2.msra.mxu0 0.0
    %3500 = vmatprep.subr.mxu0 0.0
    %3501 = vmatpush2.msra.mxu0 0.0
    %3502 = vmatprep.subr.mxu0 0.0
    %3503 = vmatpush2.msra.mxu0 0.0
    %3504 = vmatprep.subr.mxu0 0.0
    %3505 = vmatpush2.msra.mxu0 0.0
    %3506 = vmatprep.subr.mxu0 0.0
    %3507 = vmatpush2.msra.mxu0 0.0
    %3508 = vmatprep.subr.mxu0 0.0
    %3509 = vmatpush2.msra.mxu0 0.0
    %3510 = vmatprep.subr.mxu0 0.0
    %3511 = vmatpush2.msra.mxu0 0.0
    %3512 = vmatprep.subr.mxu0 0.0
    %3513 = vmatpush2.msra.mxu0 0.0
    %3514 = vmatprep.mubr.f32.mxu0 0.0
    %v3515 = vand.u32 %v111, 4294901760
    %v3516 = vsub.f32 %v111, %v3515
    %v3517 = vand.u32 %v3516, 4294901760
    %3518 = vmatmul.mubr.f32.gmra.mxu0 %v3517
    %v3519 = vpop.f32.mrf.mxu0
    %v3520 = vadd.f32 %v3410, %v3519
    %v3521 = vpop.f32.mrf.mxu0
    %3522 = vmatprep.mubr.f32.mxu0 0.0
    %v3523 = vand.u32 %v112, 4294901760
    %v3524 = vsub.f32 %v112, %v3523
    %v3525 = vand.u32 %v3524, 4294901760
    %3526 = vmatmul.mubr.f32.gmra.mxu0 %v3525
    %v3527 = vpop.f32.mrf.mxu0
    %v3528 = vadd.f32 %v3417, %v3527
    %v3529 = vpop.f32.mrf.mxu0
    %3530 = vmatprep.mubr.f32.mxu0 0.0
    %v3531 = vand.u32 %v113, 4294901760
    %v3532 = vsub.f32 %v113, %v3531
    %v3533 = vand.u32 %v3532, 4294901760
    %3534 = vmatmul.mubr.f32.gmra.mxu0 %v3533
    %v3535 = vpop.f32.mrf.mxu0
    %v3536 = vadd.f32 %v3424, %v3535
    %v3537 = vpop.f32.mrf.mxu0
    %3538 = vmatprep.mubr.f32.mxu0 0.0
    %v3539 = vand.u32 %v114, 4294901760
    %v3540 = vsub.f32 %v114, %v3539
    %v3541 = vand.u32 %v3540, 4294901760
    %3542 = vmatmul.mubr.f32.gmra.mxu0 %v3541
    %v3543 = vpop.f32.mrf.mxu0
    %v3544 = vadd.f32 %v3431, %v3543
    %v3545 = vpop.f32.mrf.mxu0
    %3546 = vdwg.mxu0
    %3547 = vmatprep.subr.mxu0 0.0
    %v3548 = vand.u32 %v2998, 4294901760
    %v3549 = vsub.f32 %v2998, %v3548
    %v3550 = vand.u32 %v3549, 4294901760
    %3551 = vmatpush1.msra.mxu0 %v3550
    %3552 = vmatprep.subr.mxu0 0.0
    %v3553 = vand.u32 %v2997, 4294901760
    %v3554 = vsub.f32 %v2997, %v3553
    %v3555 = vand.u32 %v3554, 4294901760
    %3556 = vmatpush1.msra.mxu0 %v3555
    %3557 = vmatprep.subr.mxu0 0.0
    %v3558 = vand.u32 %v2996, 4294901760
    %v3559 = vsub.f32 %v2996, %v3558
    %v3560 = vand.u32 %v3559, 4294901760
    %3561 = vmatpush1.msra.mxu0 %v3560
    %3562 = vmatprep.subr.mxu0 0.0
    %v3563 = vand.u32 %v2995, 4294901760
    %v3564 = vsub.f32 %v2995, %v3563
    %v3565 = vand.u32 %v3564, 4294901760
    %3566 = vmatpush1.msra.mxu0 %v3565
    %3567 = vmatprep.subr.mxu0 0.0
    %v3568 = vand.u32 %v2994, 4294901760
    %v3569 = vsub.f32 %v2994, %v3568
    %v3570 = vand.u32 %v3569, 4294901760
    %3571 = vmatpush1.msra.mxu0 %v3570
    %3572 = vmatprep.subr.mxu0 0.0
    %v3573 = vand.u32 %v2993, 4294901760
    %v3574 = vsub.f32 %v2993, %v3573
    %v3575 = vand.u32 %v3574, 4294901760
    %3576 = vmatpush1.msra.mxu0 %v3575
    %3577 = vmatprep.subr.mxu0 0.0
    %v3578 = vand.u32 %v2992, 4294901760
    %v3579 = vsub.f32 %v2992, %v3578
    %v3580 = vand.u32 %v3579, 4294901760
    %3581 = vmatpush1.msra.mxu0 %v3580
    %3582 = vmatprep.subr.mxu0 0.0
    %v3583 = vand.u32 %v2991, 4294901760
    %v3584 = vsub.f32 %v2991, %v3583
    %v3585 = vand.u32 %v3584, 4294901760
    %3586 = vmatpush1.msra.mxu0 %v3585
    %3587 = vmatprep.subr.mxu0 0.0
    %v3588 = vand.u32 %v2990, 4294901760
    %v3589 = vsub.f32 %v2990, %v3588
    %v3590 = vand.u32 %v3589, 4294901760
    %3591 = vmatpush1.msra.mxu0 %v3590
    %3592 = vmatprep.subr.mxu0 0.0
    %v3593 = vand.u32 %v2989, 4294901760
    %v3594 = vsub.f32 %v2989, %v3593
    %v3595 = vand.u32 %v3594, 4294901760
    %3596 = vmatpush1.msra.mxu0 %v3595
    %3597 = vmatprep.subr.mxu0 0.0
    %v3598 = vand.u32 %v2988, 4294901760
    %v3599 = vsub.f32 %v2988, %v3598
    %v3600 = vand.u32 %v3599, 4294901760
    %3601 = vmatpush1.msra.mxu0 %v3600
    %3602 = vmatprep.subr.mxu0 0.0
    %v3603 = vand.u32 %v2987, 4294901760
    %v3604 = vsub.f32 %v2987, %v3603
    %v3605 = vand.u32 %v3604, 4294901760
    %3606 = vmatpush1.msra.mxu0 %v3605
    %3607 = vmatprep.subr.mxu0 0.0
    %v3608 = vand.u32 %v2986, 4294901760
    %v3609 = vsub.f32 %v2986, %v3608
    %v3610 = vand.u32 %v3609, 4294901760
    %3611 = vmatpush1.msra.mxu0 %v3610
    %3612 = vmatprep.subr.mxu0 0.0
    %v3613 = vand.u32 %v2985, 4294901760
    %v3614 = vsub.f32 %v2985, %v3613
    %v3615 = vand.u32 %v3614, 4294901760
    %3616 = vmatpush1.msra.mxu0 %v3615
    %3617 = vmatprep.subr.mxu0 0.0
    %v3618 = vand.u32 %v2984, 4294901760
    %v3619 = vsub.f32 %v2984, %v3618
    %v3620 = vand.u32 %v3619, 4294901760
    %3621 = vmatpush1.msra.mxu0 %v3620
    %3622 = vmatprep.subr.mxu0 0.0
    %v3623 = vand.u32 %v2983, 4294901760
    %v3624 = vsub.f32 %v2983, %v3623
    %v3625 = vand.u32 %v3624, 4294901760
    %3626 = vmatpush1.msra.mxu0 %v3625
    %3627 = vmatprep.subr.mxu0 0.0
    %3628 = vmatpush2.msra.mxu0 0.0
    %3629 = vmatprep.subr.mxu0 0.0
    %3630 = vmatpush2.msra.mxu0 0.0
    %3631 = vmatprep.subr.mxu0 0.0
    %3632 = vmatpush2.msra.mxu0 0.0
    %3633 = vmatprep.subr.mxu0 0.0
    %3634 = vmatpush2.msra.mxu0 0.0
    %3635 = vmatprep.subr.mxu0 0.0
    %3636 = vmatpush2.msra.mxu0 0.0
    %3637 = vmatprep.subr.mxu0 0.0
    %3638 = vmatpush2.msra.mxu0 0.0
    %3639 = vmatprep.subr.mxu0 0.0
    %3640 = vmatpush2.msra.mxu0 0.0
    %3641 = vmatprep.subr.mxu0 0.0
    %3642 = vmatpush2.msra.mxu0 0.0
    %3643 = vmatprep.subr.mxu0 0.0
    %3644 = vmatpush2.msra.mxu0 0.0
    %3645 = vmatprep.subr.mxu0 0.0
    %3646 = vmatpush2.msra.mxu0 0.0
    %3647 = vmatprep.subr.mxu0 0.0
    %3648 = vmatpush2.msra.mxu0 0.0
    %3649 = vmatprep.subr.mxu0 0.0
    %3650 = vmatpush2.msra.mxu0 0.0
    %3651 = vmatprep.subr.mxu0 0.0
    %3652 = vmatpush2.msra.mxu0 0.0
    %3653 = vmatprep.subr.mxu0 0.0
    %3654 = vmatpush2.msra.mxu0 0.0
    %3655 = vmatprep.subr.mxu0 0.0
    %3656 = vmatpush2.msra.mxu0 0.0
    %3657 = vmatprep.subr.mxu0 0.0
    %3658 = vmatpush2.msra.mxu0 0.0
    %3659 = vmatprep.mubr.f32.mxu0 0.0
    %v3660 = vand.u32 %v111, 4294901760
    %3661 = vmatmul.mubr.f32.gmra.mxu0 %v3660
    %v3662 = vpop.f32.mrf.mxu0
    %v3663 = vadd.f32 %v3520, %v3662
    %v3664 = vpop.f32.mrf.mxu0
    %3665 = vmatprep.mubr.f32.mxu0 0.0
    %v3666 = vand.u32 %v112, 4294901760
    %3667 = vmatmul.mubr.f32.gmra.mxu0 %v3666
    %v3668 = vpop.f32.mrf.mxu0
    %v3669 = vadd.f32 %v3528, %v3668
    %v3670 = vpop.f32.mrf.mxu0
    %3671 = vmatprep.mubr.f32.mxu0 0.0
    %v3672 = vand.u32 %v113, 4294901760
    %3673 = vmatmul.mubr.f32.gmra.mxu0 %v3672
    %v3674 = vpop.f32.mrf.mxu0
    %v3675 = vadd.f32 %v3536, %v3674
    %v3676 = vpop.f32.mrf.mxu0
    %3677 = vmatprep.mubr.f32.mxu0 0.0
    %v3678 = vand.u32 %v114, 4294901760
    %3679 = vmatmul.mubr.f32.gmra.mxu0 %v3678
    %v3680 = vpop.f32.mrf.mxu0
    %v3681 = vadd.f32 %v3544, %v3680
    %v3682 = vpop.f32.mrf.mxu0
    %3683 = vdwg.mxu0
    %3684 = vmatprep.subr.mxu0 0.0
    %v3685 = vand.u32 %v2998, 4294901760
    %3686 = vmatpush1.msra.mxu0 %v3685
    %3687 = vmatprep.subr.mxu0 0.0
    %v3688 = vand.u32 %v2997, 4294901760
    %3689 = vmatpush1.msra.mxu0 %v3688
    %3690 = vmatprep.subr.mxu0 0.0
    %v3691 = vand.u32 %v2996, 4294901760
    %3692 = vmatpush1.msra.mxu0 %v3691
    %3693 = vmatprep.subr.mxu0 0.0
    %v3694 = vand.u32 %v2995, 4294901760
    %3695 = vmatpush1.msra.mxu0 %v3694
    %3696 = vmatprep.subr.mxu0 0.0
    %v3697 = vand.u32 %v2994, 4294901760
    %3698 = vmatpush1.msra.mxu0 %v3697
    %3699 = vmatprep.subr.mxu0 0.0
    %v3700 = vand.u32 %v2993, 4294901760
    %3701 = vmatpush1.msra.mxu0 %v3700
    %3702 = vmatprep.subr.mxu0 0.0
    %v3703 = vand.u32 %v2992, 4294901760
    %3704 = vmatpush1.msra.mxu0 %v3703
    %3705 = vmatprep.subr.mxu0 0.0
    %v3706 = vand.u32 %v2991, 4294901760
    %3707 = vmatpush1.msra.mxu0 %v3706
    %3708 = vmatprep.subr.mxu0 0.0
    %v3709 = vand.u32 %v2990, 4294901760
    %3710 = vmatpush1.msra.mxu0 %v3709
    %3711 = vmatprep.subr.mxu0 0.0
    %v3712 = vand.u32 %v2989, 4294901760
    %3713 = vmatpush1.msra.mxu0 %v3712
    %3714 = vmatprep.subr.mxu0 0.0
    %v3715 = vand.u32 %v2988, 4294901760
    %3716 = vmatpush1.msra.mxu0 %v3715
    %3717 = vmatprep.subr.mxu0 0.0
    %v3718 = vand.u32 %v2987, 4294901760
    %3719 = vmatpush1.msra.mxu0 %v3718
    %3720 = vmatprep.subr.mxu0 0.0
    %v3721 = vand.u32 %v2986, 4294901760
    %3722 = vmatpush1.msra.mxu0 %v3721
    %3723 = vmatprep.subr.mxu0 0.0
    %v3724 = vand.u32 %v2985, 4294901760
    %3725 = vmatpush1.msra.mxu0 %v3724
    %3726 = vmatprep.subr.mxu0 0.0
    %v3727 = vand.u32 %v2984, 4294901760
    %3728 = vmatpush1.msra.mxu0 %v3727
    %3729 = vmatprep.subr.mxu0 0.0
    %v3730 = vand.u32 %v2983, 4294901760
    %3731 = vmatpush1.msra.mxu0 %v3730
    %3732 = vmatprep.subr.mxu0 0.0
    %3733 = vmatpush2.msra.mxu0 0.0
    %3734 = vmatprep.subr.mxu0 0.0
    %3735 = vmatpush2.msra.mxu0 0.0
    %3736 = vmatprep.subr.mxu0 0.0
    %3737 = vmatpush2.msra.mxu0 0.0
    %3738 = vmatprep.subr.mxu0 0.0
    %3739 = vmatpush2.msra.mxu0 0.0
    %3740 = vmatprep.subr.mxu0 0.0
    %3741 = vmatpush2.msra.mxu0 0.0
    %3742 = vmatprep.subr.mxu0 0.0
    %3743 = vmatpush2.msra.mxu0 0.0
    %3744 = vmatprep.subr.mxu0 0.0
    %3745 = vmatpush2.msra.mxu0 0.0
    %3746 = vmatprep.subr.mxu0 0.0
    %3747 = vmatpush2.msra.mxu0 0.0
    %3748 = vmatprep.subr.mxu0 0.0
    %3749 = vmatpush2.msra.mxu0 0.0
    %3750 = vmatprep.subr.mxu0 0.0
    %3751 = vmatpush2.msra.mxu0 0.0
    %3752 = vmatprep.subr.mxu0 0.0
    %3753 = vmatpush2.msra.mxu0 0.0
    %3754 = vmatprep.subr.mxu0 0.0
    %3755 = vmatpush2.msra.mxu0 0.0
    %3756 = vmatprep.subr.mxu0 0.0
    %3757 = vmatpush2.msra.mxu0 0.0
    %3758 = vmatprep.subr.mxu0 0.0
    %3759 = vmatpush2.msra.mxu0 0.0
    %3760 = vmatprep.subr.mxu0 0.0
    %3761 = vmatpush2.msra.mxu0 0.0
    %3762 = vmatprep.subr.mxu0 0.0
    %3763 = vmatpush2.msra.mxu0 0.0
    %3764 = vmatprep.mubr.f32.mxu0 0.0
    %v3765 = vand.u32 %v111, 4294901760
    %3766 = vmatmul.mubr.f32.gmra.mxu0 %v3765
    %v3767 = vpop.f32.mrf.mxu0
    %v3768 = vadd.f32 %v3663, %v3767
    %v3769 = vpop.f32.mrf.mxu0
    %3770 = vmatprep.mubr.f32.mxu0 0.0
    %v3771 = vand.u32 %v112, 4294901760
    %3772 = vmatmul.mubr.f32.gmra.mxu0 %v3771
    %v3773 = vpop.f32.mrf.mxu0
    %v3774 = vadd.f32 %v3669, %v3773
    %v3775 = vpop.f32.mrf.mxu0
    %3776 = vmatprep.mubr.f32.mxu0 0.0
    %v3777 = vand.u32 %v113, 4294901760
    %3778 = vmatmul.mubr.f32.gmra.mxu0 %v3777
    %v3779 = vpop.f32.mrf.mxu0
    %v3780 = vadd.f32 %v3675, %v3779
    %v3781 = vpop.f32.mrf.mxu0
    %3782 = vmatprep.mubr.f32.mxu0 0.0
    %v3783 = vand.u32 %v114, 4294901760
    %3784 = vmatmul.mubr.f32.gmra.mxu0 %v3783
    %v3785 = vpop.f32.mrf.mxu0
    %v3786 = vadd.f32 %v3681, %v3785
    %v3787 = vpop.f32.mrf.mxu0
    %3788 = vdwg.mxu0
    %v3789 = vadd.f32 %v1656, %v3768
    %v3790 = vadd.f32 %v1657, %v3774
    %v3791 = vadd.f32 %v1658, %v3780
    %v3792 = vadd.f32 %v1659, %v3786
    %3793 = vst [vmem:[#allocation6] sm:$0xff] %v3789
    %3794 = vst [vmem:[#allocation6 + $0x8] sm:$0xff] %v3790
    %3795 = vst [vmem:[#allocation6 + $0x10] sm:$0xff] %v3791
    %3796 = vst [vmem:[#allocation6 + $0x18] sm:$0xff] %v3792
    // Predicated region
    $region54: #{tpu_custom_call.1} parent=1 // pred_check
      _
    $region55: #{tpu_custom_call.1} parent=1 // pred_check_branch
      %3798 = sbr.rel (0) target = $region57
    $region56: #{tpu_custom_call.1} parent=1 // pred_region
      %s3800 = ssub.s32 512, 512
      %3801 = vsyncadd [#allocation4], %s3800
      %s3802 = sshll.u32 [#allocation6], 4
      %s3803 = int_to_ptr.vmem [resolvable:$true] %s3802
      %3808 = dma.vmem_to_hbm [thread:$0]  %s3803, 512, %s12, [#allocation4], 128, 128, 8
    $region57: #{tpu_custom_call.1} parent=1 // pred_fallthru
      _
    // Predicated region
    $region58: #{tpu_custom_call.1} parent=1 // pred_check
      _
    $region59: #{tpu_custom_call.1} parent=1 // pred_check_branch
      %3810 = sbr.rel (0) target = $region61
    $region60: #{tpu_custom_call.1} parent=1 // pred_region
      %3811 = dma.done [#allocation4], 512
    $region61: #{tpu_custom_call.1} parent=1 // pred_fallthru
      _
    %3812 = vsyncpa [#allocation4], 1
    %3813 = vsyncpa [#allocation5], 1

</llo_original>
